<compile_context>
chip_gen: v7x
topology: tpu7x:2x2x1
jax: 0.10.0
libtpu: 0.0.40
codegen_flags: <defaults>
</compile_context>

<pallas_src>
import jax
import jax.numpy as jnp
from jax import lax
from jax.experimental import pallas as pl
from jax.experimental.pallas import tpu as pltpu

# ---- module hyper-parameters (PyTorch __init__ defaults) ----
DIM         = 20
NUM_HEADS   = 10
GROUP_SPLIT = (5, 5)
KERNEL_SIZE = 5
WINDOW      = 4
DIM_HEAD    = DIM // NUM_HEADS        # 2
SCALOR      = DIM_HEAD ** (-0.5)
GH1, GH2    = GROUP_SPLIT
C_HI        = GH1 * DIM_HEAD          # 10 (high-frequency channels)
C_QKV       = 3 * C_HI                # 30
C_LO        = GH2 * DIM_HEAD          # 10 (low-frequency channels)
PAD         = KERNEL_SIZE // 2        # 2
NTAP        = KERNEL_SIZE * KERNEL_SIZE

# dtype fed to the MXU (accumulation stays float32)
MXU_DTYPE   = jnp.bfloat16

# ---- packed-weight layout: one (PACK_ROWS, PACK_W) f32 array ---------------
# Each weight is stored channel-major (C_out, C_in) = PyTorch conv weight
# [:, :, 0, 0]; its bias sits in the column right after the weight block.
# The depthwise weight is the PyTorch (C,1,5,5) tensor reshaped to (C,25) with
# tap index di*5+dj.  Row offsets are 8-aligned so sublane slices stay aligned.
# The pack is 19 KB -> one tiny DMA; keeping it f32 keeps biases exact and the
# <= (40,25) weight->bf16 casts at MXU call sites are negligible VPU work.
R_QG      = 0      # rows   0..39 : [w_qkv (30,20) ; w_gq (10,20)], bias @ col 20
R_DW      = 40     # rows  40..69 : w_dw (30,25),                   bias @ col 25
R_A1      = 72     # rows  72..81 : w_a1 (10,10),                   bias @ col 10
R_A2      = 88     # rows  88..97 : w_a2 (10,10),                   bias @ col 10
R_GKV     = 104    # rows 104..123: w_gkv (20,20),                  bias @ col 20
R_PROJ    = 128    # rows 128..147: w_proj (20,20),                 bias @ col 20
PACK_ROWS = 152
PACK_W    = 32

# nonzero depthwise tap offsets; their 0/1 boundary masks are precomputed
# host-side and passed as a tiny (MASK_ROWS, L) input (item 8 of the review).
NZ_OFFS   = tuple(o for o in range(-PAD, PAD + 1) if o != 0)   # (-2, -1, 1, 2)
MASK_ROWS = 2 * len(NZ_OFFS)                                   # 8


def make_kernel(H, W, ipb):
    """Fused kernel for a fixed (H, W) with `ipb` images folded into lanes."""
    HW  = H * W
    L   = ipb * HW
    NKV = (H // WINDOW) * (W // WINDOW)

    def kernel(x_ref, pool_ref, wp_ref, msk_ref, o_ref):
        f32 = jnp.float32
        x     = x_ref[...]                                 # (DIM, L) bf16
        wp    = wp_ref[...]                                # (PACK_ROWS, PACK_W) f32
        masks = msk_ref[...]                               # (MASK_ROWS, L) f32, 0/1

        # -------- packed weight / bias slices (static offsets) --------
        w_qg   = wp[R_QG:R_QG + C_QKV + C_LO, 0:DIM]           # (40, 20)
        b_qg   = wp[R_QG:R_QG + C_QKV + C_LO, DIM:DIM + 1]     # (40, 1)
        w_dw   = wp[R_DW:R_DW + C_QKV, 0:NTAP]                 # (30, 25)
        b_dw   = wp[R_DW:R_DW + C_QKV, NTAP:NTAP + 1]          # (30, 1)
        w_a1   = wp[R_A1:R_A1 + C_HI, 0:C_HI]
        b_a1   = wp[R_A1:R_A1 + C_HI, C_HI:C_HI + 1]
        w_a2   = wp[R_A2:R_A2 + C_HI, 0:C_HI]
        b_a2   = wp[R_A2:R_A2 + C_HI, C_HI:C_HI + 1]
        w_gkv  = wp[R_GKV:R_GKV + 2 * C_LO, 0:DIM]
        b_gkv  = wp[R_GKV:R_GKV + 2 * C_LO, DIM:DIM + 1]
        w_proj = wp[R_PROJ:R_PROJ + DIM, 0:DIM]
        b_proj = wp[R_PROJ:R_PROJ + DIM, DIM:DIM + 1]

        def mm(w, v):
            # 1x1 conv / attention matmul: bf16 MXU inputs, f32 accumulation
            wb = w if w.dtype == MXU_DTYPE else w.astype(MXU_DTYPE)
            vb = v if v.dtype == MXU_DTYPE else v.astype(MXU_DTYPE)
            return jnp.dot(wb, vb, preferred_element_type=f32)

        # ---- fused 1x1 convs that share x: qkv (30ch) + global q (10ch) ----
        qg   = mm(w_qg, x) + b_qg                          # (40, L) f32
        qkv  = qg[0:C_QKV, :]                              # (30, L)
        q_lo = qg[C_QKV:C_QKV + C_LO, :]                   # (10, L)

        # ---- depthwise 5x5 conv (stride 1, pad 2) via lane rolls ----------
        # Boundary masks are precomputed 0/1 rows (no iota / % / // / selects
        # on the VPU); (lane//W) % H in the mask also stops vertical rolls
        # from bleeding across the ipb folded images.
        def hmask(o):
            r = NZ_OFFS.index(o)
            return masks[r:r + 1, :]                       # (1, L)

        def vmask(o):
            r = len(NZ_OFFS) + NZ_OFFS.index(o)
            return masks[r:r + 1, :]

        # horizontal shifts: hshift[dj][c, (i,j)] = qkv[c, (i, j+dj-PAD)], 0 outside
        hshift = []
        for dj in range(KERNEL_SIZE):
            o = dj - PAD
            if o == 0:
                hshift.append(qkv)
            else:
                rolled = pltpu.roll(qkv, shift=(-o) % L, axis=1)
                hshift.append(rolled * hmask(o))

        # per tap-row: weight the 5 horizontal shifts, then shift vertically once
        dw = None
        for di in range(KERNEL_SIZE):
            o = di - PAD
            part = hshift[0] * w_dw[:, di * KERNEL_SIZE:di * KERNEL_SIZE + 1]
            for dj in range(1, KERNEL_SIZE):
                t = di * KERNEL_SIZE + dj
                part = part + hshift[dj] * w_dw[:, t:t + 1]
            if o != 0:
                part = pltpu.roll(part, shift=(-o * W) % L, axis=1) * vmask(o)
            dw = part if dw is None else dw + part
        dw = dw + b_dw                                     # (30, L) f32

        # ---- high-frequency attention ----
        q_h = dw[0:C_HI, :]
        k_h = dw[C_HI:2 * C_HI, :]
        v_h = dw[2 * C_HI:3 * C_HI, :]

        a = mm(w_a1, q_h * k_h) + b_a1                            # (10, L)
        a = a * pl.reciprocal(1.0 + jnp.exp(-a), approx=True)     # swish (EUP)
        a = mm(w_a2, a) + b_a2
        res_hi = jnp.tanh(a * SCALOR) * v_h                       # (10, L)

        # high-freq half of the output projection (K-split, no channel concat)
        out_hi = mm(w_proj[:, 0:C_HI], res_hi)                    # (20, L)

        # ---- low-frequency (global) attention --------------------------------
        # kv 1x1 conv on wrapper-pooled tokens (pooling is linear, bias after
        # pooling => exactly the PyTorch avgpool -> conv order).
        kvm = mm(w_gkv, pool_ref[...]) + b_gkv             # (20, ipb*NKV) f32

        # Per image and per head so only one (NKV, HW) logits/probability block
        # is live at a time (v7x VMEM).  The head's slice of the projection is
        # folded into v, so res_lo is never materialized / concatenated.
        # NOTE: for very large HW, additionally tile the HW (query) axis here.
        for b in range(ipb):
            qb = q_lo[:, b * HW:(b + 1) * HW]              # (10, HW)
            kb = kvm[0:C_LO, b * NKV:(b + 1) * NKV]        # (10, NKV)
            vb = kvm[C_LO:2 * C_LO, b * NKV:(b + 1) * NKV]
            low = None
            for h in range(GH2):
                qh = qb[h * DIM_HEAD:(h + 1) * DIM_HEAD, :]        # (2, HW)
                kh = kb[h * DIM_HEAD:(h + 1) * DIM_HEAD, :]        # (2, NKV)
                vh = vb[h * DIM_HEAD:(h + 1) * DIM_HEAD, :]        # (2, NKV)
                # logits[t, p] = sum_d kh[d, t] * qh[d, p]
                logits = lax.dot_general(
                    kh.astype(MXU_DTYPE), qh.astype(MXU_DTYPE),
                    (((0,), (0,)), ((), ())),
                    preferred_element_type=f32) * SCALOR           # (NKV, HW)
                m = jnp.max(logits, axis=0, keepdims=True)
                e = jnp.exp(logits - m)
                s = jnp.sum(e, axis=0, keepdims=True)
                p = e * pl.reciprocal(s, approx=True)              # softmax over tokens
                # fold this head's projection columns into v (exact, same MXU pushes)
                wph = w_proj[:, C_HI + h * DIM_HEAD:C_HI + (h + 1) * DIM_HEAD]  # (20, 2)
                pv  = mm(wph, vh)                                  # (20, NKV)
                contrib = mm(pv, p)                                # (20, HW)
                low = contrib if low is None else low + contrib
            o_ref[:, b * HW:(b + 1) * HW] = (
                out_hi[:, b * HW:(b + 1) * HW] + low + b_proj).astype(o_ref.dtype)

    return kernel


def pack_params(params):
    """Pack all weights/biases into one (PACK_ROWS, PACK_W) f32 array."""
    wp = jnp.zeros((PACK_ROWS, PACK_W), jnp.float32)

    def put(buf, row, w, b):
        co, ci = w.shape
        buf = buf.at[row:row + co, 0:ci].set(w.astype(jnp.float32))
        buf = buf.at[row:row + co, ci:ci + 1].set(b.astype(jnp.float32)[:, None])
        return buf

    wp = put(wp, R_QG,
             jnp.concatenate([params["w_qkv"], params["w_gq"]], axis=0),
             jnp.concatenate([params["b_qkv"], params["b_gq"]], axis=0))
    wp = put(wp, R_DW,   params["w_dw"],   params["b_dw"])
    wp = put(wp, R_A1,   params["w_a1"],   params["b_a1"])
    wp = put(wp, R_A2,   params["w_a2"],   params["b_a2"])
    wp = put(wp, R_GKV,  params["w_gkv"],  params["b_gkv"])
    wp = put(wp, R_PROJ, params["w_proj"], params["b_proj"])
    return wp


def make_dw_masks(H, W, ipb):
    """(MASK_ROWS, ipb*H*W) 0/1 boundary masks for the depthwise 5x5 conv.

    Rows 0..3: horizontal validity for column offsets (-2,-1,1,2);
    rows 4..7: vertical validity for row offsets (-2,-1,1,2), with the row
    index taken per image ((lane // W) % H) so rolls never bleed across the
    ipb images folded into the lane axis."""
    L = ipb * H * W
    lane = jnp.arange(L, dtype=jnp.int32)
    colj = lane % W
    rowi = (lane // W) % H
    hm = [jnp.logical_and(colj + o >= 0, colj + o < W) for o in NZ_OFFS]
    vm = [jnp.logical_and(rowi + o >= 0, rowi + o < H) for o in NZ_OFFS]
    return jnp.stack(hm + vm, axis=0).astype(jnp.float32)


def efficient_attention(x_nchw, params, target_lanes=512):
    """x_nchw: (B, DIM, H, W) float32, same layout as the PyTorch module."""
    B, C, H, W = x_nchw.shape
    assert C == DIM and H % WINDOW == 0 and W % WINDOW == 0
    HW  = H * W
    NKV = (H // WINDOW) * (W // WINDOW)

    # Fold several images into the lane axis per grid step so lane width is
    # >= target_lanes when HW is small (amortizes the ~0.35us/step overhead and
    # keeps stores lane-dense).  On v7x you may cap ipb so B//ipb stays a
    # multiple of 2 to keep both TensorCores busy.
    ipb = 1
    for cand in range(1, B + 1):
        if B % cand == 0 and cand * HW <= max(target_lanes, HW):
            ipb = cand
    G = B // ipb
    L = ipb * HW

    xf = x_nchw.astype(jnp.float32)

    # Parameter-free 4x4 average pooling done host-side as an O(HW) reshape+mean
    # (replaces the O(HW^2) one-hot pooling matrix + matmul of the previous
    # revision).  The learned kv 1x1 conv stays inside the kernel; since the
    # conv is linear and its bias is added after pooling, pool->conv == the
    # module's avgpool -> conv exactly.
    pooled = xf.reshape(B, C, H // WINDOW, WINDOW, W // WINDOW, WINDOW).mean(axis=(3, 5))
    pooled = pooled.reshape(B, C, NKV)

    def fold(a, n):   # (B, C, n) -> (G, C, ipb*n), images contiguous on lanes
        return a.reshape(G, ipb, C, n).transpose(0, 2, 1, 3).reshape(G, C, ipb * n)

    x_in    = fold(xf.reshape(B, C, HW), HW).astype(MXU_DTYPE)   # bf16 once, host side
    pool_in = fold(pooled, NKV).astype(MXU_DTYPE)
    wpack   = pack_params(params)                                # (152, 32) f32
    dmask   = make_dw_masks(H, W, ipb)                           # (8, L) f32

    out = pl.pallas_call(
        make_kernel(H, W, ipb),
        out_shape=jax.ShapeDtypeStruct((G, DIM, L), jnp.float32),
        grid=(G,),
        in_specs=[
            pl.BlockSpec((None, DIM, L), lambda b: (b, 0, 0)),
            pl.BlockSpec((None, DIM, ipb * NKV), lambda b: (b, 0, 0)),
            pl.BlockSpec((PACK_ROWS, PACK_W), lambda b: (0, 0)),
            pl.BlockSpec((MASK_ROWS, L), lambda b: (0, 0)),
        ],
        out_specs=pl.BlockSpec((None, DIM, L), lambda b: (b, 0, 0)),
        compiler_params=pltpu.CompilerParams(
            dimension_semantics=("parallel",),      # megacore shards the batch groups
            vmem_limit_bytes=32 * 1024 * 1024,      # plenty: per-step footprint is <1 MiB
        ),
    )(x_in, pool_in, wpack, dmask)

    out = out.reshape(G, DIM, ipb, HW).transpose(0, 2, 1, 3).reshape(B, DIM, H, W)
    return out


def reference_forward(x_nchw, params):
    """Plain-JAX float32 reference implementing the PyTorch forward."""
    B, C, H, W = x_nchw.shape
    HW = H * W
    xi = x_nchw.astype(jnp.float32)
    xf = xi.reshape(B, C, HW)

    def conv1x1(w, b, v):  # w (Co,Ci), b (Co,), v (B,Ci,N)
        return jnp.einsum("oc,bcn->bon", w, v) + b[None, :, None]

    # high-frequency branch
    qkv = conv1x1(params["w_qkv"], params["b_qkv"], xf).reshape(B, C_QKV, H, W)
    padq = jnp.pad(qkv, ((0, 0), (0, 0), (PAD, PAD), (PAD, PAD)))
    w_dw = params["w_dw"]
    dw = jnp.zeros((B, C_QKV, H, W), jnp.float32)
    for di in range(KERNEL_SIZE):
        for dj in range(KERNEL_SIZE):
            dw = dw + padq[:, :, di:di + H, dj:dj + W] \
                 * w_dw[:, di * KERNEL_SIZE + dj][None, :, None, None]
    dw = (dw + params["b_dw"][None, :, None, None]).reshape(B, C_QKV, HW)
    q_h, k_h, v_h = dw[:, :C_HI], dw[:, C_HI:2 * C_HI], dw[:, 2 * C_HI:]
    a = conv1x1(params["w_a1"], params["b_a1"], q_h * k_h)
    a = a * jax.nn.sigmoid(a)
    a = conv1x1(params["w_a2"], params["b_a2"], a)
    res_hi = jnp.tanh(SCALOR * a) * v_h

    # low-frequency branch
    q_lo = conv1x1(params["w_gq"], params["b_gq"], xf)
    pooled = xi.reshape(B, C, H // WINDOW, WINDOW, W // WINDOW, WINDOW)
    pooled = pooled.mean(axis=(3, 5)).reshape(B, C, -1)
    kv = conv1x1(params["w_gkv"], params["b_gkv"], pooled)
    nkv = kv.shape[-1]
    q3 = q_lo.reshape(B, GH2, DIM_HEAD, HW)
    k3 = kv[:, :C_LO].reshape(B, GH2, DIM_HEAD, nkv)
    v3 = kv[:, C_LO:].reshape(B, GH2, DIM_HEAD, nkv)
    logits = SCALOR * jnp.einsum("bgdt,bgdp->bgtp", k3, q3)
    attn = jax.nn.softmax(logits, axis=2)
    res_lo = jnp.einsum("bgdt,bgtp->bgdp", v3, attn).reshape(B, C_LO, HW)

    cat = jnp.concatenate([res_hi, res_lo], axis=1)
    out = conv1x1(params["w_proj"], params["b_proj"], cat)
    return out.reshape(B, DIM, H, W)


def init_params(key):
    """Deterministic synthetic params, channel-major (C_out, C_in).

    Mapping from PyTorch: 1x1 convs -> weight[:, :, 0, 0]; the depthwise 5x5
    conv weight (C, 1, 5, 5) -> reshape(C, 25) with tap index di*5 + dj.
    """
    shapes = {
        "w_qkv":  (C_QKV, DIM),      "b_qkv":  (C_QKV,),
        "w_dw":   (C_QKV, NTAP),     "b_dw":   (C_QKV,),
        "w_a1":   (C_HI, C_HI),      "b_a1":   (C_HI,),
        "w_a2":   (C_HI, C_HI),      "b_a2":   (C_HI,),
        "w_gq":   (C_LO, DIM),       "b_gq":   (C_LO,),
        "w_gkv":  (2 * C_LO, DIM),   "b_gkv":  (2 * C_LO,),
        "w_proj": (DIM, DIM),        "b_proj": (DIM,),
    }
    keys = jax.random.split(key, len(shapes))
    return {name: (0.1 * jax.random.normal(k, shp)).astype(jnp.float32)
            for k, (name, shp) in zip(keys, shapes.items())}


if __name__ == "__main__":
    key = jax.random.PRNGKey(0)
    kx, kp = jax.random.split(key)

    B, H, W = 2, 16, 16            # HW = 256; both images fold into one 512-lane step
    x = jax.random.normal(kx, (B, DIM, H, W), dtype=jnp.float32)  # NCHW like PyTorch
    params = init_params(kp)

    y = jax.block_until_ready(efficient_attention(x, params))
    assert y.shape == (B, DIM, H, W), y.shape
    assert bool(jnp.all(jnp.isfinite(y)))

    # numerical check against a plain-JAX float32 reference (the kernel feeds
    # the MXU bf16 and uses approximate reciprocals, so allow a loose tolerance)
    y_ref = jax.block_until_ready(reference_forward(x, params))
    max_err = float(jnp.max(jnp.abs(y - y_ref)))
    assert max_err < 2e-2, f"max abs error vs reference: {max_err}"

    print("KERNEL_OK")
</pallas_src>

<mosaic_0001>
module attributes {stable_mosaic.version = 11 : i64} {
  func.func @kernel(%arg0: i32, %arg1: memref<1x20x512xbf16, #tpu.memory_space<vmem>>, %arg2: memref<1x20x32xbf16, #tpu.memory_space<vmem>>, %arg3: memref<152x32xf32, #tpu.memory_space<vmem>>, %arg4: memref<8x512xf32, #tpu.memory_space<vmem>>, %arg5: memref<1x20x512xf32, #tpu.memory_space<vmem>>) attributes {dimension_semantics = [#tpu.dimension_semantics<parallel>], iteration_bounds = array<i64: 1>, scalar_prefetch = 0 : i64, scratch_operands = 0 : i64, tpu.core_type = #tpu.core_type<tc>, window_params = [{transform_indices = @transform_0, window_bounds = array<i64: 1, 20, 512>}, {transform_indices = @transform_1, window_bounds = array<i64: 1, 20, 32>}, {pipeline_mode = #tpu.pipeline_mode<synchronous>, transform_indices = @transform_2, window_bounds = array<i64: 152, 32>}, {pipeline_mode = #tpu.pipeline_mode<synchronous>, transform_indices = @transform_3, window_bounds = array<i64: 8, 512>}, {transform_indices = @transform_4, window_bounds = array<i64: 1, 20, 512>}]} {
    %c0 = arith.constant 0 : index
    %c0_0 = arith.constant 0 : index
    %c0_1 = arith.constant 0 : index
    %0 = vector.load %arg1[%c0, %c0_0, %c0_1] : memref<1x20x512xbf16, #tpu.memory_space<vmem>>, vector<1x20x512xbf16>
    %1 = vector.shape_cast %0 : vector<1x20x512xbf16> to vector<20x512xbf16>
    %c0_2 = arith.constant 0 : index
    %c0_3 = arith.constant 0 : index
    %2 = vector.load %arg3[%c0_2, %c0_3] : memref<152x32xf32, #tpu.memory_space<vmem>>, vector<152x32xf32>
    %c0_4 = arith.constant 0 : index
    %c0_5 = arith.constant 0 : index
    %3 = vector.load %arg4[%c0_4, %c0_5] : memref<8x512xf32, #tpu.memory_space<vmem>>, vector<8x512xf32>
    %4 = vector.extract_strided_slice %2 {offsets = [0, 0], sizes = [40, 20], strides = [1, 1]} : vector<152x32xf32> to vector<40x20xf32>
    %5 = vector.extract_strided_slice %2 {offsets = [0, 20], sizes = [40, 1], strides = [1, 1]} : vector<152x32xf32> to vector<40x1xf32>
    %6 = vector.extract_strided_slice %2 {offsets = [40, 0], sizes = [30, 25], strides = [1, 1]} : vector<152x32xf32> to vector<30x25xf32>
    %7 = vector.extract_strided_slice %2 {offsets = [40, 25], sizes = [30, 1], strides = [1, 1]} : vector<152x32xf32> to vector<30x1xf32>
    %8 = vector.extract_strided_slice %2 {offsets = [72, 0], sizes = [10, 10], strides = [1, 1]} : vector<152x32xf32> to vector<10x10xf32>
    %9 = vector.extract_strided_slice %2 {offsets = [72, 10], sizes = [10, 1], strides = [1, 1]} : vector<152x32xf32> to vector<10x1xf32>
    %10 = vector.extract_strided_slice %2 {offsets = [88, 0], sizes = [10, 10], strides = [1, 1]} : vector<152x32xf32> to vector<10x10xf32>
    %11 = vector.extract_strided_slice %2 {offsets = [88, 10], sizes = [10, 1], strides = [1, 1]} : vector<152x32xf32> to vector<10x1xf32>
    %12 = vector.extract_strided_slice %2 {offsets = [104, 0], sizes = [20, 20], strides = [1, 1]} : vector<152x32xf32> to vector<20x20xf32>
    %13 = vector.extract_strided_slice %2 {offsets = [104, 20], sizes = [20, 1], strides = [1, 1]} : vector<152x32xf32> to vector<20x1xf32>
    %14 = vector.extract_strided_slice %2 {offsets = [128, 0], sizes = [20, 20], strides = [1, 1]} : vector<152x32xf32> to vector<20x20xf32>
    %15 = vector.extract_strided_slice %2 {offsets = [128, 20], sizes = [20, 1], strides = [1, 1]} : vector<152x32xf32> to vector<20x1xf32>
    %16 = arith.truncf %4 : vector<40x20xf32> to vector<40x20xbf16>
    %cst = arith.constant dense<0.000000e+00> : vector<40x512xf32>
    %17 = tpu.matmul %16, %1, %cst {dimension_numbers = #tpu.dot_dimension_numbers<[1], [0], [0], [1], [0, 0, 1, 1], [], []>} : vector<40x20xbf16>, vector<20x512xbf16>, vector<40x512xf32> -> vector<40x512xf32>
    %18 = vector.broadcast %5 : vector<40x1xf32> to vector<40x512xf32>
    %19 = arith.addf %17, %18 : vector<40x512xf32>
    %20 = vector.extract_strided_slice %19 {offsets = [0, 0], sizes = [30, 512], strides = [1, 1]} : vector<40x512xf32> to vector<30x512xf32>
    %21 = vector.extract_strided_slice %19 {offsets = [30, 0], sizes = [10, 512], strides = [1, 1]} : vector<40x512xf32> to vector<10x512xf32>
    %c2_i32 = arith.constant 2 : i32
    %22 = tpu.dynamic_rotate %20 by %c2_i32 dim 1 : vector<30x512xf32>, i32 -> vector<30x512xf32>
    %23 = vector.extract_strided_slice %3 {offsets = [0, 0], sizes = [1, 512], strides = [1, 1]} : vector<8x512xf32> to vector<1x512xf32>
    %24 = vector.broadcast %23 : vector<1x512xf32> to vector<30x512xf32>
    %25 = arith.mulf %22, %24 : vector<30x512xf32>
    %c1_i32 = arith.constant 1 : i32
    %26 = tpu.dynamic_rotate %20 by %c1_i32 dim 1 : vector<30x512xf32>, i32 -> vector<30x512xf32>
    %27 = vector.extract_strided_slice %3 {offsets = [1, 0], sizes = [1, 512], strides = [1, 1]} : vector<8x512xf32> to vector<1x512xf32>
    %28 = vector.broadcast %27 : vector<1x512xf32> to vector<30x512xf32>
    %29 = arith.mulf %26, %28 : vector<30x512xf32>
    %c511_i32 = arith.constant 511 : i32
    %30 = tpu.dynamic_rotate %20 by %c511_i32 dim 1 : vector<30x512xf32>, i32 -> vector<30x512xf32>
    %31 = vector.extract_strided_slice %3 {offsets = [2, 0], sizes = [1, 512], strides = [1, 1]} : vector<8x512xf32> to vector<1x512xf32>
    %32 = vector.broadcast %31 : vector<1x512xf32> to vector<30x512xf32>
    %33 = arith.mulf %30, %32 : vector<30x512xf32>
    %c510_i32 = arith.constant 510 : i32
    %34 = tpu.dynamic_rotate %20 by %c510_i32 dim 1 : vector<30x512xf32>, i32 -> vector<30x512xf32>
    %35 = vector.extract_strided_slice %3 {offsets = [3, 0], sizes = [1, 512], strides = [1, 1]} : vector<8x512xf32> to vector<1x512xf32>
    %36 = vector.broadcast %35 : vector<1x512xf32> to vector<30x512xf32>
    %37 = arith.mulf %34, %36 : vector<30x512xf32>
    %38 = vector.extract_strided_slice %6 {offsets = [0, 0], sizes = [30, 1], strides = [1, 1]} : vector<30x25xf32> to vector<30x1xf32>
    %39 = vector.broadcast %38 : vector<30x1xf32> to vector<30x512xf32>
    %40 = arith.mulf %25, %39 : vector<30x512xf32>
    %41 = vector.extract_strided_slice %6 {offsets = [0, 1], sizes = [30, 1], strides = [1, 1]} : vector<30x25xf32> to vector<30x1xf32>
    %42 = vector.broadcast %41 : vector<30x1xf32> to vector<30x512xf32>
    %43 = arith.mulf %29, %42 : vector<30x512xf32>
    %44 = arith.addf %40, %43 : vector<30x512xf32>
    %45 = vector.extract_strided_slice %6 {offsets = [0, 2], sizes = [30, 1], strides = [1, 1]} : vector<30x25xf32> to vector<30x1xf32>
    %46 = vector.broadcast %45 : vector<30x1xf32> to vector<30x512xf32>
    %47 = arith.mulf %20, %46 : vector<30x512xf32>
    %48 = arith.addf %44, %47 : vector<30x512xf32>
    %49 = vector.extract_strided_slice %6 {offsets = [0, 3], sizes = [30, 1], strides = [1, 1]} : vector<30x25xf32> to vector<30x1xf32>
    %50 = vector.broadcast %49 : vector<30x1xf32> to vector<30x512xf32>
    %51 = arith.mulf %33, %50 : vector<30x512xf32>
    %52 = arith.addf %48, %51 : vector<30x512xf32>
    %53 = vector.extract_strided_slice %6 {offsets = [0, 4], sizes = [30, 1], strides = [1, 1]} : vector<30x25xf32> to vector<30x1xf32>
    %54 = vector.broadcast %53 : vector<30x1xf32> to vector<30x512xf32>
    %55 = arith.mulf %37, %54 : vector<30x512xf32>
    %56 = arith.addf %52, %55 : vector<30x512xf32>
    %c32_i32 = arith.constant 32 : i32
    %57 = tpu.dynamic_rotate %56 by %c32_i32 dim 1 : vector<30x512xf32>, i32 -> vector<30x512xf32>
    %58 = vector.extract_strided_slice %3 {offsets = [4, 0], sizes = [1, 512], strides = [1, 1]} : vector<8x512xf32> to vector<1x512xf32>
    %59 = vector.broadcast %58 : vector<1x512xf32> to vector<30x512xf32>
    %60 = arith.mulf %57, %59 : vector<30x512xf32>
    %61 = vector.extract_strided_slice %6 {offsets = [0, 5], sizes = [30, 1], strides = [1, 1]} : vector<30x25xf32> to vector<30x1xf32>
    %62 = vector.broadcast %61 : vector<30x1xf32> to vector<30x512xf32>
    %63 = arith.mulf %25, %62 : vector<30x512xf32>
    %64 = vector.extract_strided_slice %6 {offsets = [0, 6], sizes = [30, 1], strides = [1, 1]} : vector<30x25xf32> to vector<30x1xf32>
    %65 = vector.broadcast %64 : vector<30x1xf32> to vector<30x512xf32>
    %66 = arith.mulf %29, %65 : vector<30x512xf32>
    %67 = arith.addf %63, %66 : vector<30x512xf32>
    %68 = vector.extract_strided_slice %6 {offsets = [0, 7], sizes = [30, 1], strides = [1, 1]} : vector<30x25xf32> to vector<30x1xf32>
    %69 = vector.broadcast %68 : vector<30x1xf32> to vector<30x512xf32>
    %70 = arith.mulf %20, %69 : vector<30x512xf32>
    %71 = arith.addf %67, %70 : vector<30x512xf32>
    %72 = vector.extract_strided_slice %6 {offsets = [0, 8], sizes = [30, 1], strides = [1, 1]} : vector<30x25xf32> to vector<30x1xf32>
    %73 = vector.broadcast %72 : vector<30x1xf32> to vector<30x512xf32>
    %74 = arith.mulf %33, %73 : vector<30x512xf32>
    %75 = arith.addf %71, %74 : vector<30x512xf32>
    %76 = vector.extract_strided_slice %6 {offsets = [0, 9], sizes = [30, 1], strides = [1, 1]} : vector<30x25xf32> to vector<30x1xf32>
    %77 = vector.broadcast %76 : vector<30x1xf32> to vector<30x512xf32>
    %78 = arith.mulf %37, %77 : vector<30x512xf32>
    %79 = arith.addf %75, %78 : vector<30x512xf32>
    %c16_i32 = arith.constant 16 : i32
    %80 = tpu.dynamic_rotate %79 by %c16_i32 dim 1 : vector<30x512xf32>, i32 -> vector<30x512xf32>
    %81 = vector.extract_strided_slice %3 {offsets = [5, 0], sizes = [1, 512], strides = [1, 1]} : vector<8x512xf32> to vector<1x512xf32>
    %82 = vector.broadcast %81 : vector<1x512xf32> to vector<30x512xf32>
    %83 = arith.mulf %80, %82 : vector<30x512xf32>
    %84 = arith.addf %60, %83 : vector<30x512xf32>
    %85 = vector.extract_strided_slice %6 {offsets = [0, 10], sizes = [30, 1], strides = [1, 1]} : vector<30x25xf32> to vector<30x1xf32>
    %86 = vector.broadcast %85 : vector<30x1xf32> to vector<30x512xf32>
    %87 = arith.mulf %25, %86 : vector<30x512xf32>
    %88 = vector.extract_strided_slice %6 {offsets = [0, 11], sizes = [30, 1], strides = [1, 1]} : vector<30x25xf32> to vector<30x1xf32>
    %89 = vector.broadcast %88 : vector<30x1xf32> to vector<30x512xf32>
    %90 = arith.mulf %29, %89 : vector<30x512xf32>
    %91 = arith.addf %87, %90 : vector<30x512xf32>
    %92 = vector.extract_strided_slice %6 {offsets = [0, 12], sizes = [30, 1], strides = [1, 1]} : vector<30x25xf32> to vector<30x1xf32>
    %93 = vector.broadcast %92 : vector<30x1xf32> to vector<30x512xf32>
    %94 = arith.mulf %20, %93 : vector<30x512xf32>
    %95 = arith.addf %91, %94 : vector<30x512xf32>
    %96 = vector.extract_strided_slice %6 {offsets = [0, 13], sizes = [30, 1], strides = [1, 1]} : vector<30x25xf32> to vector<30x1xf32>
    %97 = vector.broadcast %96 : vector<30x1xf32> to vector<30x512xf32>
    %98 = arith.mulf %33, %97 : vector<30x512xf32>
    %99 = arith.addf %95, %98 : vector<30x512xf32>
    %100 = vector.extract_strided_slice %6 {offsets = [0, 14], sizes = [30, 1], strides = [1, 1]} : vector<30x25xf32> to vector<30x1xf32>
    %101 = vector.broadcast %100 : vector<30x1xf32> to vector<30x512xf32>
    %102 = arith.mulf %37, %101 : vector<30x512xf32>
    %103 = arith.addf %99, %102 : vector<30x512xf32>
    %104 = arith.addf %84, %103 : vector<30x512xf32>
    %105 = vector.extract_strided_slice %6 {offsets = [0, 15], sizes = [30, 1], strides = [1, 1]} : vector<30x25xf32> to vector<30x1xf32>
    %106 = vector.broadcast %105 : vector<30x1xf32> to vector<30x512xf32>
    %107 = arith.mulf %25, %106 : vector<30x512xf32>
    %108 = vector.extract_strided_slice %6 {offsets = [0, 16], sizes = [30, 1], strides = [1, 1]} : vector<30x25xf32> to vector<30x1xf32>
    %109 = vector.broadcast %108 : vector<30x1xf32> to vector<30x512xf32>
    %110 = arith.mulf %29, %109 : vector<30x512xf32>
    %111 = arith.addf %107, %110 : vector<30x512xf32>
    %112 = vector.extract_strided_slice %6 {offsets = [0, 17], sizes = [30, 1], strides = [1, 1]} : vector<30x25xf32> to vector<30x1xf32>
    %113 = vector.broadcast %112 : vector<30x1xf32> to vector<30x512xf32>
    %114 = arith.mulf %20, %113 : vector<30x512xf32>
    %115 = arith.addf %111, %114 : vector<30x512xf32>
    %116 = vector.extract_strided_slice %6 {offsets = [0, 18], sizes = [30, 1], strides = [1, 1]} : vector<30x25xf32> to vector<30x1xf32>
    %117 = vector.broadcast %116 : vector<30x1xf32> to vector<30x512xf32>
    %118 = arith.mulf %33, %117 : vector<30x512xf32>
    %119 = arith.addf %115, %118 : vector<30x512xf32>
    %120 = vector.extract_strided_slice %6 {offsets = [0, 19], sizes = [30, 1], strides = [1, 1]} : vector<30x25xf32> to vector<30x1xf32>
    %121 = vector.broadcast %120 : vector<30x1xf32> to vector<30x512xf32>
    %122 = arith.mulf %37, %121 : vector<30x512xf32>
    %123 = arith.addf %119, %122 : vector<30x512xf32>
    %c496_i32 = arith.constant 496 : i32
    %124 = tpu.dynamic_rotate %123 by %c496_i32 dim 1 : vector<30x512xf32>, i32 -> vector<30x512xf32>
    %125 = vector.extract_strided_slice %3 {offsets = [6, 0], sizes = [1, 512], strides = [1, 1]} : vector<8x512xf32> to vector<1x512xf32>
    %126 = vector.broadcast %125 : vector<1x512xf32> to vector<30x512xf32>
    %127 = arith.mulf %124, %126 : vector<30x512xf32>
    %128 = arith.addf %104, %127 : vector<30x512xf32>
    %129 = vector.extract_strided_slice %6 {offsets = [0, 20], sizes = [30, 1], strides = [1, 1]} : vector<30x25xf32> to vector<30x1xf32>
    %130 = vector.broadcast %129 : vector<30x1xf32> to vector<30x512xf32>
    %131 = arith.mulf %25, %130 : vector<30x512xf32>
    %132 = vector.extract_strided_slice %6 {offsets = [0, 21], sizes = [30, 1], strides = [1, 1]} : vector<30x25xf32> to vector<30x1xf32>
    %133 = vector.broadcast %132 : vector<30x1xf32> to vector<30x512xf32>
    %134 = arith.mulf %29, %133 : vector<30x512xf32>
    %135 = arith.addf %131, %134 : vector<30x512xf32>
    %136 = vector.extract_strided_slice %6 {offsets = [0, 22], sizes = [30, 1], strides = [1, 1]} : vector<30x25xf32> to vector<30x1xf32>
    %137 = vector.broadcast %136 : vector<30x1xf32> to vector<30x512xf32>
    %138 = arith.mulf %20, %137 : vector<30x512xf32>
    %139 = arith.addf %135, %138 : vector<30x512xf32>
    %140 = vector.extract_strided_slice %6 {offsets = [0, 23], sizes = [30, 1], strides = [1, 1]} : vector<30x25xf32> to vector<30x1xf32>
    %141 = vector.broadcast %140 : vector<30x1xf32> to vector<30x512xf32>
    %142 = arith.mulf %33, %141 : vector<30x512xf32>
    %143 = arith.addf %139, %142 : vector<30x512xf32>
    %144 = vector.extract_strided_slice %6 {offsets = [0, 24], sizes = [30, 1], strides = [1, 1]} : vector<30x25xf32> to vector<30x1xf32>
    %145 = vector.broadcast %144 : vector<30x1xf32> to vector<30x512xf32>
    %146 = arith.mulf %37, %145 : vector<30x512xf32>
    %147 = arith.addf %143, %146 : vector<30x512xf32>
    %c480_i32 = arith.constant 480 : i32
    %148 = tpu.dynamic_rotate %147 by %c480_i32 dim 1 : vector<30x512xf32>, i32 -> vector<30x512xf32>
    %149 = vector.extract_strided_slice %3 {offsets = [7, 0], sizes = [1, 512], strides = [1, 1]} : vector<8x512xf32> to vector<1x512xf32>
    %150 = vector.broadcast %149 : vector<1x512xf32> to vector<30x512xf32>
    %151 = arith.mulf %148, %150 : vector<30x512xf32>
    %152 = arith.addf %128, %151 : vector<30x512xf32>
    %153 = vector.broadcast %7 : vector<30x1xf32> to vector<30x512xf32>
    %154 = arith.addf %152, %153 : vector<30x512xf32>
    %155 = vector.extract_strided_slice %154 {offsets = [0, 0], sizes = [10, 512], strides = [1, 1]} : vector<30x512xf32> to vector<10x512xf32>
    %156 = vector.extract_strided_slice %154 {offsets = [10, 0], sizes = [10, 512], strides = [1, 1]} : vector<30x512xf32> to vector<10x512xf32>
    %157 = vector.extract_strided_slice %154 {offsets = [20, 0], sizes = [10, 512], strides = [1, 1]} : vector<30x512xf32> to vector<10x512xf32>
    %158 = arith.mulf %155, %156 : vector<10x512xf32>
    %159 = arith.truncf %8 : vector<10x10xf32> to vector<10x10xbf16>
    %160 = arith.truncf %158 : vector<10x512xf32> to vector<10x512xbf16>
    %cst_6 = arith.constant dense<0.000000e+00> : vector<10x512xf32>
    %161 = tpu.matmul %159, %160, %cst_6 {dimension_numbers = #tpu.dot_dimension_numbers<[1], [0], [0], [1], [0, 0, 1, 1], [], []>} : vector<10x10xbf16>, vector<10x512xbf16>, vector<10x512xf32> -> vector<10x512xf32>
    %162 = vector.broadcast %9 : vector<10x1xf32> to vector<10x512xf32>
    %163 = arith.addf %161, %162 : vector<10x512xf32>
    %cst_7 = arith.constant 0.000000e+00 : f32
    %164 = vector.broadcast %cst_7 : f32 to vector<10x512xf32>
    %165 = arith.subf %164, %163 : vector<10x512xf32>
    %166 = math.exp %165 : vector<10x512xf32>
    %cst_8 = arith.constant 1.000000e+00 : f32
    %167 = vector.broadcast %cst_8 : f32 to vector<10x512xf32>
    %168 = arith.addf %167, %166 : vector<10x512xf32>
    %169 = tpu.reciprocal %168 {approx = true} : vector<10x512xf32> -> vector<10x512xf32>
    %170 = arith.mulf %163, %169 : vector<10x512xf32>
    %171 = arith.truncf %10 : vector<10x10xf32> to vector<10x10xbf16>
    %172 = arith.truncf %170 : vector<10x512xf32> to vector<10x512xbf16>
    %cst_9 = arith.constant dense<0.000000e+00> : vector<10x512xf32>
    %173 = tpu.matmul %171, %172, %cst_9 {dimension_numbers = #tpu.dot_dimension_numbers<[1], [0], [0], [1], [0, 0, 1, 1], [], []>} : vector<10x10xbf16>, vector<10x512xbf16>, vector<10x512xf32> -> vector<10x512xf32>
    %174 = vector.broadcast %11 : vector<10x1xf32> to vector<10x512xf32>
    %175 = arith.addf %173, %174 : vector<10x512xf32>
    %cst_10 = arith.constant 0.707106769 : f32
    %176 = vector.broadcast %cst_10 : f32 to vector<10x512xf32>
    %177 = arith.mulf %175, %176 : vector<10x512xf32>
    %178 = math.tanh %177 : vector<10x512xf32>
    %179 = arith.mulf %178, %157 : vector<10x512xf32>
    %180 = vector.extract_strided_slice %14 {offsets = [0, 0], sizes = [20, 10], strides = [1, 1]} : vector<20x20xf32> to vector<20x10xf32>
    %181 = arith.truncf %180 : vector<20x10xf32> to vector<20x10xbf16>
    %182 = arith.truncf %179 : vector<10x512xf32> to vector<10x512xbf16>
    %cst_11 = arith.constant dense<0.000000e+00> : vector<20x512xf32>
    %183 = tpu.matmul %181, %182, %cst_11 {dimension_numbers = #tpu.dot_dimension_numbers<[1], [0], [0], [1], [0, 0, 1, 1], [], []>} : vector<20x10xbf16>, vector<10x512xbf16>, vector<20x512xf32> -> vector<20x512xf32>
    %c0_12 = arith.constant 0 : index
    %c0_13 = arith.constant 0 : index
    %c0_14 = arith.constant 0 : index
    %184 = vector.load %arg2[%c0_12, %c0_13, %c0_14] : memref<1x20x32xbf16, #tpu.memory_space<vmem>>, vector<1x20x32xbf16>
    %185 = vector.shape_cast %184 : vector<1x20x32xbf16> to vector<20x32xbf16>
    %186 = arith.truncf %12 : vector<20x20xf32> to vector<20x20xbf16>
    %cst_15 = arith.constant dense<0.000000e+00> : vector<20x32xf32>
    %187 = tpu.matmul %186, %185, %cst_15 {dimension_numbers = #tpu.dot_dimension_numbers<[1], [0], [0], [1], [0, 0, 1, 1], [], []>} : vector<20x20xbf16>, vector<20x32xbf16>, vector<20x32xf32> -> vector<20x32xf32>
    %188 = vector.broadcast %13 : vector<20x1xf32> to vector<20x32xf32>
    %189 = arith.addf %187, %188 : vector<20x32xf32>
    %190 = vector.extract_strided_slice %21 {offsets = [0, 0], sizes = [10, 256], strides = [1, 1]} : vector<10x512xf32> to vector<10x256xf32>
    %191 = vector.extract_strided_slice %189 {offsets = [0, 0], sizes = [10, 16], strides = [1, 1]} : vector<20x32xf32> to vector<10x16xf32>
    %192 = vector.extract_strided_slice %189 {offsets = [10, 0], sizes = [10, 16], strides = [1, 1]} : vector<20x32xf32> to vector<10x16xf32>
    %193 = vector.extract_strided_slice %190 {offsets = [0, 0], sizes = [2, 256], strides = [1, 1]} : vector<10x256xf32> to vector<2x256xf32>
    %194 = vector.extract_strided_slice %191 {offsets = [0, 0], sizes = [2, 16], strides = [1, 1]} : vector<10x16xf32> to vector<2x16xf32>
    %195 = vector.extract_strided_slice %192 {offsets = [0, 0], sizes = [2, 16], strides = [1, 1]} : vector<10x16xf32> to vector<2x16xf32>
    %196 = arith.truncf %194 : vector<2x16xf32> to vector<2x16xbf16>
    %197 = arith.truncf %193 : vector<2x256xf32> to vector<2x256xbf16>
    %cst_16 = arith.constant dense<0.000000e+00> : vector<16x256xf32>
    %198 = tpu.matmul %196, %197, %cst_16 {dimension_numbers = #tpu.dot_dimension_numbers<[0], [0], [1], [1], [0, 1, 1, 1], [], []>} : vector<2x16xbf16>, vector<2x256xbf16>, vector<16x256xf32> -> vector<16x256xf32>
    %cst_17 = arith.constant 0.707106769 : f32
    %199 = vector.broadcast %cst_17 : f32 to vector<16x256xf32>
    %200 = arith.mulf %198, %199 : vector<16x256xf32>
    %cst_18 = arith.constant dense<0xFF800000> : vector<256xf32>
    %201 = vector.multi_reduction <maximumf>, %200, %cst_18 [0] : vector<16x256xf32> to vector<256xf32>
    %202 = vector.shape_cast %201 : vector<256xf32> to vector<1x256xf32>
    %203 = vector.broadcast %202 : vector<1x256xf32> to vector<16x256xf32>
    %204 = arith.subf %200, %203 : vector<16x256xf32>
    %205 = math.exp %204 : vector<16x256xf32>
    %cst_19 = arith.constant dense<0.000000e+00> : vector<256xf32>
    %206 = vector.multi_reduction <add>, %205, %cst_19 [0] : vector<16x256xf32> to vector<256xf32>
    %207 = vector.shape_cast %206 : vector<256xf32> to vector<1x256xf32>
    %208 = tpu.reciprocal %207 {approx = true} : vector<1x256xf32> -> vector<1x256xf32>
    %209 = vector.broadcast %208 : vector<1x256xf32> to vector<16x256xf32>
    %210 = arith.mulf %205, %209 : vector<16x256xf32>
    %211 = vector.extract_strided_slice %14 {offsets = [0, 10], sizes = [20, 2], strides = [1, 1]} : vector<20x20xf32> to vector<20x2xf32>
    %212 = arith.truncf %211 : vector<20x2xf32> to vector<20x2xbf16>
    %213 = arith.truncf %195 : vector<2x16xf32> to vector<2x16xbf16>
    %cst_20 = arith.constant dense<0.000000e+00> : vector<20x16xf32>
    %214 = tpu.matmul %212, %213, %cst_20 {dimension_numbers = #tpu.dot_dimension_numbers<[1], [0], [0], [1], [0, 0, 1, 1], [], []>} : vector<20x2xbf16>, vector<2x16xbf16>, vector<20x16xf32> -> vector<20x16xf32>
    %215 = arith.truncf %214 : vector<20x16xf32> to vector<20x16xbf16>
    %216 = arith.truncf %210 : vector<16x256xf32> to vector<16x256xbf16>
    %cst_21 = arith.constant dense<0.000000e+00> : vector<20x256xf32>
    %217 = tpu.matmul %215, %216, %cst_21 {dimension_numbers = #tpu.dot_dimension_numbers<[1], [0], [0], [1], [0, 0, 1, 1], [], []>} : vector<20x16xbf16>, vector<16x256xbf16>, vector<20x256xf32> -> vector<20x256xf32>
    %218 = vector.extract_strided_slice %190 {offsets = [2, 0], sizes = [2, 256], strides = [1, 1]} : vector<10x256xf32> to vector<2x256xf32>
    %219 = vector.extract_strided_slice %191 {offsets = [2, 0], sizes = [2, 16], strides = [1, 1]} : vector<10x16xf32> to vector<2x16xf32>
    %220 = vector.extract_strided_slice %192 {offsets = [2, 0], sizes = [2, 16], strides = [1, 1]} : vector<10x16xf32> to vector<2x16xf32>
    %221 = arith.truncf %219 : vector<2x16xf32> to vector<2x16xbf16>
    %222 = arith.truncf %218 : vector<2x256xf32> to vector<2x256xbf16>
    %cst_22 = arith.constant dense<0.000000e+00> : vector<16x256xf32>
    %223 = tpu.matmul %221, %222, %cst_22 {dimension_numbers = #tpu.dot_dimension_numbers<[0], [0], [1], [1], [0, 1, 1, 1], [], []>} : vector<2x16xbf16>, vector<2x256xbf16>, vector<16x256xf32> -> vector<16x256xf32>
    %cst_23 = arith.constant 0.707106769 : f32
    %224 = vector.broadcast %cst_23 : f32 to vector<16x256xf32>
    %225 = arith.mulf %223, %224 : vector<16x256xf32>
    %cst_24 = arith.constant dense<0xFF800000> : vector<256xf32>
    %226 = vector.multi_reduction <maximumf>, %225, %cst_24 [0] : vector<16x256xf32> to vector<256xf32>
    %227 = vector.shape_cast %226 : vector<256xf32> to vector<1x256xf32>
    %228 = vector.broadcast %227 : vector<1x256xf32> to vector<16x256xf32>
    %229 = arith.subf %225, %228 : vector<16x256xf32>
    %230 = math.exp %229 : vector<16x256xf32>
    %cst_25 = arith.constant dense<0.000000e+00> : vector<256xf32>
    %231 = vector.multi_reduction <add>, %230, %cst_25 [0] : vector<16x256xf32> to vector<256xf32>
    %232 = vector.shape_cast %231 : vector<256xf32> to vector<1x256xf32>
    %233 = tpu.reciprocal %232 {approx = true} : vector<1x256xf32> -> vector<1x256xf32>
    %234 = vector.broadcast %233 : vector<1x256xf32> to vector<16x256xf32>
    %235 = arith.mulf %230, %234 : vector<16x256xf32>
    %236 = vector.extract_strided_slice %14 {offsets = [0, 12], sizes = [20, 2], strides = [1, 1]} : vector<20x20xf32> to vector<20x2xf32>
    %237 = arith.truncf %236 : vector<20x2xf32> to vector<20x2xbf16>
    %238 = arith.truncf %220 : vector<2x16xf32> to vector<2x16xbf16>
    %cst_26 = arith.constant dense<0.000000e+00> : vector<20x16xf32>
    %239 = tpu.matmul %237, %238, %cst_26 {dimension_numbers = #tpu.dot_dimension_numbers<[1], [0], [0], [1], [0, 0, 1, 1], [], []>} : vector<20x2xbf16>, vector<2x16xbf16>, vector<20x16xf32> -> vector<20x16xf32>
    %240 = arith.truncf %239 : vector<20x16xf32> to vector<20x16xbf16>
    %241 = arith.truncf %235 : vector<16x256xf32> to vector<16x256xbf16>
    %cst_27 = arith.constant dense<0.000000e+00> : vector<20x256xf32>
    %242 = tpu.matmul %240, %241, %cst_27 {dimension_numbers = #tpu.dot_dimension_numbers<[1], [0], [0], [1], [0, 0, 1, 1], [], []>} : vector<20x16xbf16>, vector<16x256xbf16>, vector<20x256xf32> -> vector<20x256xf32>
    %243 = arith.addf %217, %242 : vector<20x256xf32>
    %244 = vector.extract_strided_slice %190 {offsets = [4, 0], sizes = [2, 256], strides = [1, 1]} : vector<10x256xf32> to vector<2x256xf32>
    %245 = vector.extract_strided_slice %191 {offsets = [4, 0], sizes = [2, 16], strides = [1, 1]} : vector<10x16xf32> to vector<2x16xf32>
    %246 = vector.extract_strided_slice %192 {offsets = [4, 0], sizes = [2, 16], strides = [1, 1]} : vector<10x16xf32> to vector<2x16xf32>
    %247 = arith.truncf %245 : vector<2x16xf32> to vector<2x16xbf16>
    %248 = arith.truncf %244 : vector<2x256xf32> to vector<2x256xbf16>
    %cst_28 = arith.constant dense<0.000000e+00> : vector<16x256xf32>
    %249 = tpu.matmul %247, %248, %cst_28 {dimension_numbers = #tpu.dot_dimension_numbers<[0], [0], [1], [1], [0, 1, 1, 1], [], []>} : vector<2x16xbf16>, vector<2x256xbf16>, vector<16x256xf32> -> vector<16x256xf32>
    %cst_29 = arith.constant 0.707106769 : f32
    %250 = vector.broadcast %cst_29 : f32 to vector<16x256xf32>
    %251 = arith.mulf %249, %250 : vector<16x256xf32>
    %cst_30 = arith.constant dense<0xFF800000> : vector<256xf32>
    %252 = vector.multi_reduction <maximumf>, %251, %cst_30 [0] : vector<16x256xf32> to vector<256xf32>
    %253 = vector.shape_cast %252 : vector<256xf32> to vector<1x256xf32>
    %254 = vector.broadcast %253 : vector<1x256xf32> to vector<16x256xf32>
    %255 = arith.subf %251, %254 : vector<16x256xf32>
    %256 = math.exp %255 : vector<16x256xf32>
    %cst_31 = arith.constant dense<0.000000e+00> : vector<256xf32>
    %257 = vector.multi_reduction <add>, %256, %cst_31 [0] : vector<16x256xf32> to vector<256xf32>
    %258 = vector.shape_cast %257 : vector<256xf32> to vector<1x256xf32>
    %259 = tpu.reciprocal %258 {approx = true} : vector<1x256xf32> -> vector<1x256xf32>
    %260 = vector.broadcast %259 : vector<1x256xf32> to vector<16x256xf32>
    %261 = arith.mulf %256, %260 : vector<16x256xf32>
    %262 = vector.extract_strided_slice %14 {offsets = [0, 14], sizes = [20, 2], strides = [1, 1]} : vector<20x20xf32> to vector<20x2xf32>
    %263 = arith.truncf %262 : vector<20x2xf32> to vector<20x2xbf16>
    %264 = arith.truncf %246 : vector<2x16xf32> to vector<2x16xbf16>
    %cst_32 = arith.constant dense<0.000000e+00> : vector<20x16xf32>
    %265 = tpu.matmul %263, %264, %cst_32 {dimension_numbers = #tpu.dot_dimension_numbers<[1], [0], [0], [1], [0, 0, 1, 1], [], []>} : vector<20x2xbf16>, vector<2x16xbf16>, vector<20x16xf32> -> vector<20x16xf32>
    %266 = arith.truncf %265 : vector<20x16xf32> to vector<20x16xbf16>
    %267 = arith.truncf %261 : vector<16x256xf32> to vector<16x256xbf16>
    %cst_33 = arith.constant dense<0.000000e+00> : vector<20x256xf32>
    %268 = tpu.matmul %266, %267, %cst_33 {dimension_numbers = #tpu.dot_dimension_numbers<[1], [0], [0], [1], [0, 0, 1, 1], [], []>} : vector<20x16xbf16>, vector<16x256xbf16>, vector<20x256xf32> -> vector<20x256xf32>
    %269 = arith.addf %243, %268 : vector<20x256xf32>
    %270 = vector.extract_strided_slice %190 {offsets = [6, 0], sizes = [2, 256], strides = [1, 1]} : vector<10x256xf32> to vector<2x256xf32>
    %271 = vector.extract_strided_slice %191 {offsets = [6, 0], sizes = [2, 16], strides = [1, 1]} : vector<10x16xf32> to vector<2x16xf32>
    %272 = vector.extract_strided_slice %192 {offsets = [6, 0], sizes = [2, 16], strides = [1, 1]} : vector<10x16xf32> to vector<2x16xf32>
    %273 = arith.truncf %271 : vector<2x16xf32> to vector<2x16xbf16>
    %274 = arith.truncf %270 : vector<2x256xf32> to vector<2x256xbf16>
    %cst_34 = arith.constant dense<0.000000e+00> : vector<16x256xf32>
    %275 = tpu.matmul %273, %274, %cst_34 {dimension_numbers = #tpu.dot_dimension_numbers<[0], [0], [1], [1], [0, 1, 1, 1], [], []>} : vector<2x16xbf16>, vector<2x256xbf16>, vector<16x256xf32> -> vector<16x256xf32>
    %cst_35 = arith.constant 0.707106769 : f32
    %276 = vector.broadcast %cst_35 : f32 to vector<16x256xf32>
    %277 = arith.mulf %275, %276 : vector<16x256xf32>
    %cst_36 = arith.constant dense<0xFF800000> : vector<256xf32>
    %278 = vector.multi_reduction <maximumf>, %277, %cst_36 [0] : vector<16x256xf32> to vector<256xf32>
    %279 = vector.shape_cast %278 : vector<256xf32> to vector<1x256xf32>
    %280 = vector.broadcast %279 : vector<1x256xf32> to vector<16x256xf32>
    %281 = arith.subf %277, %280 : vector<16x256xf32>
    %282 = math.exp %281 : vector<16x256xf32>
    %cst_37 = arith.constant dense<0.000000e+00> : vector<256xf32>
    %283 = vector.multi_reduction <add>, %282, %cst_37 [0] : vector<16x256xf32> to vector<256xf32>
    %284 = vector.shape_cast %283 : vector<256xf32> to vector<1x256xf32>
    %285 = tpu.reciprocal %284 {approx = true} : vector<1x256xf32> -> vector<1x256xf32>
    %286 = vector.broadcast %285 : vector<1x256xf32> to vector<16x256xf32>
    %287 = arith.mulf %282, %286 : vector<16x256xf32>
    %288 = vector.extract_strided_slice %14 {offsets = [0, 16], sizes = [20, 2], strides = [1, 1]} : vector<20x20xf32> to vector<20x2xf32>
    %289 = arith.truncf %288 : vector<20x2xf32> to vector<20x2xbf16>
    %290 = arith.truncf %272 : vector<2x16xf32> to vector<2x16xbf16>
    %cst_38 = arith.constant dense<0.000000e+00> : vector<20x16xf32>
    %291 = tpu.matmul %289, %290, %cst_38 {dimension_numbers = #tpu.dot_dimension_numbers<[1], [0], [0], [1], [0, 0, 1, 1], [], []>} : vector<20x2xbf16>, vector<2x16xbf16>, vector<20x16xf32> -> vector<20x16xf32>
    %292 = arith.truncf %291 : vector<20x16xf32> to vector<20x16xbf16>
    %293 = arith.truncf %287 : vector<16x256xf32> to vector<16x256xbf16>
    %cst_39 = arith.constant dense<0.000000e+00> : vector<20x256xf32>
    %294 = tpu.matmul %292, %293, %cst_39 {dimension_numbers = #tpu.dot_dimension_numbers<[1], [0], [0], [1], [0, 0, 1, 1], [], []>} : vector<20x16xbf16>, vector<16x256xbf16>, vector<20x256xf32> -> vector<20x256xf32>
    %295 = arith.addf %269, %294 : vector<20x256xf32>
    %296 = vector.extract_strided_slice %190 {offsets = [8, 0], sizes = [2, 256], strides = [1, 1]} : vector<10x256xf32> to vector<2x256xf32>
    %297 = vector.extract_strided_slice %191 {offsets = [8, 0], sizes = [2, 16], strides = [1, 1]} : vector<10x16xf32> to vector<2x16xf32>
    %298 = vector.extract_strided_slice %192 {offsets = [8, 0], sizes = [2, 16], strides = [1, 1]} : vector<10x16xf32> to vector<2x16xf32>
    %299 = arith.truncf %297 : vector<2x16xf32> to vector<2x16xbf16>
    %300 = arith.truncf %296 : vector<2x256xf32> to vector<2x256xbf16>
    %cst_40 = arith.constant dense<0.000000e+00> : vector<16x256xf32>
    %301 = tpu.matmul %299, %300, %cst_40 {dimension_numbers = #tpu.dot_dimension_numbers<[0], [0], [1], [1], [0, 1, 1, 1], [], []>} : vector<2x16xbf16>, vector<2x256xbf16>, vector<16x256xf32> -> vector<16x256xf32>
    %cst_41 = arith.constant 0.707106769 : f32
    %302 = vector.broadcast %cst_41 : f32 to vector<16x256xf32>
    %303 = arith.mulf %301, %302 : vector<16x256xf32>
    %cst_42 = arith.constant dense<0xFF800000> : vector<256xf32>
    %304 = vector.multi_reduction <maximumf>, %303, %cst_42 [0] : vector<16x256xf32> to vector<256xf32>
    %305 = vector.shape_cast %304 : vector<256xf32> to vector<1x256xf32>
    %306 = vector.broadcast %305 : vector<1x256xf32> to vector<16x256xf32>
    %307 = arith.subf %303, %306 : vector<16x256xf32>
    %308 = math.exp %307 : vector<16x256xf32>
    %cst_43 = arith.constant dense<0.000000e+00> : vector<256xf32>
    %309 = vector.multi_reduction <add>, %308, %cst_43 [0] : vector<16x256xf32> to vector<256xf32>
    %310 = vector.shape_cast %309 : vector<256xf32> to vector<1x256xf32>
    %311 = tpu.reciprocal %310 {approx = true} : vector<1x256xf32> -> vector<1x256xf32>
    %312 = vector.broadcast %311 : vector<1x256xf32> to vector<16x256xf32>
    %313 = arith.mulf %308, %312 : vector<16x256xf32>
    %314 = vector.extract_strided_slice %14 {offsets = [0, 18], sizes = [20, 2], strides = [1, 1]} : vector<20x20xf32> to vector<20x2xf32>
    %315 = arith.truncf %314 : vector<20x2xf32> to vector<20x2xbf16>
    %316 = arith.truncf %298 : vector<2x16xf32> to vector<2x16xbf16>
    %cst_44 = arith.constant dense<0.000000e+00> : vector<20x16xf32>
    %317 = tpu.matmul %315, %316, %cst_44 {dimension_numbers = #tpu.dot_dimension_numbers<[1], [0], [0], [1], [0, 0, 1, 1], [], []>} : vector<20x2xbf16>, vector<2x16xbf16>, vector<20x16xf32> -> vector<20x16xf32>
    %318 = arith.truncf %317 : vector<20x16xf32> to vector<20x16xbf16>
    %319 = arith.truncf %313 : vector<16x256xf32> to vector<16x256xbf16>
    %cst_45 = arith.constant dense<0.000000e+00> : vector<20x256xf32>
    %320 = tpu.matmul %318, %319, %cst_45 {dimension_numbers = #tpu.dot_dimension_numbers<[1], [0], [0], [1], [0, 0, 1, 1], [], []>} : vector<20x16xbf16>, vector<16x256xbf16>, vector<20x256xf32> -> vector<20x256xf32>
    %321 = arith.addf %295, %320 : vector<20x256xf32>
    %322 = vector.extract_strided_slice %183 {offsets = [0, 0], sizes = [20, 256], strides = [1, 1]} : vector<20x512xf32> to vector<20x256xf32>
    %323 = arith.addf %322, %321 : vector<20x256xf32>
    %324 = vector.broadcast %15 : vector<20x1xf32> to vector<20x256xf32>
    %325 = arith.addf %323, %324 : vector<20x256xf32>
    %c0_46 = arith.constant 0 : index
    %c0_47 = arith.constant 0 : index
    %c0_48 = arith.constant 0 : index
    %326 = vector.load %arg5[%c0_46, %c0_47, %c0_48] : memref<1x20x512xf32, #tpu.memory_space<vmem>>, vector<1x20x256xf32>
    %327 = vector.shape_cast %326 : vector<1x20x256xf32> to vector<20x256xf32>
    %328 = vector.shape_cast %325 : vector<20x256xf32> to vector<1x20x256xf32>
    tpu.vector_store %arg5[%c0_46, %c0_47, %c0_48], %328 {strides = array<i32>} : memref<1x20x512xf32, #tpu.memory_space<vmem>>, vector<1x20x256xf32>,
    %329 = vector.extract_strided_slice %21 {offsets = [0, 256], sizes = [10, 256], strides = [1, 1]} : vector<10x512xf32> to vector<10x256xf32>
    %330 = vector.extract_strided_slice %189 {offsets = [0, 16], sizes = [10, 16], strides = [1, 1]} : vector<20x32xf32> to vector<10x16xf32>
    %331 = vector.extract_strided_slice %189 {offsets = [10, 16], sizes = [10, 16], strides = [1, 1]} : vector<20x32xf32> to vector<10x16xf32>
    %332 = vector.extract_strided_slice %329 {offsets = [0, 0], sizes = [2, 256], strides = [1, 1]} : vector<10x256xf32> to vector<2x256xf32>
    %333 = vector.extract_strided_slice %330 {offsets = [0, 0], sizes = [2, 16], strides = [1, 1]} : vector<10x16xf32> to vector<2x16xf32>
    %334 = vector.extract_strided_slice %331 {offsets = [0, 0], sizes = [2, 16], strides = [1, 1]} : vector<10x16xf32> to vector<2x16xf32>
    %335 = arith.truncf %333 : vector<2x16xf32> to vector<2x16xbf16>
    %336 = arith.truncf %332 : vector<2x256xf32> to vector<2x256xbf16>
    %cst_49 = arith.constant dense<0.000000e+00> : vector<16x256xf32>
    %337 = tpu.matmul %335, %336, %cst_49 {dimension_numbers = #tpu.dot_dimension_numbers<[0], [0], [1], [1], [0, 1, 1, 1], [], []>} : vector<2x16xbf16>, vector<2x256xbf16>, vector<16x256xf32> -> vector<16x256xf32>
    %cst_50 = arith.constant 0.707106769 : f32
    %338 = vector.broadcast %cst_50 : f32 to vector<16x256xf32>
    %339 = arith.mulf %337, %338 : vector<16x256xf32>
    %cst_51 = arith.constant dense<0xFF800000> : vector<256xf32>
    %340 = vector.multi_reduction <maximumf>, %339, %cst_51 [0] : vector<16x256xf32> to vector<256xf32>
    %341 = vector.shape_cast %340 : vector<256xf32> to vector<1x256xf32>
    %342 = vector.broadcast %341 : vector<1x256xf32> to vector<16x256xf32>
    %343 = arith.subf %339, %342 : vector<16x256xf32>
    %344 = math.exp %343 : vector<16x256xf32>
    %cst_52 = arith.constant dense<0.000000e+00> : vector<256xf32>
    %345 = vector.multi_reduction <add>, %344, %cst_52 [0] : vector<16x256xf32> to vector<256xf32>
    %346 = vector.shape_cast %345 : vector<256xf32> to vector<1x256xf32>
    %347 = tpu.reciprocal %346 {approx = true} : vector<1x256xf32> -> vector<1x256xf32>
    %348 = vector.broadcast %347 : vector<1x256xf32> to vector<16x256xf32>
    %349 = arith.mulf %344, %348 : vector<16x256xf32>
    %350 = vector.extract_strided_slice %14 {offsets = [0, 10], sizes = [20, 2], strides = [1, 1]} : vector<20x20xf32> to vector<20x2xf32>
    %351 = arith.truncf %350 : vector<20x2xf32> to vector<20x2xbf16>
    %352 = arith.truncf %334 : vector<2x16xf32> to vector<2x16xbf16>
    %cst_53 = arith.constant dense<0.000000e+00> : vector<20x16xf32>
    %353 = tpu.matmul %351, %352, %cst_53 {dimension_numbers = #tpu.dot_dimension_numbers<[1], [0], [0], [1], [0, 0, 1, 1], [], []>} : vector<20x2xbf16>, vector<2x16xbf16>, vector<20x16xf32> -> vector<20x16xf32>
    %354 = arith.truncf %353 : vector<20x16xf32> to vector<20x16xbf16>
    %355 = arith.truncf %349 : vector<16x256xf32> to vector<16x256xbf16>
    %cst_54 = arith.constant dense<0.000000e+00> : vector<20x256xf32>
    %356 = tpu.matmul %354, %355, %cst_54 {dimension_numbers = #tpu.dot_dimension_numbers<[1], [0], [0], [1], [0, 0, 1, 1], [], []>} : vector<20x16xbf16>, vector<16x256xbf16>, vector<20x256xf32> -> vector<20x256xf32>
    %357 = vector.extract_strided_slice %329 {offsets = [2, 0], sizes = [2, 256], strides = [1, 1]} : vector<10x256xf32> to vector<2x256xf32>
    %358 = vector.extract_strided_slice %330 {offsets = [2, 0], sizes = [2, 16], strides = [1, 1]} : vector<10x16xf32> to vector<2x16xf32>
    %359 = vector.extract_strided_slice %331 {offsets = [2, 0], sizes = [2, 16], strides = [1, 1]} : vector<10x16xf32> to vector<2x16xf32>
    %360 = arith.truncf %358 : vector<2x16xf32> to vector<2x16xbf16>
    %361 = arith.truncf %357 : vector<2x256xf32> to vector<2x256xbf16>
    %cst_55 = arith.constant dense<0.000000e+00> : vector<16x256xf32>
    %362 = tpu.matmul %360, %361, %cst_55 {dimension_numbers = #tpu.dot_dimension_numbers<[0], [0], [1], [1], [0, 1, 1, 1], [], []>} : vector<2x16xbf16>, vector<2x256xbf16>, vector<16x256xf32> -> vector<16x256xf32>
    %cst_56 = arith.constant 0.707106769 : f32
    %363 = vector.broadcast %cst_56 : f32 to vector<16x256xf32>
    %364 = arith.mulf %362, %363 : vector<16x256xf32>
    %cst_57 = arith.constant dense<0xFF800000> : vector<256xf32>
    %365 = vector.multi_reduction <maximumf>, %364, %cst_57 [0] : vector<16x256xf32> to vector<256xf32>
    %366 = vector.shape_cast %365 : vector<256xf32> to vector<1x256xf32>
    %367 = vector.broadcast %366 : vector<1x256xf32> to vector<16x256xf32>
    %368 = arith.subf %364, %367 : vector<16x256xf32>
    %369 = math.exp %368 : vector<16x256xf32>
    %cst_58 = arith.constant dense<0.000000e+00> : vector<256xf32>
    %370 = vector.multi_reduction <add>, %369, %cst_58 [0] : vector<16x256xf32> to vector<256xf32>
    %371 = vector.shape_cast %370 : vector<256xf32> to vector<1x256xf32>
    %372 = tpu.reciprocal %371 {approx = true} : vector<1x256xf32> -> vector<1x256xf32>
    %373 = vector.broadcast %372 : vector<1x256xf32> to vector<16x256xf32>
    %374 = arith.mulf %369, %373 : vector<16x256xf32>
    %375 = vector.extract_strided_slice %14 {offsets = [0, 12], sizes = [20, 2], strides = [1, 1]} : vector<20x20xf32> to vector<20x2xf32>
    %376 = arith.truncf %375 : vector<20x2xf32> to vector<20x2xbf16>
    %377 = arith.truncf %359 : vector<2x16xf32> to vector<2x16xbf16>
    %cst_59 = arith.constant dense<0.000000e+00> : vector<20x16xf32>
    %378 = tpu.matmul %376, %377, %cst_59 {dimension_numbers = #tpu.dot_dimension_numbers<[1], [0], [0], [1], [0, 0, 1, 1], [], []>} : vector<20x2xbf16>, vector<2x16xbf16>, vector<20x16xf32> -> vector<20x16xf32>
    %379 = arith.truncf %378 : vector<20x16xf32> to vector<20x16xbf16>
    %380 = arith.truncf %374 : vector<16x256xf32> to vector<16x256xbf16>
    %cst_60 = arith.constant dense<0.000000e+00> : vector<20x256xf32>
    %381 = tpu.matmul %379, %380, %cst_60 {dimension_numbers = #tpu.dot_dimension_numbers<[1], [0], [0], [1], [0, 0, 1, 1], [], []>} : vector<20x16xbf16>, vector<16x256xbf16>, vector<20x256xf32> -> vector<20x256xf32>
    %382 = arith.addf %356, %381 : vector<20x256xf32>
    %383 = vector.extract_strided_slice %329 {offsets = [4, 0], sizes = [2, 256], strides = [1, 1]} : vector<10x256xf32> to vector<2x256xf32>
    %384 = vector.extract_strided_slice %330 {offsets = [4, 0], sizes = [2, 16], strides = [1, 1]} : vector<10x16xf32> to vector<2x16xf32>
    %385 = vector.extract_strided_slice %331 {offsets = [4, 0], sizes = [2, 16], strides = [1, 1]} : vector<10x16xf32> to vector<2x16xf32>
    %386 = arith.truncf %384 : vector<2x16xf32> to vector<2x16xbf16>
    %387 = arith.truncf %383 : vector<2x256xf32> to vector<2x256xbf16>
    %cst_61 = arith.constant dense<0.000000e+00> : vector<16x256xf32>
    %388 = tpu.matmul %386, %387, %cst_61 {dimension_numbers = #tpu.dot_dimension_numbers<[0], [0], [1], [1], [0, 1, 1, 1], [], []>} : vector<2x16xbf16>, vector<2x256xbf16>, vector<16x256xf32> -> vector<16x256xf32>
    %cst_62 = arith.constant 0.707106769 : f32
    %389 = vector.broadcast %cst_62 : f32 to vector<16x256xf32>
    %390 = arith.mulf %388, %389 : vector<16x256xf32>
    %cst_63 = arith.constant dense<0xFF800000> : vector<256xf32>
    %391 = vector.multi_reduction <maximumf>, %390, %cst_63 [0] : vector<16x256xf32> to vector<256xf32>
    %392 = vector.shape_cast %391 : vector<256xf32> to vector<1x256xf32>
    %393 = vector.broadcast %392 : vector<1x256xf32> to vector<16x256xf32>
    %394 = arith.subf %390, %393 : vector<16x256xf32>
    %395 = math.exp %394 : vector<16x256xf32>
    %cst_64 = arith.constant dense<0.000000e+00> : vector<256xf32>
    %396 = vector.multi_reduction <add>, %395, %cst_64 [0] : vector<16x256xf32> to vector<256xf32>
    %397 = vector.shape_cast %396 : vector<256xf32> to vector<1x256xf32>
    %398 = tpu.reciprocal %397 {approx = true} : vector<1x256xf32> -> vector<1x256xf32>
    %399 = vector.broadcast %398 : vector<1x256xf32> to vector<16x256xf32>
    %400 = arith.mulf %395, %399 : vector<16x256xf32>
    %401 = vector.extract_strided_slice %14 {offsets = [0, 14], sizes = [20, 2], strides = [1, 1]} : vector<20x20xf32> to vector<20x2xf32>
    %402 = arith.truncf %401 : vector<20x2xf32> to vector<20x2xbf16>
    %403 = arith.truncf %385 : vector<2x16xf32> to vector<2x16xbf16>
    %cst_65 = arith.constant dense<0.000000e+00> : vector<20x16xf32>
    %404 = tpu.matmul %402, %403, %cst_65 {dimension_numbers = #tpu.dot_dimension_numbers<[1], [0], [0], [1], [0, 0, 1, 1], [], []>} : vector<20x2xbf16>, vector<2x16xbf16>, vector<20x16xf32> -> vector<20x16xf32>
    %405 = arith.truncf %404 : vector<20x16xf32> to vector<20x16xbf16>
    %406 = arith.truncf %400 : vector<16x256xf32> to vector<16x256xbf16>
    %cst_66 = arith.constant dense<0.000000e+00> : vector<20x256xf32>
    %407 = tpu.matmul %405, %406, %cst_66 {dimension_numbers = #tpu.dot_dimension_numbers<[1], [0], [0], [1], [0, 0, 1, 1], [], []>} : vector<20x16xbf16>, vector<16x256xbf16>, vector<20x256xf32> -> vector<20x256xf32>
    %408 = arith.addf %382, %407 : vector<20x256xf32>
    %409 = vector.extract_strided_slice %329 {offsets = [6, 0], sizes = [2, 256], strides = [1, 1]} : vector<10x256xf32> to vector<2x256xf32>
    %410 = vector.extract_strided_slice %330 {offsets = [6, 0], sizes = [2, 16], strides = [1, 1]} : vector<10x16xf32> to vector<2x16xf32>
    %411 = vector.extract_strided_slice %331 {offsets = [6, 0], sizes = [2, 16], strides = [1, 1]} : vector<10x16xf32> to vector<2x16xf32>
    %412 = arith.truncf %410 : vector<2x16xf32> to vector<2x16xbf16>
    %413 = arith.truncf %409 : vector<2x256xf32> to vector<2x256xbf16>
    %cst_67 = arith.constant dense<0.000000e+00> : vector<16x256xf32>
    %414 = tpu.matmul %412, %413, %cst_67 {dimension_numbers = #tpu.dot_dimension_numbers<[0], [0], [1], [1], [0, 1, 1, 1], [], []>} : vector<2x16xbf16>, vector<2x256xbf16>, vector<16x256xf32> -> vector<16x256xf32>
    %cst_68 = arith.constant 0.707106769 : f32
    %415 = vector.broadcast %cst_68 : f32 to vector<16x256xf32>
    %416 = arith.mulf %414, %415 : vector<16x256xf32>
    %cst_69 = arith.constant dense<0xFF800000> : vector<256xf32>
    %417 = vector.multi_reduction <maximumf>, %416, %cst_69 [0] : vector<16x256xf32> to vector<256xf32>
    %418 = vector.shape_cast %417 : vector<256xf32> to vector<1x256xf32>
    %419 = vector.broadcast %418 : vector<1x256xf32> to vector<16x256xf32>
    %420 = arith.subf %416, %419 : vector<16x256xf32>
    %421 = math.exp %420 : vector<16x256xf32>
    %cst_70 = arith.constant dense<0.000000e+00> : vector<256xf32>
    %422 = vector.multi_reduction <add>, %421, %cst_70 [0] : vector<16x256xf32> to vector<256xf32>
    %423 = vector.shape_cast %422 : vector<256xf32> to vector<1x256xf32>
    %424 = tpu.reciprocal %423 {approx = true} : vector<1x256xf32> -> vector<1x256xf32>
    %425 = vector.broadcast %424 : vector<1x256xf32> to vector<16x256xf32>
    %426 = arith.mulf %421, %425 : vector<16x256xf32>
    %427 = vector.extract_strided_slice %14 {offsets = [0, 16], sizes = [20, 2], strides = [1, 1]} : vector<20x20xf32> to vector<20x2xf32>
    %428 = arith.truncf %427 : vector<20x2xf32> to vector<20x2xbf16>
    %429 = arith.truncf %411 : vector<2x16xf32> to vector<2x16xbf16>
    %cst_71 = arith.constant dense<0.000000e+00> : vector<20x16xf32>
    %430 = tpu.matmul %428, %429, %cst_71 {dimension_numbers = #tpu.dot_dimension_numbers<[1], [0], [0], [1], [0, 0, 1, 1], [], []>} : vector<20x2xbf16>, vector<2x16xbf16>, vector<20x16xf32> -> vector<20x16xf32>
    %431 = arith.truncf %430 : vector<20x16xf32> to vector<20x16xbf16>
    %432 = arith.truncf %426 : vector<16x256xf32> to vector<16x256xbf16>
    %cst_72 = arith.constant dense<0.000000e+00> : vector<20x256xf32>
    %433 = tpu.matmul %431, %432, %cst_72 {dimension_numbers = #tpu.dot_dimension_numbers<[1], [0], [0], [1], [0, 0, 1, 1], [], []>} : vector<20x16xbf16>, vector<16x256xbf16>, vector<20x256xf32> -> vector<20x256xf32>
    %434 = arith.addf %408, %433 : vector<20x256xf32>
    %435 = vector.extract_strided_slice %329 {offsets = [8, 0], sizes = [2, 256], strides = [1, 1]} : vector<10x256xf32> to vector<2x256xf32>
    %436 = vector.extract_strided_slice %330 {offsets = [8, 0], sizes = [2, 16], strides = [1, 1]} : vector<10x16xf32> to vector<2x16xf32>
    %437 = vector.extract_strided_slice %331 {offsets = [8, 0], sizes = [2, 16], strides = [1, 1]} : vector<10x16xf32> to vector<2x16xf32>
    %438 = arith.truncf %436 : vector<2x16xf32> to vector<2x16xbf16>
    %439 = arith.truncf %435 : vector<2x256xf32> to vector<2x256xbf16>
    %cst_73 = arith.constant dense<0.000000e+00> : vector<16x256xf32>
    %440 = tpu.matmul %438, %439, %cst_73 {dimension_numbers = #tpu.dot_dimension_numbers<[0], [0], [1], [1], [0, 1, 1, 1], [], []>} : vector<2x16xbf16>, vector<2x256xbf16>, vector<16x256xf32> -> vector<16x256xf32>
    %cst_74 = arith.constant 0.707106769 : f32
    %441 = vector.broadcast %cst_74 : f32 to vector<16x256xf32>
    %442 = arith.mulf %440, %441 : vector<16x256xf32>
    %cst_75 = arith.constant dense<0xFF800000> : vector<256xf32>
    %443 = vector.multi_reduction <maximumf>, %442, %cst_75 [0] : vector<16x256xf32> to vector<256xf32>
    %444 = vector.shape_cast %443 : vector<256xf32> to vector<1x256xf32>
    %445 = vector.broadcast %444 : vector<1x256xf32> to vector<16x256xf32>
    %446 = arith.subf %442, %445 : vector<16x256xf32>
    %447 = math.exp %446 : vector<16x256xf32>
    %cst_76 = arith.constant dense<0.000000e+00> : vector<256xf32>
    %448 = vector.multi_reduction <add>, %447, %cst_76 [0] : vector<16x256xf32> to vector<256xf32>
    %449 = vector.shape_cast %448 : vector<256xf32> to vector<1x256xf32>
    %450 = tpu.reciprocal %449 {approx = true} : vector<1x256xf32> -> vector<1x256xf32>
    %451 = vector.broadcast %450 : vector<1x256xf32> to vector<16x256xf32>
    %452 = arith.mulf %447, %451 : vector<16x256xf32>
    %453 = vector.extract_strided_slice %14 {offsets = [0, 18], sizes = [20, 2], strides = [1, 1]} : vector<20x20xf32> to vector<20x2xf32>
    %454 = arith.truncf %453 : vector<20x2xf32> to vector<20x2xbf16>
    %455 = arith.truncf %437 : vector<2x16xf32> to vector<2x16xbf16>
    %cst_77 = arith.constant dense<0.000000e+00> : vector<20x16xf32>
    %456 = tpu.matmul %454, %455, %cst_77 {dimension_numbers = #tpu.dot_dimension_numbers<[1], [0], [0], [1], [0, 0, 1, 1], [], []>} : vector<20x2xbf16>, vector<2x16xbf16>, vector<20x16xf32> -> vector<20x16xf32>
    %457 = arith.truncf %456 : vector<20x16xf32> to vector<20x16xbf16>
    %458 = arith.truncf %452 : vector<16x256xf32> to vector<16x256xbf16>
    %cst_78 = arith.constant dense<0.000000e+00> : vector<20x256xf32>
    %459 = tpu.matmul %457, %458, %cst_78 {dimension_numbers = #tpu.dot_dimension_numbers<[1], [0], [0], [1], [0, 0, 1, 1], [], []>} : vector<20x16xbf16>, vector<16x256xbf16>, vector<20x256xf32> -> vector<20x256xf32>
    %460 = arith.addf %434, %459 : vector<20x256xf32>
    %461 = vector.extract_strided_slice %183 {offsets = [0, 256], sizes = [20, 256], strides = [1, 1]} : vector<20x512xf32> to vector<20x256xf32>
    %462 = arith.addf %461, %460 : vector<20x256xf32>
    %463 = vector.broadcast %15 : vector<20x1xf32> to vector<20x256xf32>
    %464 = arith.addf %462, %463 : vector<20x256xf32>
    %c0_79 = arith.constant 0 : index
    %c0_80 = arith.constant 0 : index
    %c256 = arith.constant 256 : index
    %465 = vector.load %arg5[%c0_79, %c0_80, %c256] : memref<1x20x512xf32, #tpu.memory_space<vmem>>, vector<1x20x256xf32>
    %466 = vector.shape_cast %465 : vector<1x20x256xf32> to vector<20x256xf32>
    %467 = vector.shape_cast %464 : vector<20x256xf32> to vector<1x20x256xf32>
    tpu.vector_store %arg5[%c0_79, %c0_80, %c256], %467 {strides = array<i32>} : memref<1x20x512xf32, #tpu.memory_space<vmem>>, vector<1x20x256xf32>,
    return
  }
  func.func @transform_0(%arg0: i32) -> (i32, i32, i32) {
    %c0_i32 = arith.constant 0 : i32
    %c0_i32_0 = arith.constant 0 : i32
    %c0_i32_1 = arith.constant 0 : i32
    return %arg0, %c0_i32, %c0_i32_0 : i32, i32, i32
  }
  func.func @transform_1(%arg0: i32) -> (i32, i32, i32) {
    %c0_i32 = arith.constant 0 : i32
    %c0_i32_0 = arith.constant 0 : i32
    %c0_i32_1 = arith.constant 0 : i32
    return %arg0, %c0_i32, %c0_i32_0 : i32, i32, i32
  }
  func.func @transform_2(%arg0: i32) -> (i32, i32) {
    %c0_i32 = arith.constant 0 : i32
    %c0_i32_0 = arith.constant 0 : i32
    %c0_i32_1 = arith.constant 0 : i32
    return %c0_i32, %c0_i32_0 : i32, i32
  }
  func.func @transform_3(%arg0: i32) -> (i32, i32) {
    %c0_i32 = arith.constant 0 : i32
    %c0_i32_0 = arith.constant 0 : i32
    %c0_i32_1 = arith.constant 0 : i32
    return %c0_i32, %c0_i32_0 : i32, i32
  }
  func.func @transform_4(%arg0: i32) -> (i32, i32, i32) {
    %c0_i32 = arith.constant 0 : i32
    %c0_i32_0 = arith.constant 0 : i32
    %c0_i32_1 = arith.constant 0 : i32
    return %arg0, %c0_i32, %c0_i32_0 : i32, i32, i32
  }
}

</mosaic_0001>

<llo_original>
// kernel: tpu_custom_call.1
$region0: #{tpu_custom_call.1}
  #allocation0 [shape = 'u32[]', space=smem, size = 0x4, offset = 0x4, fixed_abs, tag = 'smem constant byte address 0x4 - core index']
  #allocation1 [shape = 'u32[144,128]{1,0:T(1,128)}', space=vmem, size = 0x12000, scoped, tag = 'internal scratch']
  %s0 = inlined_call_operand.vmem [shape: bf16[1,20,512], index: 0, kind: input, shape index: {}]
  %s1 = inlined_call_operand.vmem [shape: bf16[1,20,32], index: 1, kind: input, shape index: {}]
  %s2 = inlined_call_operand.vmem [shape: f32[152,32], index: 2, kind: input, shape index: {}]
  %s3 = inlined_call_operand.vmem [shape: f32[8,512], index: 3, kind: input, shape index: {}]
  %s4 = inlined_call_operand.vmem [shape: f32[1,20,512], index: 4, kind: output, shape index: {}]
  %s5 = sld [smem:[#allocation0]]
  $region26: #{tpu_custom_call.1} parent=0
    _
  %s7 = ssub.s32 1, %s5
  %s8 = scalar_select 0, %s7, %s5
  // Predicated region
  $region2: #{tpu_custom_call.1} parent=0 // pred_check
    _
  $region3: #{tpu_custom_call.1} parent=0 // pred_check_branch
    %10 = sbr.rel (0) target = $region5
  $region4: #{tpu_custom_call.1} parent=0 // pred_region
    _
  $region5: #{tpu_custom_call.1} parent=0 // pred_fallthru
    _
  // Predicated region
  $region6: #{tpu_custom_call.1} parent=0 // pred_check
    _
  $region7: #{tpu_custom_call.1} parent=0 // pred_check_branch
    %12 = sbr.rel (0) target = $region9
  $region8: #{tpu_custom_call.1} parent=0 // pred_region
    _
  $region9: #{tpu_custom_call.1} parent=0 // pred_fallthru
    _
  // Predicated region
  $region10: #{tpu_custom_call.1} parent=0 // pred_check
    _
  $region11: #{tpu_custom_call.1} parent=0 // pred_check_branch
    %14 = sbr.rel (0) target = $region13
  $region12: #{tpu_custom_call.1} parent=0 // pred_region
    _
  $region13: #{tpu_custom_call.1} parent=0 // pred_fallthru
    _
  // Predicated region
  $region14: #{tpu_custom_call.1} parent=0 // pred_check
    _
  $region15: #{tpu_custom_call.1} parent=0 // pred_check_branch
    %16 = sbr.rel (0) target = $region17
  $region16: #{tpu_custom_call.1} parent=0 // pred_region
    _
  $region17: #{tpu_custom_call.1} parent=0 // pred_fallthru
    _
  %v18 = vld [vmem:[%s0] sm:$0xff]
  %v19 = vld [vmem:[%s0 + $0x8] sm:$0xff]
  %v20 = vld [vmem:[%s0 + $0x10] sm:$0xff]
  %v21 = vld [vmem:[%s0 + $0x18] sm:$0xff]
  %v22 = vld [vmem:[%s0 + $0x20] sm:$0x33]
  %v23 = vld [vmem:[%s0 + $0x28] sm:$0x33]
  %v24 = vld [vmem:[%s2] sm:$0xff]
  %v25 = vld [vmem:[%s2 + $0x8] sm:$0xff]
  %v26 = vld [vmem:[%s2 + $0x10] sm:$0xff]
  %v27 = vld [vmem:[%s2 + $0x18] sm:$0xff]
  %v28 = vld [vmem:[%s2 + $0x20] sm:$0xff]
  %v29 = vld [vmem:[%s2 + $0x28] sm:$0xff]
  %v30 = vld [vmem:[%s2 + $0x30] sm:$0xff]
  %v31 = vld [vmem:[%s2 + $0x38] sm:$0xff]
  %v32 = vld [vmem:[%s2 + $0x40] sm:$0xff]
  %v33 = vld [vmem:[%s2 + $0x48] sm:$0xff]
  %v34 = vld [vmem:[%s2 + $0x50] sm:$0xff]
  %v35 = vld [vmem:[%s2 + $0x58] sm:$0xff]
  %v36 = vld [vmem:[%s2 + $0x60] sm:$0xff]
  %v37 = vld [vmem:[%s2 + $0x68] sm:$0xff]
  %v38 = vld [vmem:[%s2 + $0x70] sm:$0xff]
  %v39 = vld [vmem:[%s2 + $0x78] sm:$0xff]
  %v40 = vld [vmem:[%s2 + $0x80] sm:$0xff]
  %v41 = vld [vmem:[%s2 + $0x88] sm:$0xff]
  %v42 = vld [vmem:[%s2 + $0x90] sm:$0xff]
  %v43 = vld [vmem:[%s3] sm:$0xff]
  %v44 = vld [vmem:[%s3 + $0x8] sm:$0xff]
  %v45 = vld [vmem:[%s3 + $0x10] sm:$0xff]
  %v46 = vld [vmem:[%s3 + $0x18] sm:$0xff]
  %v47 = vpack.c.bf16 %v25, %v24
  %v48 = vpack.c.bf16 %v27, %v26
  %v49 = vpack.c.bf16 %v28, %v28
  %51 = vset.pattern.permute.xlu0 20
  %52 = vperm.xlu0 %51, %v24
  %v53 = vpop.permute.xlu0 %52
  %56 = vset.pattern.permute.xlu0 20
  %57 = vperm.xlu0 %56, %v25
  %v58 = vpop.permute.xlu0 %57
  %61 = vset.pattern.permute.xlu0 20
  %62 = vperm.xlu0 %61, %v26
  %v63 = vpop.permute.xlu0 %62
  %66 = vset.pattern.permute.xlu0 20
  %67 = vperm.xlu0 %66, %v27
  %v68 = vpop.permute.xlu0 %67
  %71 = vset.pattern.permute.xlu0 20
  %72 = vperm.xlu0 %71, %v28
  %v73 = vpop.permute.xlu0 %72
  %v81 = vunpack.c.l.b16 %v18
  %v82 = vunpack.c.h.b16 %v18
  %v83 = vunpack.c.l.b16 %v19
  %v84 = vunpack.c.h.b16 %v19
  %v85 = vunpack.c.l.b16 %v20
  %v86 = vunpack.c.h.b16 %v20
  %v87 = vunpack.c.l.b16 %v21
  %v88 = vunpack.c.h.b16 %v21
  %v89 = vunpack.c.l.b16 %v22
  %v90 = vunpack.c.h.b16 %v22
  %v91 = vunpack.c.l.b16 %v23
  %v92 = vunpack.c.h.b16 %v23
  %v93 = vpack.c.b16 %v85, %v81
  %v94 = vpack.c.b16 %v86, %v82
  %v95 = vpack.c.b16 %v87, %v83
  %v96 = vpack.c.b16 %v88, %v84
  %v97 = vpack.c.b16 %v89, %v89
  %v98 = vpack.c.b16 %v90, %v90
  %v99 = vpack.c.b16 %v91, %v91
  %v100 = vpack.c.b16 %v92, %v92
  %vm105 = vcmask 162816
  %v107 = vsel %vm105, %v47, 0
  %v110 = vsel %vm105, %v48, 0
  %v113 = vsel %vm105, %v49, 0
  %vm115 = vcmask 1041408
  %v117 = vsel %vm115, %v97, 0
  %v120 = vsel %vm115, %v98, 0
  %v123 = vsel %vm115, %v99, 0
  %v126 = vsel %vm115, %v100, 0
  %128 = vmatprep.subr.bf16.mxu0 %v94
  %129 = vmatpush1.bf16.msra.mxu0 %v93
  %130 = vmatprep.subr.bf16.mxu0 %v120
  %131 = vmatpush1.bf16.msra.mxu0 %v117
  %132 = vmatprep.subr.bf16.mxu0 0
  %133 = vmatpush1.bf16.msra.mxu0 0
  %134 = vmatprep.subr.bf16.mxu0 0
  %135 = vmatpush1.bf16.msra.mxu0 0
  %136 = vmatprep.subr.bf16.mxu0 0
  %137 = vmatpush1.bf16.msra.mxu0 0
  %138 = vmatprep.subr.bf16.mxu0 0
  %139 = vmatpush1.bf16.msra.mxu0 0
  %140 = vmatprep.subr.bf16.mxu0 0
  %141 = vmatpush1.bf16.msra.mxu0 0
  %142 = vmatprep.subr.bf16.mxu0 0
  %143 = vmatpush1.bf16.msra.mxu0 0
  %144 = vmatprep.subr.bf16.mxu0 0
  %145 = vmatpush1.bf16.msra.mxu0 0
  %146 = vmatprep.subr.bf16.mxu0 0
  %147 = vmatpush1.bf16.msra.mxu0 0
  %148 = vmatprep.subr.bf16.mxu0 0
  %149 = vmatpush1.bf16.msra.mxu0 0
  %150 = vmatprep.subr.bf16.mxu0 0
  %151 = vmatpush1.bf16.msra.mxu0 0
  %152 = vmatprep.subr.bf16.mxu0 0
  %153 = vmatpush1.bf16.msra.mxu0 0
  %154 = vmatprep.subr.bf16.mxu0 0
  %155 = vmatpush1.bf16.msra.mxu0 0
  %156 = vmatprep.subr.bf16.mxu0 0
  %157 = vmatpush1.bf16.msra.mxu0 0
  %158 = vmatprep.subr.bf16.mxu0 0
  %159 = vmatpush1.bf16.msra.mxu0 0
  %160 = vmatprep.mubr.bf16.mxu0 0
  %161 = vmatmul.mubr.bf16.gmra.mrb[0].mxu0 %v107
  %v162 = vpop.f32.mrb[0].mxu0
  %v163 = vadd.f32 %v53, %v162
  %v164 = vpop.f32.mrb[0].mxu0
  %v165 = vadd.f32 %v53, %v164
  %v166 = vpop.f32.mrb[0].mxu0
  %v167 = vadd.f32 %v58, %v166
  %v168 = vpop.f32.mrb[0].mxu0
  %v169 = vadd.f32 %v58, %v168
  %170 = vmatprep.mubr.bf16.mxu0 0
  %171 = vmatmul.mubr.bf16.gmra.mrb[0].mxu0 %v110
  %v172 = vpop.f32.mrb[0].mxu0
  %v173 = vadd.f32 %v63, %v172
  %v174 = vpop.f32.mrb[0].mxu0
  %v175 = vadd.f32 %v63, %v174
  %v176 = vpop.f32.mrb[0].mxu0
  %v177 = vadd.f32 %v68, %v176
  %v178 = vpop.f32.mrb[0].mxu0
  %v179 = vadd.f32 %v68, %v178
  %180 = vmatprep.mubr.bf16.mxu0 0
  %181 = vmatmul.mubr.bf16.gmra.mrb[0].mxu0 %v113
  %v182 = vpop.f32.mrb[0].mxu0
  %v183 = vadd.f32 %v73, %v182
  %v184 = vpop.f32.mrb[0].mxu0
  %v185 = vadd.f32 %v73, %v184
  %v186 = vpop.f32.mrb[0].mxu0
  %v187 = vpop.f32.mrb[0].mxu0
  %188 = vdwg.mxu0
  %189 = vmatprep.subr.bf16.mxu0 %v96
  %190 = vmatpush1.bf16.msra.mxu0 %v95
  %191 = vmatprep.subr.bf16.mxu0 %v126
  %192 = vmatpush1.bf16.msra.mxu0 %v123
  %193 = vmatprep.subr.bf16.mxu0 0
  %194 = vmatpush1.bf16.msra.mxu0 0
  %195 = vmatprep.subr.bf16.mxu0 0
  %196 = vmatpush1.bf16.msra.mxu0 0
  %197 = vmatprep.subr.bf16.mxu0 0
  %198 = vmatpush1.bf16.msra.mxu0 0
  %199 = vmatprep.subr.bf16.mxu0 0
  %200 = vmatpush1.bf16.msra.mxu0 0
  %201 = vmatprep.subr.bf16.mxu0 0
  %202 = vmatpush1.bf16.msra.mxu0 0
  %203 = vmatprep.subr.bf16.mxu0 0
  %204 = vmatpush1.bf16.msra.mxu0 0
  %205 = vmatprep.subr.bf16.mxu0 0
  %206 = vmatpush1.bf16.msra.mxu0 0
  %207 = vmatprep.subr.bf16.mxu0 0
  %208 = vmatpush1.bf16.msra.mxu0 0
  %209 = vmatprep.subr.bf16.mxu0 0
  %210 = vmatpush1.bf16.msra.mxu0 0
  %211 = vmatprep.subr.bf16.mxu0 0
  %212 = vmatpush1.bf16.msra.mxu0 0
  %213 = vmatprep.subr.bf16.mxu0 0
  %214 = vmatpush1.bf16.msra.mxu0 0
  %215 = vmatprep.subr.bf16.mxu0 0
  %216 = vmatpush1.bf16.msra.mxu0 0
  %217 = vmatprep.subr.bf16.mxu0 0
  %218 = vmatpush1.bf16.msra.mxu0 0
  %219 = vmatprep.subr.bf16.mxu0 0
  %220 = vmatpush1.bf16.msra.mxu0 0
  %221 = vmatprep.mubr.bf16.mxu0 0
  %222 = vmatmul.mubr.bf16.gmra.mrb[0].mxu0 %v107
  %v223 = vpop.f32.mrb[0].mxu0
  %v224 = vadd.f32 %v53, %v223
  %v225 = vpop.f32.mrb[0].mxu0
  %v226 = vadd.f32 %v53, %v225
  %v227 = vpop.f32.mrb[0].mxu0
  %v228 = vadd.f32 %v58, %v227
  %v229 = vpop.f32.mrb[0].mxu0
  %v230 = vadd.f32 %v58, %v229
  %231 = vmatprep.mubr.bf16.mxu0 0
  %232 = vmatmul.mubr.bf16.gmra.mrb[0].mxu0 %v110
  %v233 = vpop.f32.mrb[0].mxu0
  %v234 = vadd.f32 %v63, %v233
  %v235 = vpop.f32.mrb[0].mxu0
  %v236 = vadd.f32 %v63, %v235
  %v237 = vpop.f32.mrb[0].mxu0
  %v238 = vadd.f32 %v68, %v237
  %v239 = vpop.f32.mrb[0].mxu0
  %v240 = vadd.f32 %v68, %v239
  %241 = vmatprep.mubr.bf16.mxu0 0
  %242 = vmatmul.mubr.bf16.gmra.mrb[0].mxu0 %v113
  %v243 = vpop.f32.mrb[0].mxu0
  %v244 = vadd.f32 %v73, %v243
  %v245 = vpop.f32.mrb[0].mxu0
  %v246 = vadd.f32 %v73, %v245
  %v247 = vpop.f32.mrb[0].mxu0
  %v248 = vpop.f32.mrb[0].mxu0
  %249 = vdwg.mxu0
  %250 = vrot.lane.b32.xlu0 %v163, 2
  %v251 = vpop.permute.xlu0 %250
  %252 = vrot.lane.b32.xlu0 %v167, 2
  %v253 = vpop.permute.xlu0 %252
  %254 = vrot.lane.b32.xlu0 %v173, 2
  %v255 = vpop.permute.xlu0 %254
  %256 = vrot.lane.b32.xlu0 %v177, 2
  %v257 = vpop.permute.xlu0 %256
  %258 = vrot.lane.b32.xlu0 %v165, 2
  %v259 = vpop.permute.xlu0 %258
  %260 = vrot.lane.b32.xlu0 %v169, 2
  %v261 = vpop.permute.xlu0 %260
  %262 = vrot.lane.b32.xlu0 %v175, 2
  %v263 = vpop.permute.xlu0 %262
  %264 = vrot.lane.b32.xlu0 %v179, 2
  %v265 = vpop.permute.xlu0 %264
  %266 = vrot.lane.b32.xlu0 %v224, 2
  %v267 = vpop.permute.xlu0 %266
  %268 = vrot.lane.b32.xlu0 %v228, 2
  %v269 = vpop.permute.xlu0 %268
  %270 = vrot.lane.b32.xlu0 %v234, 2
  %v271 = vpop.permute.xlu0 %270
  %272 = vrot.lane.b32.xlu0 %v238, 2
  %v273 = vpop.permute.xlu0 %272
  %274 = vrot.lane.b32.xlu0 %v226, 2
  %v275 = vpop.permute.xlu0 %274
  %276 = vrot.lane.b32.xlu0 %v230, 2
  %v277 = vpop.permute.xlu0 %276
  %278 = vrot.lane.b32.xlu0 %v236, 2
  %v279 = vpop.permute.xlu0 %278
  %280 = vrot.lane.b32.xlu0 %v240, 2
  %v281 = vpop.permute.xlu0 %280
  %v282 = vlaneseq
  %v283 = vand.u32 %v282, 127
  %vm284 = vcmp.lt.s32.totalorder %v283, 2
  %v285 = vsel %vm284, %v267, %v275
  %v286 = vsel %vm284, %v269, %v277
  %v287 = vsel %vm284, %v271, %v279
  %v288 = vsel %vm284, %v273, %v281
  %v289 = vsel %vm284, %v259, %v267
  %v290 = vsel %vm284, %v261, %v269
  %v291 = vsel %vm284, %v263, %v271
  %v292 = vsel %vm284, %v265, %v273
  %v293 = vsel %vm284, %v251, %v259
  %v294 = vsel %vm284, %v253, %v261
  %v295 = vsel %vm284, %v255, %v263
  %v296 = vsel %vm284, %v257, %v265
  %v297 = vsel %vm284, %v275, %v251
  %v298 = vsel %vm284, %v277, %v253
  %v299 = vsel %vm284, %v279, %v255
  %v300 = vsel %vm284, %v281, %v257
  %v301 = vlaneseq
  %v302 = vshrl.u32 %v301, 7
  %v303 = vsub.s32 0, %v302
  %v304 = vrot.slane %v43, %v303
  %v305 = vlaneseq
  %v306 = vshrl.u32 %v305, 7
  %v307 = vsub.s32 0, %v306
  %v308 = vrot.slane %v44, %v307
  %v309 = vlaneseq
  %v310 = vshrl.u32 %v309, 7
  %v311 = vsub.s32 0, %v310
  %v312 = vrot.slane %v45, %v311
  %v313 = vlaneseq
  %v314 = vshrl.u32 %v313, 7
  %v315 = vsub.s32 0, %v314
  %v316 = vrot.slane %v46, %v315
  %v317 = vmul.f32 %v297, %v304
  %v318 = vmul.f32 %v293, %v308
  %v319 = vmul.f32 %v289, %v312
  %v320 = vmul.f32 %v285, %v316
  %v321 = vmul.f32 %v298, %v304
  %v322 = vmul.f32 %v294, %v308
  %v323 = vmul.f32 %v290, %v312
  %v324 = vmul.f32 %v286, %v316
  %v325 = vmul.f32 %v299, %v304
  %v326 = vmul.f32 %v295, %v308
  %v327 = vmul.f32 %v291, %v312
  %v328 = vmul.f32 %v287, %v316
  %v329 = vmul.f32 %v300, %v304
  %v330 = vmul.f32 %v296, %v308
  %v331 = vmul.f32 %v292, %v312
  %v332 = vmul.f32 %v288, %v316
  %333 = vrot.lane.b32.xlu0 %v163, 1
  %v334 = vpop.permute.xlu0 %333
  %335 = vrot.lane.b32.xlu0 %v167, 1
  %v336 = vpop.permute.xlu0 %335
  %337 = vrot.lane.b32.xlu0 %v173, 1
  %v338 = vpop.permute.xlu0 %337
  %339 = vrot.lane.b32.xlu0 %v177, 1
  %v340 = vpop.permute.xlu0 %339
  %341 = vrot.lane.b32.xlu0 %v165, 1
  %v342 = vpop.permute.xlu0 %341
  %343 = vrot.lane.b32.xlu0 %v169, 1
  %v344 = vpop.permute.xlu0 %343
  %345 = vrot.lane.b32.xlu0 %v175, 1
  %v346 = vpop.permute.xlu0 %345
  %347 = vrot.lane.b32.xlu0 %v179, 1
  %v348 = vpop.permute.xlu0 %347
  %349 = vrot.lane.b32.xlu0 %v224, 1
  %v350 = vpop.permute.xlu0 %349
  %351 = vrot.lane.b32.xlu0 %v228, 1
  %v352 = vpop.permute.xlu0 %351
  %353 = vrot.lane.b32.xlu0 %v234, 1
  %v354 = vpop.permute.xlu0 %353
  %355 = vrot.lane.b32.xlu0 %v238, 1
  %v356 = vpop.permute.xlu0 %355
  %357 = vrot.lane.b32.xlu0 %v226, 1
  %v358 = vpop.permute.xlu0 %357
  %359 = vrot.lane.b32.xlu0 %v230, 1
  %v360 = vpop.permute.xlu0 %359
  %361 = vrot.lane.b32.xlu0 %v236, 1
  %v362 = vpop.permute.xlu0 %361
  %363 = vrot.lane.b32.xlu0 %v240, 1
  %v364 = vpop.permute.xlu0 %363
  %vm365 = vcmp.lt.s32.totalorder %v283, 1
  %v366 = vsel %vm365, %v350, %v358
  %v367 = vsel %vm365, %v352, %v360
  %v368 = vsel %vm365, %v354, %v362
  %v369 = vsel %vm365, %v356, %v364
  %v370 = vsel %vm365, %v342, %v350
  %v371 = vsel %vm365, %v344, %v352
  %v372 = vsel %vm365, %v346, %v354
  %v373 = vsel %vm365, %v348, %v356
  %v374 = vsel %vm365, %v334, %v342
  %v375 = vsel %vm365, %v336, %v344
  %v376 = vsel %vm365, %v338, %v346
  %v377 = vsel %vm365, %v340, %v348
  %v378 = vsel %vm365, %v358, %v334
  %v379 = vsel %vm365, %v360, %v336
  %v380 = vsel %vm365, %v362, %v338
  %v381 = vsel %vm365, %v364, %v340
  %v382 = vlaneseq
  %v383 = vshrl.u32 %v382, 7
  %v384 = vsub.s32 1, %v383
  %v385 = vrot.slane %v43, %v384
  %v386 = vlaneseq
  %v387 = vshrl.u32 %v386, 7
  %v388 = vsub.s32 1, %v387
  %v389 = vrot.slane %v44, %v388
  %v390 = vlaneseq
  %v391 = vshrl.u32 %v390, 7
  %v392 = vsub.s32 1, %v391
  %v393 = vrot.slane %v45, %v392
  %v394 = vlaneseq
  %v395 = vshrl.u32 %v394, 7
  %v396 = vsub.s32 1, %v395
  %v397 = vrot.slane %v46, %v396
  %v398 = vmul.f32 %v378, %v385
  %v399 = vmul.f32 %v374, %v389
  %v400 = vmul.f32 %v370, %v393
  %v401 = vmul.f32 %v366, %v397
  %v402 = vmul.f32 %v379, %v385
  %v403 = vmul.f32 %v375, %v389
  %v404 = vmul.f32 %v371, %v393
  %v405 = vmul.f32 %v367, %v397
  %v406 = vmul.f32 %v380, %v385
  %v407 = vmul.f32 %v376, %v389
  %v408 = vmul.f32 %v372, %v393
  %v409 = vmul.f32 %v368, %v397
  %v410 = vmul.f32 %v381, %v385
  %v411 = vmul.f32 %v377, %v389
  %v412 = vmul.f32 %v373, %v393
  %v413 = vmul.f32 %v369, %v397
  %414 = vrot.lane.b32.xlu0 %v163, 127
  %v415 = vpop.permute.xlu0 %414
  %416 = vrot.lane.b32.xlu0 %v167, 127
  %v417 = vpop.permute.xlu0 %416
  %418 = vrot.lane.b32.xlu0 %v173, 127
  %v419 = vpop.permute.xlu0 %418
  %420 = vrot.lane.b32.xlu0 %v177, 127
  %v421 = vpop.permute.xlu0 %420
  %422 = vrot.lane.b32.xlu0 %v165, 127
  %v423 = vpop.permute.xlu0 %422
  %424 = vrot.lane.b32.xlu0 %v169, 127
  %v425 = vpop.permute.xlu0 %424
  %426 = vrot.lane.b32.xlu0 %v175, 127
  %v427 = vpop.permute.xlu0 %426
  %428 = vrot.lane.b32.xlu0 %v179, 127
  %v429 = vpop.permute.xlu0 %428
  %430 = vrot.lane.b32.xlu0 %v224, 127
  %v431 = vpop.permute.xlu0 %430
  %432 = vrot.lane.b32.xlu0 %v228, 127
  %v433 = vpop.permute.xlu0 %432
  %434 = vrot.lane.b32.xlu0 %v234, 127
  %v435 = vpop.permute.xlu0 %434
  %436 = vrot.lane.b32.xlu0 %v238, 127
  %v437 = vpop.permute.xlu0 %436
  %438 = vrot.lane.b32.xlu0 %v226, 127
  %v439 = vpop.permute.xlu0 %438
  %440 = vrot.lane.b32.xlu0 %v230, 127
  %v441 = vpop.permute.xlu0 %440
  %442 = vrot.lane.b32.xlu0 %v236, 127
  %v443 = vpop.permute.xlu0 %442
  %444 = vrot.lane.b32.xlu0 %v240, 127
  %v445 = vpop.permute.xlu0 %444
  %vm446 = vcmp.lt.s32.totalorder %v283, 127
  %v447 = vsel %vm446, %v431, %v439
  %v448 = vsel %vm446, %v433, %v441
  %v449 = vsel %vm446, %v435, %v443
  %v450 = vsel %vm446, %v437, %v445
  %v451 = vsel %vm446, %v423, %v431
  %v452 = vsel %vm446, %v425, %v433
  %v453 = vsel %vm446, %v427, %v435
  %v454 = vsel %vm446, %v429, %v437
  %v455 = vsel %vm446, %v415, %v423
  %v456 = vsel %vm446, %v417, %v425
  %v457 = vsel %vm446, %v419, %v427
  %v458 = vsel %vm446, %v421, %v429
  %v459 = vsel %vm446, %v439, %v415
  %v460 = vsel %vm446, %v441, %v417
  %v461 = vsel %vm446, %v443, %v419
  %v462 = vsel %vm446, %v445, %v421
  %v463 = vlaneseq
  %v464 = vshrl.u32 %v463, 7
  %v465 = vsub.s32 2, %v464
  %v466 = vrot.slane %v43, %v465
  %v467 = vlaneseq
  %v468 = vshrl.u32 %v467, 7
  %v469 = vsub.s32 2, %v468
  %v470 = vrot.slane %v44, %v469
  %v471 = vlaneseq
  %v472 = vshrl.u32 %v471, 7
  %v473 = vsub.s32 2, %v472
  %v474 = vrot.slane %v45, %v473
  %v475 = vlaneseq
  %v476 = vshrl.u32 %v475, 7
  %v477 = vsub.s32 2, %v476
  %v478 = vrot.slane %v46, %v477
  %v479 = vmul.f32 %v455, %v466
  %v480 = vmul.f32 %v451, %v470
  %v481 = vmul.f32 %v447, %v474
  %v482 = vmul.f32 %v459, %v478
  %v483 = vmul.f32 %v456, %v466
  %v484 = vmul.f32 %v452, %v470
  %v485 = vmul.f32 %v448, %v474
  %v486 = vmul.f32 %v460, %v478
  %v487 = vmul.f32 %v457, %v466
  %v488 = vmul.f32 %v453, %v470
  %v489 = vmul.f32 %v449, %v474
  %v490 = vmul.f32 %v461, %v478
  %v491 = vmul.f32 %v458, %v466
  %v492 = vmul.f32 %v454, %v470
  %v493 = vmul.f32 %v450, %v474
  %v494 = vmul.f32 %v462, %v478
  %495 = vrot.lane.b32.xlu0 %v163, 126
  %v496 = vpop.permute.xlu0 %495
  %497 = vrot.lane.b32.xlu0 %v167, 126
  %v498 = vpop.permute.xlu0 %497
  %499 = vrot.lane.b32.xlu0 %v173, 126
  %v500 = vpop.permute.xlu0 %499
  %501 = vrot.lane.b32.xlu0 %v177, 126
  %v502 = vpop.permute.xlu0 %501
  %503 = vrot.lane.b32.xlu0 %v165, 126
  %v504 = vpop.permute.xlu0 %503
  %505 = vrot.lane.b32.xlu0 %v169, 126
  %v506 = vpop.permute.xlu0 %505
  %507 = vrot.lane.b32.xlu0 %v175, 126
  %v508 = vpop.permute.xlu0 %507
  %509 = vrot.lane.b32.xlu0 %v179, 126
  %v510 = vpop.permute.xlu0 %509
  %511 = vrot.lane.b32.xlu0 %v224, 126
  %v512 = vpop.permute.xlu0 %511
  %513 = vrot.lane.b32.xlu0 %v228, 126
  %v514 = vpop.permute.xlu0 %513
  %515 = vrot.lane.b32.xlu0 %v234, 126
  %v516 = vpop.permute.xlu0 %515
  %517 = vrot.lane.b32.xlu0 %v238, 126
  %v518 = vpop.permute.xlu0 %517
  %519 = vrot.lane.b32.xlu0 %v226, 126
  %v520 = vpop.permute.xlu0 %519
  %521 = vrot.lane.b32.xlu0 %v230, 126
  %v522 = vpop.permute.xlu0 %521
  %523 = vrot.lane.b32.xlu0 %v236, 126
  %v524 = vpop.permute.xlu0 %523
  %525 = vrot.lane.b32.xlu0 %v240, 126
  %v526 = vpop.permute.xlu0 %525
  %vm527 = vcmp.lt.s32.totalorder %v283, 126
  %v528 = vsel %vm527, %v512, %v520
  %v529 = vsel %vm527, %v514, %v522
  %v530 = vsel %vm527, %v516, %v524
  %v531 = vsel %vm527, %v518, %v526
  %v532 = vsel %vm527, %v504, %v512
  %v533 = vsel %vm527, %v506, %v514
  %v534 = vsel %vm527, %v508, %v516
  %v535 = vsel %vm527, %v510, %v518
  %v536 = vsel %vm527, %v496, %v504
  %v537 = vsel %vm527, %v498, %v506
  %v538 = vsel %vm527, %v500, %v508
  %v539 = vsel %vm527, %v502, %v510
  %v540 = vsel %vm527, %v520, %v496
  %v541 = vsel %vm527, %v522, %v498
  %v542 = vsel %vm527, %v524, %v500
  %v543 = vsel %vm527, %v526, %v502
  %v544 = vlaneseq
  %v545 = vshrl.u32 %v544, 7
  %v546 = vsub.s32 3, %v545
  %v547 = vrot.slane %v43, %v546
  %v548 = vlaneseq
  %v549 = vshrl.u32 %v548, 7
  %v550 = vsub.s32 3, %v549
  %v551 = vrot.slane %v44, %v550
  %v552 = vlaneseq
  %v553 = vshrl.u32 %v552, 7
  %v554 = vsub.s32 3, %v553
  %v555 = vrot.slane %v45, %v554
  %v556 = vlaneseq
  %v557 = vshrl.u32 %v556, 7
  %v558 = vsub.s32 3, %v557
  %v559 = vrot.slane %v46, %v558
  %v560 = vmul.f32 %v536, %v547
  %v561 = vmul.f32 %v532, %v551
  %v562 = vmul.f32 %v528, %v555
  %v563 = vmul.f32 %v540, %v559
  %v564 = vmul.f32 %v537, %v547
  %v565 = vmul.f32 %v533, %v551
  %v566 = vmul.f32 %v529, %v555
  %v567 = vmul.f32 %v541, %v559
  %v568 = vmul.f32 %v538, %v547
  %v569 = vmul.f32 %v534, %v551
  %v570 = vmul.f32 %v530, %v555
  %v571 = vmul.f32 %v542, %v559
  %v572 = vmul.f32 %v539, %v547
  %v573 = vmul.f32 %v535, %v551
  %v574 = vmul.f32 %v531, %v555
  %v575 = vmul.f32 %v543, %v559
  %577 = vset.pattern.permute.xlu0 0
  %578 = vperm.xlu0 %577, %v29
  %v579 = vpop.permute.xlu0 %578
  %582 = vset.pattern.permute.xlu0 0
  %583 = vperm.xlu0 %582, %v30
  %v584 = vpop.permute.xlu0 %583
  %587 = vset.pattern.permute.xlu0 0
  %588 = vperm.xlu0 %587, %v31
  %v589 = vpop.permute.xlu0 %588
  %592 = vset.pattern.permute.xlu0 0
  %593 = vperm.xlu0 %592, %v32
  %v594 = vpop.permute.xlu0 %593
  %v596 = vmul.f32 %v317, %v579
  %v597 = vmul.f32 %v318, %v579
  %v598 = vmul.f32 %v319, %v579
  %v599 = vmul.f32 %v320, %v579
  %v600 = vmul.f32 %v321, %v584
  %v601 = vmul.f32 %v322, %v584
  %v602 = vmul.f32 %v323, %v584
  %v603 = vmul.f32 %v324, %v584
  %v604 = vmul.f32 %v325, %v589
  %v605 = vmul.f32 %v326, %v589
  %v606 = vmul.f32 %v327, %v589
  %v607 = vmul.f32 %v328, %v589
  %v608 = vmul.f32 %v329, %v594
  %v609 = vmul.f32 %v330, %v594
  %v610 = vmul.f32 %v331, %v594
  %v611 = vmul.f32 %v332, %v594
  %612 = vset.pattern.permute.xlu0 1
  %613 = vperm.xlu0 %612, %v29
  %v614 = vpop.permute.xlu0 %613
  %616 = vset.pattern.permute.xlu0 1
  %617 = vperm.xlu0 %616, %v30
  %v618 = vpop.permute.xlu0 %617
  %620 = vset.pattern.permute.xlu0 1
  %621 = vperm.xlu0 %620, %v31
  %v622 = vpop.permute.xlu0 %621
  %624 = vset.pattern.permute.xlu0 1
  %625 = vperm.xlu0 %624, %v32
  %v626 = vpop.permute.xlu0 %625
  %v628 = vmul.f32 %v398, %v614
  %v629 = vmul.f32 %v399, %v614
  %v630 = vmul.f32 %v400, %v614
  %v631 = vmul.f32 %v401, %v614
  %v632 = vmul.f32 %v402, %v618
  %v633 = vmul.f32 %v403, %v618
  %v634 = vmul.f32 %v404, %v618
  %v635 = vmul.f32 %v405, %v618
  %v636 = vmul.f32 %v406, %v622
  %v637 = vmul.f32 %v407, %v622
  %v638 = vmul.f32 %v408, %v622
  %v639 = vmul.f32 %v409, %v622
  %v640 = vmul.f32 %v410, %v626
  %v641 = vmul.f32 %v411, %v626
  %v642 = vmul.f32 %v412, %v626
  %v643 = vmul.f32 %v413, %v626
  %v644 = vadd.f32 %v596, %v628
  %v645 = vadd.f32 %v597, %v629
  %v646 = vadd.f32 %v598, %v630
  %v647 = vadd.f32 %v599, %v631
  %v648 = vadd.f32 %v600, %v632
  %v649 = vadd.f32 %v601, %v633
  %v650 = vadd.f32 %v602, %v634
  %v651 = vadd.f32 %v603, %v635
  %v652 = vadd.f32 %v604, %v636
  %v653 = vadd.f32 %v605, %v637
  %v654 = vadd.f32 %v606, %v638
  %v655 = vadd.f32 %v607, %v639
  %v656 = vadd.f32 %v608, %v640
  %v657 = vadd.f32 %v609, %v641
  %v658 = vadd.f32 %v610, %v642
  %v659 = vadd.f32 %v611, %v643
  %660 = vset.pattern.permute.xlu0 2
  %661 = vperm.xlu0 %660, %v29
  %v662 = vpop.permute.xlu0 %661
  %664 = vset.pattern.permute.xlu0 2
  %665 = vperm.xlu0 %664, %v30
  %v666 = vpop.permute.xlu0 %665
  %668 = vset.pattern.permute.xlu0 2
  %669 = vperm.xlu0 %668, %v31
  %v670 = vpop.permute.xlu0 %669
  %672 = vset.pattern.permute.xlu0 2
  %673 = vperm.xlu0 %672, %v32
  %v674 = vpop.permute.xlu0 %673
  %v676 = vmul.f32 %v163, %v662
  %v677 = vmul.f32 %v165, %v662
  %v678 = vmul.f32 %v224, %v662
  %v679 = vmul.f32 %v226, %v662
  %v680 = vmul.f32 %v167, %v666
  %v681 = vmul.f32 %v169, %v666
  %v682 = vmul.f32 %v228, %v666
  %v683 = vmul.f32 %v230, %v666
  %v684 = vmul.f32 %v173, %v670
  %v685 = vmul.f32 %v175, %v670
  %v686 = vmul.f32 %v234, %v670
  %v687 = vmul.f32 %v236, %v670
  %v688 = vmul.f32 %v177, %v674
  %v689 = vmul.f32 %v179, %v674
  %v690 = vmul.f32 %v238, %v674
  %v691 = vmul.f32 %v240, %v674
  %v692 = vadd.f32 %v644, %v676
  %v693 = vadd.f32 %v645, %v677
  %v694 = vadd.f32 %v646, %v678
  %v695 = vadd.f32 %v647, %v679
  %v696 = vadd.f32 %v648, %v680
  %v697 = vadd.f32 %v649, %v681
  %v698 = vadd.f32 %v650, %v682
  %v699 = vadd.f32 %v651, %v683
  %v700 = vadd.f32 %v652, %v684
  %v701 = vadd.f32 %v653, %v685
  %v702 = vadd.f32 %v654, %v686
  %v703 = vadd.f32 %v655, %v687
  %v704 = vadd.f32 %v656, %v688
  %v705 = vadd.f32 %v657, %v689
  %v706 = vadd.f32 %v658, %v690
  %v707 = vadd.f32 %v659, %v691
  %708 = vset.pattern.permute.xlu0 3
  %709 = vperm.xlu0 %708, %v29
  %v710 = vpop.permute.xlu0 %709
  %712 = vset.pattern.permute.xlu0 3
  %713 = vperm.xlu0 %712, %v30
  %v714 = vpop.permute.xlu0 %713
  %716 = vset.pattern.permute.xlu0 3
  %717 = vperm.xlu0 %716, %v31
  %v718 = vpop.permute.xlu0 %717
  %720 = vset.pattern.permute.xlu0 3
  %721 = vperm.xlu0 %720, %v32
  %v722 = vpop.permute.xlu0 %721
  %v724 = vmul.f32 %v479, %v710
  %v725 = vmul.f32 %v480, %v710
  %v726 = vmul.f32 %v481, %v710
  %v727 = vmul.f32 %v482, %v710
  %v728 = vmul.f32 %v483, %v714
  %v729 = vmul.f32 %v484, %v714
  %v730 = vmul.f32 %v485, %v714
  %v731 = vmul.f32 %v486, %v714
  %v732 = vmul.f32 %v487, %v718
  %v733 = vmul.f32 %v488, %v718
  %v734 = vmul.f32 %v489, %v718
  %v735 = vmul.f32 %v490, %v718
  %v736 = vmul.f32 %v491, %v722
  %v737 = vmul.f32 %v492, %v722
  %v738 = vmul.f32 %v493, %v722
  %v739 = vmul.f32 %v494, %v722
  %v740 = vadd.f32 %v692, %v724
  %v741 = vadd.f32 %v693, %v725
  %v742 = vadd.f32 %v694, %v726
  %v743 = vadd.f32 %v695, %v727
  %v744 = vadd.f32 %v696, %v728
  %v745 = vadd.f32 %v697, %v729
  %v746 = vadd.f32 %v698, %v730
  %v747 = vadd.f32 %v699, %v731
  %v748 = vadd.f32 %v700, %v732
  %v749 = vadd.f32 %v701, %v733
  %v750 = vadd.f32 %v702, %v734
  %v751 = vadd.f32 %v703, %v735
  %v752 = vadd.f32 %v704, %v736
  %v753 = vadd.f32 %v705, %v737
  %v754 = vadd.f32 %v706, %v738
  %v755 = vadd.f32 %v707, %v739
  %756 = vset.pattern.permute.xlu0 4
  %757 = vperm.xlu0 %756, %v29
  %v758 = vpop.permute.xlu0 %757
  %760 = vset.pattern.permute.xlu0 4
  %761 = vperm.xlu0 %760, %v30
  %v762 = vpop.permute.xlu0 %761
  %764 = vset.pattern.permute.xlu0 4
  %765 = vperm.xlu0 %764, %v31
  %v766 = vpop.permute.xlu0 %765
  %768 = vset.pattern.permute.xlu0 4
  %769 = vperm.xlu0 %768, %v32
  %v770 = vpop.permute.xlu0 %769
  %v772 = vmul.f32 %v560, %v758
  %v773 = vmul.f32 %v561, %v758
  %v774 = vmul.f32 %v562, %v758
  %v775 = vmul.f32 %v563, %v758
  %v776 = vmul.f32 %v564, %v762
  %v777 = vmul.f32 %v565, %v762
  %v778 = vmul.f32 %v566, %v762
  %v779 = vmul.f32 %v567, %v762
  %v780 = vmul.f32 %v568, %v766
  %v781 = vmul.f32 %v569, %v766
  %v782 = vmul.f32 %v570, %v766
  %v783 = vmul.f32 %v571, %v766
  %v784 = vmul.f32 %v572, %v770
  %v785 = vmul.f32 %v573, %v770
  %v786 = vmul.f32 %v574, %v770
  %v787 = vmul.f32 %v575, %v770
  %v788 = vadd.f32 %v740, %v772
  %v789 = vadd.f32 %v741, %v773
  %v790 = vadd.f32 %v742, %v774
  %v791 = vadd.f32 %v743, %v775
  %v792 = vadd.f32 %v744, %v776
  %v793 = vadd.f32 %v745, %v777
  %v794 = vadd.f32 %v746, %v778
  %v795 = vadd.f32 %v747, %v779
  %v796 = vadd.f32 %v748, %v780
  %v797 = vadd.f32 %v749, %v781
  %v798 = vadd.f32 %v750, %v782
  %v799 = vadd.f32 %v751, %v783
  %v800 = vadd.f32 %v752, %v784
  %v801 = vadd.f32 %v753, %v785
  %v802 = vadd.f32 %v754, %v786
  %v803 = vadd.f32 %v755, %v787
  %804 = vrot.lane.b32.xlu0 %v788, 32
  %v805 = vpop.permute.xlu0 %804
  %806 = vrot.lane.b32.xlu0 %v792, 32
  %v807 = vpop.permute.xlu0 %806
  %808 = vrot.lane.b32.xlu0 %v796, 32
  %v809 = vpop.permute.xlu0 %808
  %810 = vrot.lane.b32.xlu0 %v800, 32
  %v811 = vpop.permute.xlu0 %810
  %812 = vrot.lane.b32.xlu0 %v789, 32
  %v813 = vpop.permute.xlu0 %812
  %814 = vrot.lane.b32.xlu0 %v793, 32
  %v815 = vpop.permute.xlu0 %814
  %816 = vrot.lane.b32.xlu0 %v797, 32
  %v817 = vpop.permute.xlu0 %816
  %818 = vrot.lane.b32.xlu0 %v801, 32
  %v819 = vpop.permute.xlu0 %818
  %820 = vrot.lane.b32.xlu0 %v790, 32
  %v821 = vpop.permute.xlu0 %820
  %822 = vrot.lane.b32.xlu0 %v794, 32
  %v823 = vpop.permute.xlu0 %822
  %824 = vrot.lane.b32.xlu0 %v798, 32
  %v825 = vpop.permute.xlu0 %824
  %826 = vrot.lane.b32.xlu0 %v802, 32
  %v827 = vpop.permute.xlu0 %826
  %828 = vrot.lane.b32.xlu0 %v791, 32
  %v829 = vpop.permute.xlu0 %828
  %830 = vrot.lane.b32.xlu0 %v795, 32
  %v831 = vpop.permute.xlu0 %830
  %832 = vrot.lane.b32.xlu0 %v799, 32
  %v833 = vpop.permute.xlu0 %832
  %834 = vrot.lane.b32.xlu0 %v803, 32
  %v835 = vpop.permute.xlu0 %834
  %vm836 = vcmp.lt.s32.totalorder %v283, 32
  %v837 = vsel %vm836, %v821, %v829
  %v838 = vsel %vm836, %v823, %v831
  %v839 = vsel %vm836, %v825, %v833
  %v840 = vsel %vm836, %v827, %v835
  %v841 = vsel %vm836, %v813, %v821
  %v842 = vsel %vm836, %v815, %v823
  %v843 = vsel %vm836, %v817, %v825
  %v844 = vsel %vm836, %v819, %v827
  %v845 = vsel %vm836, %v805, %v813
  %v846 = vsel %vm836, %v807, %v815
  %v847 = vsel %vm836, %v809, %v817
  %v848 = vsel %vm836, %v811, %v819
  %v849 = vsel %vm836, %v829, %v805
  %v850 = vsel %vm836, %v831, %v807
  %v851 = vsel %vm836, %v833, %v809
  %v852 = vsel %vm836, %v835, %v811
  %v853 = vlaneseq
  %v854 = vshrl.u32 %v853, 7
  %v855 = vsub.s32 4, %v854
  %v856 = vrot.slane %v43, %v855
  %v857 = vlaneseq
  %v858 = vshrl.u32 %v857, 7
  %v859 = vsub.s32 4, %v858
  %v860 = vrot.slane %v44, %v859
  %v861 = vlaneseq
  %v862 = vshrl.u32 %v861, 7
  %v863 = vsub.s32 4, %v862
  %v864 = vrot.slane %v45, %v863
  %v865 = vlaneseq
  %v866 = vshrl.u32 %v865, 7
  %v867 = vsub.s32 4, %v866
  %v868 = vrot.slane %v46, %v867
  %v869 = vmul.f32 %v849, %v856
  %v870 = vmul.f32 %v845, %v860
  %v871 = vmul.f32 %v841, %v864
  %v872 = vmul.f32 %v837, %v868
  %v873 = vmul.f32 %v850, %v856
  %v874 = vmul.f32 %v846, %v860
  %v875 = vmul.f32 %v842, %v864
  %v876 = vmul.f32 %v838, %v868
  %v877 = vmul.f32 %v851, %v856
  %v878 = vmul.f32 %v847, %v860
  %v879 = vmul.f32 %v843, %v864
  %v880 = vmul.f32 %v839, %v868
  %v881 = vmul.f32 %v852, %v856
  %v882 = vmul.f32 %v848, %v860
  %v883 = vmul.f32 %v844, %v864
  %v884 = vmul.f32 %v840, %v868
  %885 = vset.pattern.permute.xlu0 5
  %886 = vperm.xlu0 %885, %v29
  %v887 = vpop.permute.xlu0 %886
  %889 = vset.pattern.permute.xlu0 5
  %890 = vperm.xlu0 %889, %v30
  %v891 = vpop.permute.xlu0 %890
  %893 = vset.pattern.permute.xlu0 5
  %894 = vperm.xlu0 %893, %v31
  %v895 = vpop.permute.xlu0 %894
  %897 = vset.pattern.permute.xlu0 5
  %898 = vperm.xlu0 %897, %v32
  %v899 = vpop.permute.xlu0 %898
  %v901 = vmul.f32 %v317, %v887
  %v902 = vmul.f32 %v318, %v887
  %v903 = vmul.f32 %v319, %v887
  %v904 = vmul.f32 %v320, %v887
  %v905 = vmul.f32 %v321, %v891
  %v906 = vmul.f32 %v322, %v891
  %v907 = vmul.f32 %v323, %v891
  %v908 = vmul.f32 %v324, %v891
  %v909 = vmul.f32 %v325, %v895
  %v910 = vmul.f32 %v326, %v895
  %v911 = vmul.f32 %v327, %v895
  %v912 = vmul.f32 %v328, %v895
  %v913 = vmul.f32 %v329, %v899
  %v914 = vmul.f32 %v330, %v899
  %v915 = vmul.f32 %v331, %v899
  %v916 = vmul.f32 %v332, %v899
  %917 = vset.pattern.permute.xlu0 6
  %918 = vperm.xlu0 %917, %v29
  %v919 = vpop.permute.xlu0 %918
  %921 = vset.pattern.permute.xlu0 6
  %922 = vperm.xlu0 %921, %v30
  %v923 = vpop.permute.xlu0 %922
  %925 = vset.pattern.permute.xlu0 6
  %926 = vperm.xlu0 %925, %v31
  %v927 = vpop.permute.xlu0 %926
  %929 = vset.pattern.permute.xlu0 6
  %930 = vperm.xlu0 %929, %v32
  %v931 = vpop.permute.xlu0 %930
  %v933 = vmul.f32 %v398, %v919
  %v934 = vmul.f32 %v399, %v919
  %v935 = vmul.f32 %v400, %v919
  %v936 = vmul.f32 %v401, %v919
  %v937 = vmul.f32 %v402, %v923
  %v938 = vmul.f32 %v403, %v923
  %v939 = vmul.f32 %v404, %v923
  %v940 = vmul.f32 %v405, %v923
  %v941 = vmul.f32 %v406, %v927
  %v942 = vmul.f32 %v407, %v927
  %v943 = vmul.f32 %v408, %v927
  %v944 = vmul.f32 %v409, %v927
  %v945 = vmul.f32 %v410, %v931
  %v946 = vmul.f32 %v411, %v931
  %v947 = vmul.f32 %v412, %v931
  %v948 = vmul.f32 %v413, %v931
  %v949 = vadd.f32 %v901, %v933
  %v950 = vadd.f32 %v902, %v934
  %v951 = vadd.f32 %v903, %v935
  %v952 = vadd.f32 %v904, %v936
  %v953 = vadd.f32 %v905, %v937
  %v954 = vadd.f32 %v906, %v938
  %v955 = vadd.f32 %v907, %v939
  %v956 = vadd.f32 %v908, %v940
  %v957 = vadd.f32 %v909, %v941
  %v958 = vadd.f32 %v910, %v942
  %v959 = vadd.f32 %v911, %v943
  %v960 = vadd.f32 %v912, %v944
  %v961 = vadd.f32 %v913, %v945
  %v962 = vadd.f32 %v914, %v946
  %v963 = vadd.f32 %v915, %v947
  %v964 = vadd.f32 %v916, %v948
  %965 = vset.pattern.permute.xlu0 7
  %966 = vperm.xlu0 %965, %v29
  %v967 = vpop.permute.xlu0 %966
  %969 = vset.pattern.permute.xlu0 7
  %970 = vperm.xlu0 %969, %v30
  %v971 = vpop.permute.xlu0 %970
  %973 = vset.pattern.permute.xlu0 7
  %974 = vperm.xlu0 %973, %v31
  %v975 = vpop.permute.xlu0 %974
  %977 = vset.pattern.permute.xlu0 7
  %978 = vperm.xlu0 %977, %v32
  %v979 = vpop.permute.xlu0 %978
  %v981 = vmul.f32 %v163, %v967
  %v982 = vmul.f32 %v165, %v967
  %v983 = vmul.f32 %v224, %v967
  %v984 = vmul.f32 %v226, %v967
  %v985 = vmul.f32 %v167, %v971
  %v986 = vmul.f32 %v169, %v971
  %v987 = vmul.f32 %v228, %v971
  %v988 = vmul.f32 %v230, %v971
  %v989 = vmul.f32 %v173, %v975
  %v990 = vmul.f32 %v175, %v975
  %v991 = vmul.f32 %v234, %v975
  %v992 = vmul.f32 %v236, %v975
  %v993 = vmul.f32 %v177, %v979
  %v994 = vmul.f32 %v179, %v979
  %v995 = vmul.f32 %v238, %v979
  %v996 = vmul.f32 %v240, %v979
  %v997 = vadd.f32 %v949, %v981
  %v998 = vadd.f32 %v950, %v982
  %v999 = vadd.f32 %v951, %v983
  %v1000 = vadd.f32 %v952, %v984
  %v1001 = vadd.f32 %v953, %v985
  %v1002 = vadd.f32 %v954, %v986
  %v1003 = vadd.f32 %v955, %v987
  %v1004 = vadd.f32 %v956, %v988
  %v1005 = vadd.f32 %v957, %v989
  %v1006 = vadd.f32 %v958, %v990
  %v1007 = vadd.f32 %v959, %v991
  %v1008 = vadd.f32 %v960, %v992
  %v1009 = vadd.f32 %v961, %v993
  %v1010 = vadd.f32 %v962, %v994
  %v1011 = vadd.f32 %v963, %v995
  %v1012 = vadd.f32 %v964, %v996
  %1013 = vset.pattern.permute.xlu0 8
  %1014 = vperm.xlu0 %1013, %v29
  %v1015 = vpop.permute.xlu0 %1014
  %1017 = vset.pattern.permute.xlu0 8
  %1018 = vperm.xlu0 %1017, %v30
  %v1019 = vpop.permute.xlu0 %1018
  %1021 = vset.pattern.permute.xlu0 8
  %1022 = vperm.xlu0 %1021, %v31
  %v1023 = vpop.permute.xlu0 %1022
  %1025 = vset.pattern.permute.xlu0 8
  %1026 = vperm.xlu0 %1025, %v32
  %v1027 = vpop.permute.xlu0 %1026
  %v1029 = vmul.f32 %v479, %v1015
  %v1030 = vmul.f32 %v480, %v1015
  %v1031 = vmul.f32 %v481, %v1015
  %v1032 = vmul.f32 %v482, %v1015
  %v1033 = vmul.f32 %v483, %v1019
  %v1034 = vmul.f32 %v484, %v1019
  %v1035 = vmul.f32 %v485, %v1019
  %v1036 = vmul.f32 %v486, %v1019
  %v1037 = vmul.f32 %v487, %v1023
  %v1038 = vmul.f32 %v488, %v1023
  %v1039 = vmul.f32 %v489, %v1023
  %v1040 = vmul.f32 %v490, %v1023
  %v1041 = vmul.f32 %v491, %v1027
  %v1042 = vmul.f32 %v492, %v1027
  %v1043 = vmul.f32 %v493, %v1027
  %v1044 = vmul.f32 %v494, %v1027
  %v1045 = vadd.f32 %v997, %v1029
  %v1046 = vadd.f32 %v998, %v1030
  %v1047 = vadd.f32 %v999, %v1031
  %v1048 = vadd.f32 %v1000, %v1032
  %v1049 = vadd.f32 %v1001, %v1033
  %v1050 = vadd.f32 %v1002, %v1034
  %v1051 = vadd.f32 %v1003, %v1035
  %v1052 = vadd.f32 %v1004, %v1036
  %v1053 = vadd.f32 %v1005, %v1037
  %v1054 = vadd.f32 %v1006, %v1038
  %v1055 = vadd.f32 %v1007, %v1039
  %v1056 = vadd.f32 %v1008, %v1040
  %v1057 = vadd.f32 %v1009, %v1041
  %v1058 = vadd.f32 %v1010, %v1042
  %v1059 = vadd.f32 %v1011, %v1043
  %v1060 = vadd.f32 %v1012, %v1044
  %1061 = vset.pattern.permute.xlu0 9
  %1062 = vperm.xlu0 %1061, %v29
  %v1063 = vpop.permute.xlu0 %1062
  %1065 = vset.pattern.permute.xlu0 9
  %1066 = vperm.xlu0 %1065, %v30
  %v1067 = vpop.permute.xlu0 %1066
  %1069 = vset.pattern.permute.xlu0 9
  %1070 = vperm.xlu0 %1069, %v31
  %v1071 = vpop.permute.xlu0 %1070
  %1073 = vset.pattern.permute.xlu0 9
  %1074 = vperm.xlu0 %1073, %v32
  %v1075 = vpop.permute.xlu0 %1074
  %v1077 = vmul.f32 %v560, %v1063
  %v1078 = vmul.f32 %v561, %v1063
  %v1079 = vmul.f32 %v562, %v1063
  %v1080 = vmul.f32 %v563, %v1063
  %v1081 = vmul.f32 %v564, %v1067
  %v1082 = vmul.f32 %v565, %v1067
  %v1083 = vmul.f32 %v566, %v1067
  %v1084 = vmul.f32 %v567, %v1067
  %v1085 = vmul.f32 %v568, %v1071
  %v1086 = vmul.f32 %v569, %v1071
  %v1087 = vmul.f32 %v570, %v1071
  %v1088 = vmul.f32 %v571, %v1071
  %v1089 = vmul.f32 %v572, %v1075
  %v1090 = vmul.f32 %v573, %v1075
  %v1091 = vmul.f32 %v574, %v1075
  %v1092 = vmul.f32 %v575, %v1075
  %v1093 = vadd.f32 %v1045, %v1077
  %v1094 = vadd.f32 %v1046, %v1078
  %v1095 = vadd.f32 %v1047, %v1079
  %v1096 = vadd.f32 %v1048, %v1080
  %v1097 = vadd.f32 %v1049, %v1081
  %v1098 = vadd.f32 %v1050, %v1082
  %v1099 = vadd.f32 %v1051, %v1083
  %v1100 = vadd.f32 %v1052, %v1084
  %v1101 = vadd.f32 %v1053, %v1085
  %v1102 = vadd.f32 %v1054, %v1086
  %v1103 = vadd.f32 %v1055, %v1087
  %v1104 = vadd.f32 %v1056, %v1088
  %v1105 = vadd.f32 %v1057, %v1089
  %v1106 = vadd.f32 %v1058, %v1090
  %v1107 = vadd.f32 %v1059, %v1091
  %v1108 = vadd.f32 %v1060, %v1092
  %1109 = vrot.lane.b32.xlu0 %v1093, 16
  %v1110 = vpop.permute.xlu0 %1109
  %1111 = vrot.lane.b32.xlu0 %v1097, 16
  %v1112 = vpop.permute.xlu0 %1111
  %1113 = vrot.lane.b32.xlu0 %v1101, 16
  %v1114 = vpop.permute.xlu0 %1113
  %1115 = vrot.lane.b32.xlu0 %v1105, 16
  %v1116 = vpop.permute.xlu0 %1115
  %1117 = vrot.lane.b32.xlu0 %v1094, 16
  %v1118 = vpop.permute.xlu0 %1117
  %1119 = vrot.lane.b32.xlu0 %v1098, 16
  %v1120 = vpop.permute.xlu0 %1119
  %1121 = vrot.lane.b32.xlu0 %v1102, 16
  %v1122 = vpop.permute.xlu0 %1121
  %1123 = vrot.lane.b32.xlu0 %v1106, 16
  %v1124 = vpop.permute.xlu0 %1123
  %1125 = vrot.lane.b32.xlu0 %v1095, 16
  %v1126 = vpop.permute.xlu0 %1125
  %1127 = vrot.lane.b32.xlu0 %v1099, 16
  %v1128 = vpop.permute.xlu0 %1127
  %1129 = vrot.lane.b32.xlu0 %v1103, 16
  %v1130 = vpop.permute.xlu0 %1129
  %1131 = vrot.lane.b32.xlu0 %v1107, 16
  %v1132 = vpop.permute.xlu0 %1131
  %1133 = vrot.lane.b32.xlu0 %v1096, 16
  %v1134 = vpop.permute.xlu0 %1133
  %1135 = vrot.lane.b32.xlu0 %v1100, 16
  %v1136 = vpop.permute.xlu0 %1135
  %1137 = vrot.lane.b32.xlu0 %v1104, 16
  %v1138 = vpop.permute.xlu0 %1137
  %1139 = vrot.lane.b32.xlu0 %v1108, 16
  %v1140 = vpop.permute.xlu0 %1139
  %vm1141 = vcmp.lt.s32.totalorder %v283, 16
  %v1142 = vsel %vm1141, %v1126, %v1134
  %v1143 = vsel %vm1141, %v1128, %v1136
  %v1144 = vsel %vm1141, %v1130, %v1138
  %v1145 = vsel %vm1141, %v1132, %v1140
  %v1146 = vsel %vm1141, %v1118, %v1126
  %v1147 = vsel %vm1141, %v1120, %v1128
  %v1148 = vsel %vm1141, %v1122, %v1130
  %v1149 = vsel %vm1141, %v1124, %v1132
  %v1150 = vsel %vm1141, %v1110, %v1118
  %v1151 = vsel %vm1141, %v1112, %v1120
  %v1152 = vsel %vm1141, %v1114, %v1122
  %v1153 = vsel %vm1141, %v1116, %v1124
  %v1154 = vsel %vm1141, %v1134, %v1110
  %v1155 = vsel %vm1141, %v1136, %v1112
  %v1156 = vsel %vm1141, %v1138, %v1114
  %v1157 = vsel %vm1141, %v1140, %v1116
  %v1158 = vlaneseq
  %v1159 = vshrl.u32 %v1158, 7
  %v1160 = vsub.s32 5, %v1159
  %v1161 = vrot.slane %v43, %v1160
  %v1162 = vlaneseq
  %v1163 = vshrl.u32 %v1162, 7
  %v1164 = vsub.s32 5, %v1163
  %v1165 = vrot.slane %v44, %v1164
  %v1166 = vlaneseq
  %v1167 = vshrl.u32 %v1166, 7
  %v1168 = vsub.s32 5, %v1167
  %v1169 = vrot.slane %v45, %v1168
  %v1170 = vlaneseq
  %v1171 = vshrl.u32 %v1170, 7
  %v1172 = vsub.s32 5, %v1171
  %v1173 = vrot.slane %v46, %v1172
  %v1174 = vmul.f32 %v1154, %v1161
  %v1175 = vmul.f32 %v1150, %v1165
  %v1176 = vmul.f32 %v1146, %v1169
  %v1177 = vmul.f32 %v1142, %v1173
  %v1178 = vmul.f32 %v1155, %v1161
  %v1179 = vmul.f32 %v1151, %v1165
  %v1180 = vmul.f32 %v1147, %v1169
  %v1181 = vmul.f32 %v1143, %v1173
  %v1182 = vmul.f32 %v1156, %v1161
  %v1183 = vmul.f32 %v1152, %v1165
  %v1184 = vmul.f32 %v1148, %v1169
  %v1185 = vmul.f32 %v1144, %v1173
  %v1186 = vmul.f32 %v1157, %v1161
  %v1187 = vmul.f32 %v1153, %v1165
  %v1188 = vmul.f32 %v1149, %v1169
  %v1189 = vmul.f32 %v1145, %v1173
  %v1190 = vadd.f32 %v869, %v1174
  %v1191 = vadd.f32 %v870, %v1175
  %v1192 = vadd.f32 %v871, %v1176
  %v1193 = vadd.f32 %v872, %v1177
  %v1194 = vadd.f32 %v873, %v1178
  %v1195 = vadd.f32 %v874, %v1179
  %v1196 = vadd.f32 %v875, %v1180
  %v1197 = vadd.f32 %v876, %v1181
  %v1198 = vadd.f32 %v877, %v1182
  %v1199 = vadd.f32 %v878, %v1183
  %v1200 = vadd.f32 %v879, %v1184
  %v1201 = vadd.f32 %v880, %v1185
  %v1202 = vadd.f32 %v881, %v1186
  %v1203 = vadd.f32 %v882, %v1187
  %v1204 = vadd.f32 %v883, %v1188
  %v1205 = vadd.f32 %v884, %v1189
  %1206 = vset.pattern.permute.xlu0 10
  %1207 = vperm.xlu0 %1206, %v29
  %v1208 = vpop.permute.xlu0 %1207
  %1210 = vset.pattern.permute.xlu0 10
  %1211 = vperm.xlu0 %1210, %v30
  %v1212 = vpop.permute.xlu0 %1211
  %1214 = vset.pattern.permute.xlu0 10
  %1215 = vperm.xlu0 %1214, %v31
  %v1216 = vpop.permute.xlu0 %1215
  %1218 = vset.pattern.permute.xlu0 10
  %1219 = vperm.xlu0 %1218, %v32
  %v1220 = vpop.permute.xlu0 %1219
  %v1222 = vmul.f32 %v317, %v1208
  %v1223 = vmul.f32 %v318, %v1208
  %v1224 = vmul.f32 %v319, %v1208
  %v1225 = vmul.f32 %v320, %v1208
  %v1226 = vmul.f32 %v321, %v1212
  %v1227 = vmul.f32 %v322, %v1212
  %v1228 = vmul.f32 %v323, %v1212
  %v1229 = vmul.f32 %v324, %v1212
  %v1230 = vmul.f32 %v325, %v1216
  %v1231 = vmul.f32 %v326, %v1216
  %v1232 = vmul.f32 %v327, %v1216
  %v1233 = vmul.f32 %v328, %v1216
  %v1234 = vmul.f32 %v329, %v1220
  %v1235 = vmul.f32 %v330, %v1220
  %v1236 = vmul.f32 %v331, %v1220
  %v1237 = vmul.f32 %v332, %v1220
  %1238 = vset.pattern.permute.xlu0 11
  %1239 = vperm.xlu0 %1238, %v29
  %v1240 = vpop.permute.xlu0 %1239
  %1242 = vset.pattern.permute.xlu0 11
  %1243 = vperm.xlu0 %1242, %v30
  %v1244 = vpop.permute.xlu0 %1243
  %1246 = vset.pattern.permute.xlu0 11
  %1247 = vperm.xlu0 %1246, %v31
  %v1248 = vpop.permute.xlu0 %1247
  %1250 = vset.pattern.permute.xlu0 11
  %1251 = vperm.xlu0 %1250, %v32
  %v1252 = vpop.permute.xlu0 %1251
  %v1254 = vmul.f32 %v398, %v1240
  %v1255 = vmul.f32 %v399, %v1240
  %v1256 = vmul.f32 %v400, %v1240
  %v1257 = vmul.f32 %v401, %v1240
  %v1258 = vmul.f32 %v402, %v1244
  %v1259 = vmul.f32 %v403, %v1244
  %v1260 = vmul.f32 %v404, %v1244
  %v1261 = vmul.f32 %v405, %v1244
  %v1262 = vmul.f32 %v406, %v1248
  %v1263 = vmul.f32 %v407, %v1248
  %v1264 = vmul.f32 %v408, %v1248
  %v1265 = vmul.f32 %v409, %v1248
  %v1266 = vmul.f32 %v410, %v1252
  %v1267 = vmul.f32 %v411, %v1252
  %v1268 = vmul.f32 %v412, %v1252
  %v1269 = vmul.f32 %v413, %v1252
  %v1270 = vadd.f32 %v1222, %v1254
  %v1271 = vadd.f32 %v1223, %v1255
  %v1272 = vadd.f32 %v1224, %v1256
  %v1273 = vadd.f32 %v1225, %v1257
  %v1274 = vadd.f32 %v1226, %v1258
  %v1275 = vadd.f32 %v1227, %v1259
  %v1276 = vadd.f32 %v1228, %v1260
  %v1277 = vadd.f32 %v1229, %v1261
  %v1278 = vadd.f32 %v1230, %v1262
  %v1279 = vadd.f32 %v1231, %v1263
  %v1280 = vadd.f32 %v1232, %v1264
  %v1281 = vadd.f32 %v1233, %v1265
  %v1282 = vadd.f32 %v1234, %v1266
  %v1283 = vadd.f32 %v1235, %v1267
  %v1284 = vadd.f32 %v1236, %v1268
  %v1285 = vadd.f32 %v1237, %v1269
  %1286 = vset.pattern.permute.xlu0 12
  %1287 = vperm.xlu0 %1286, %v29
  %v1288 = vpop.permute.xlu0 %1287
  %1290 = vset.pattern.permute.xlu0 12
  %1291 = vperm.xlu0 %1290, %v30
  %v1292 = vpop.permute.xlu0 %1291
  %1294 = vset.pattern.permute.xlu0 12
  %1295 = vperm.xlu0 %1294, %v31
  %v1296 = vpop.permute.xlu0 %1295
  %1298 = vset.pattern.permute.xlu0 12
  %1299 = vperm.xlu0 %1298, %v32
  %v1300 = vpop.permute.xlu0 %1299
  %v1302 = vmul.f32 %v163, %v1288
  %v1303 = vmul.f32 %v165, %v1288
  %v1304 = vmul.f32 %v224, %v1288
  %v1305 = vmul.f32 %v226, %v1288
  %v1306 = vmul.f32 %v167, %v1292
  %v1307 = vmul.f32 %v169, %v1292
  %v1308 = vmul.f32 %v228, %v1292
  %v1309 = vmul.f32 %v230, %v1292
  %v1310 = vmul.f32 %v173, %v1296
  %v1311 = vmul.f32 %v175, %v1296
  %v1312 = vmul.f32 %v234, %v1296
  %v1313 = vmul.f32 %v236, %v1296
  %v1314 = vmul.f32 %v177, %v1300
  %v1315 = vmul.f32 %v179, %v1300
  %v1316 = vmul.f32 %v238, %v1300
  %v1317 = vmul.f32 %v240, %v1300
  %v1318 = vadd.f32 %v1270, %v1302
  %v1319 = vadd.f32 %v1271, %v1303
  %v1320 = vadd.f32 %v1272, %v1304
  %v1321 = vadd.f32 %v1273, %v1305
  %v1322 = vadd.f32 %v1274, %v1306
  %v1323 = vadd.f32 %v1275, %v1307
  %v1324 = vadd.f32 %v1276, %v1308
  %v1325 = vadd.f32 %v1277, %v1309
  %v1326 = vadd.f32 %v1278, %v1310
  %v1327 = vadd.f32 %v1279, %v1311
  %v1328 = vadd.f32 %v1280, %v1312
  %v1329 = vadd.f32 %v1281, %v1313
  %v1330 = vadd.f32 %v1282, %v1314
  %v1331 = vadd.f32 %v1283, %v1315
  %v1332 = vadd.f32 %v1284, %v1316
  %v1333 = vadd.f32 %v1285, %v1317
  %1334 = vset.pattern.permute.xlu0 13
  %1335 = vperm.xlu0 %1334, %v29
  %v1336 = vpop.permute.xlu0 %1335
  %1338 = vset.pattern.permute.xlu0 13
  %1339 = vperm.xlu0 %1338, %v30
  %v1340 = vpop.permute.xlu0 %1339
  %1342 = vset.pattern.permute.xlu0 13
  %1343 = vperm.xlu0 %1342, %v31
  %v1344 = vpop.permute.xlu0 %1343
  %1346 = vset.pattern.permute.xlu0 13
  %1347 = vperm.xlu0 %1346, %v32
  %v1348 = vpop.permute.xlu0 %1347
  %v1350 = vmul.f32 %v479, %v1336
  %v1351 = vmul.f32 %v480, %v1336
  %v1352 = vmul.f32 %v481, %v1336
  %v1353 = vmul.f32 %v482, %v1336
  %v1354 = vmul.f32 %v483, %v1340
  %v1355 = vmul.f32 %v484, %v1340
  %v1356 = vmul.f32 %v485, %v1340
  %v1357 = vmul.f32 %v486, %v1340
  %v1358 = vmul.f32 %v487, %v1344
  %v1359 = vmul.f32 %v488, %v1344
  %v1360 = vmul.f32 %v489, %v1344
  %v1361 = vmul.f32 %v490, %v1344
  %v1362 = vmul.f32 %v491, %v1348
  %v1363 = vmul.f32 %v492, %v1348
  %v1364 = vmul.f32 %v493, %v1348
  %v1365 = vmul.f32 %v494, %v1348
  %v1366 = vadd.f32 %v1318, %v1350
  %v1367 = vadd.f32 %v1319, %v1351
  %v1368 = vadd.f32 %v1320, %v1352
  %v1369 = vadd.f32 %v1321, %v1353
  %v1370 = vadd.f32 %v1322, %v1354
  %v1371 = vadd.f32 %v1323, %v1355
  %v1372 = vadd.f32 %v1324, %v1356
  %v1373 = vadd.f32 %v1325, %v1357
  %v1374 = vadd.f32 %v1326, %v1358
  %v1375 = vadd.f32 %v1327, %v1359
  %v1376 = vadd.f32 %v1328, %v1360
  %v1377 = vadd.f32 %v1329, %v1361
  %v1378 = vadd.f32 %v1330, %v1362
  %v1379 = vadd.f32 %v1331, %v1363
  %v1380 = vadd.f32 %v1332, %v1364
  %v1381 = vadd.f32 %v1333, %v1365
  %1382 = vset.pattern.permute.xlu0 14
  %1383 = vperm.xlu0 %1382, %v29
  %v1384 = vpop.permute.xlu0 %1383
  %1386 = vset.pattern.permute.xlu0 14
  %1387 = vperm.xlu0 %1386, %v30
  %v1388 = vpop.permute.xlu0 %1387
  %1390 = vset.pattern.permute.xlu0 14
  %1391 = vperm.xlu0 %1390, %v31
  %v1392 = vpop.permute.xlu0 %1391
  %1394 = vset.pattern.permute.xlu0 14
  %1395 = vperm.xlu0 %1394, %v32
  %v1396 = vpop.permute.xlu0 %1395
  %v1398 = vmul.f32 %v560, %v1384
  %v1399 = vmul.f32 %v561, %v1384
  %v1400 = vmul.f32 %v562, %v1384
  %v1401 = vmul.f32 %v563, %v1384
  %v1402 = vmul.f32 %v564, %v1388
  %v1403 = vmul.f32 %v565, %v1388
  %v1404 = vmul.f32 %v566, %v1388
  %v1405 = vmul.f32 %v567, %v1388
  %v1406 = vmul.f32 %v568, %v1392
  %v1407 = vmul.f32 %v569, %v1392
  %v1408 = vmul.f32 %v570, %v1392
  %v1409 = vmul.f32 %v571, %v1392
  %v1410 = vmul.f32 %v572, %v1396
  %v1411 = vmul.f32 %v573, %v1396
  %v1412 = vmul.f32 %v574, %v1396
  %v1413 = vmul.f32 %v575, %v1396
  %v1414 = vadd.f32 %v1366, %v1398
  %v1415 = vadd.f32 %v1367, %v1399
  %v1416 = vadd.f32 %v1368, %v1400
  %v1417 = vadd.f32 %v1369, %v1401
  %v1418 = vadd.f32 %v1370, %v1402
  %v1419 = vadd.f32 %v1371, %v1403
  %v1420 = vadd.f32 %v1372, %v1404
  %v1421 = vadd.f32 %v1373, %v1405
  %v1422 = vadd.f32 %v1374, %v1406
  %v1423 = vadd.f32 %v1375, %v1407
  %v1424 = vadd.f32 %v1376, %v1408
  %v1425 = vadd.f32 %v1377, %v1409
  %v1426 = vadd.f32 %v1378, %v1410
  %v1427 = vadd.f32 %v1379, %v1411
  %v1428 = vadd.f32 %v1380, %v1412
  %v1429 = vadd.f32 %v1381, %v1413
  %v1430 = vadd.f32 %v1190, %v1414
  %v1431 = vadd.f32 %v1191, %v1415
  %v1432 = vadd.f32 %v1192, %v1416
  %v1433 = vadd.f32 %v1193, %v1417
  %v1434 = vadd.f32 %v1194, %v1418
  %v1435 = vadd.f32 %v1195, %v1419
  %v1436 = vadd.f32 %v1196, %v1420
  %v1437 = vadd.f32 %v1197, %v1421
  %v1438 = vadd.f32 %v1198, %v1422
  %v1439 = vadd.f32 %v1199, %v1423
  %v1440 = vadd.f32 %v1200, %v1424
  %v1441 = vadd.f32 %v1201, %v1425
  %v1442 = vadd.f32 %v1202, %v1426
  %v1443 = vadd.f32 %v1203, %v1427
  %v1444 = vadd.f32 %v1204, %v1428
  %v1445 = vadd.f32 %v1205, %v1429
  %1446 = vset.pattern.permute.xlu0 15
  %1447 = vperm.xlu0 %1446, %v29
  %v1448 = vpop.permute.xlu0 %1447
  %1450 = vset.pattern.permute.xlu0 15
  %1451 = vperm.xlu0 %1450, %v30
  %v1452 = vpop.permute.xlu0 %1451
  %1454 = vset.pattern.permute.xlu0 15
  %1455 = vperm.xlu0 %1454, %v31
  %v1456 = vpop.permute.xlu0 %1455
  %1458 = vset.pattern.permute.xlu0 15
  %1459 = vperm.xlu0 %1458, %v32
  %v1460 = vpop.permute.xlu0 %1459
  %v1462 = vmul.f32 %v317, %v1448
  %v1463 = vmul.f32 %v318, %v1448
  %v1464 = vmul.f32 %v319, %v1448
  %v1465 = vmul.f32 %v320, %v1448
  %v1466 = vmul.f32 %v321, %v1452
  %v1467 = vmul.f32 %v322, %v1452
  %v1468 = vmul.f32 %v323, %v1452
  %v1469 = vmul.f32 %v324, %v1452
  %v1470 = vmul.f32 %v325, %v1456
  %v1471 = vmul.f32 %v326, %v1456
  %v1472 = vmul.f32 %v327, %v1456
  %v1473 = vmul.f32 %v328, %v1456
  %v1474 = vmul.f32 %v329, %v1460
  %v1475 = vmul.f32 %v330, %v1460
  %v1476 = vmul.f32 %v331, %v1460
  %v1477 = vmul.f32 %v332, %v1460
  %1478 = vset.pattern.permute.xlu0 16
  %1479 = vperm.xlu0 %1478, %v29
  %v1480 = vpop.permute.xlu0 %1479
  %1482 = vset.pattern.permute.xlu0 16
  %1483 = vperm.xlu0 %1482, %v30
  %v1484 = vpop.permute.xlu0 %1483
  %1486 = vset.pattern.permute.xlu0 16
  %1487 = vperm.xlu0 %1486, %v31
  %v1488 = vpop.permute.xlu0 %1487
  %1490 = vset.pattern.permute.xlu0 16
  %1491 = vperm.xlu0 %1490, %v32
  %v1492 = vpop.permute.xlu0 %1491
  %v1494 = vmul.f32 %v398, %v1480
  %v1495 = vmul.f32 %v399, %v1480
  %v1496 = vmul.f32 %v400, %v1480
  %v1497 = vmul.f32 %v401, %v1480
  %v1498 = vmul.f32 %v402, %v1484
  %v1499 = vmul.f32 %v403, %v1484
  %v1500 = vmul.f32 %v404, %v1484
  %v1501 = vmul.f32 %v405, %v1484
  %v1502 = vmul.f32 %v406, %v1488
  %v1503 = vmul.f32 %v407, %v1488
  %v1504 = vmul.f32 %v408, %v1488
  %v1505 = vmul.f32 %v409, %v1488
  %v1506 = vmul.f32 %v410, %v1492
  %v1507 = vmul.f32 %v411, %v1492
  %v1508 = vmul.f32 %v412, %v1492
  %v1509 = vmul.f32 %v413, %v1492
  %v1510 = vadd.f32 %v1462, %v1494
  %v1511 = vadd.f32 %v1463, %v1495
  %v1512 = vadd.f32 %v1464, %v1496
  %v1513 = vadd.f32 %v1465, %v1497
  %v1514 = vadd.f32 %v1466, %v1498
  %v1515 = vadd.f32 %v1467, %v1499
  %v1516 = vadd.f32 %v1468, %v1500
  %v1517 = vadd.f32 %v1469, %v1501
  %v1518 = vadd.f32 %v1470, %v1502
  %v1519 = vadd.f32 %v1471, %v1503
  %v1520 = vadd.f32 %v1472, %v1504
  %v1521 = vadd.f32 %v1473, %v1505
  %v1522 = vadd.f32 %v1474, %v1506
  %v1523 = vadd.f32 %v1475, %v1507
  %v1524 = vadd.f32 %v1476, %v1508
  %v1525 = vadd.f32 %v1477, %v1509
  %1526 = vset.pattern.permute.xlu0 17
  %1527 = vperm.xlu0 %1526, %v29
  %v1528 = vpop.permute.xlu0 %1527
  %1530 = vset.pattern.permute.xlu0 17
  %1531 = vperm.xlu0 %1530, %v30
  %v1532 = vpop.permute.xlu0 %1531
  %1534 = vset.pattern.permute.xlu0 17
  %1535 = vperm.xlu0 %1534, %v31
  %v1536 = vpop.permute.xlu0 %1535
  %1538 = vset.pattern.permute.xlu0 17
  %1539 = vperm.xlu0 %1538, %v32
  %v1540 = vpop.permute.xlu0 %1539
  %v1542 = vmul.f32 %v163, %v1528
  %v1543 = vmul.f32 %v165, %v1528
  %v1544 = vmul.f32 %v224, %v1528
  %v1545 = vmul.f32 %v226, %v1528
  %v1546 = vmul.f32 %v167, %v1532
  %v1547 = vmul.f32 %v169, %v1532
  %v1548 = vmul.f32 %v228, %v1532
  %v1549 = vmul.f32 %v230, %v1532
  %v1550 = vmul.f32 %v173, %v1536
  %v1551 = vmul.f32 %v175, %v1536
  %v1552 = vmul.f32 %v234, %v1536
  %v1553 = vmul.f32 %v236, %v1536
  %v1554 = vmul.f32 %v177, %v1540
  %v1555 = vmul.f32 %v179, %v1540
  %v1556 = vmul.f32 %v238, %v1540
  %v1557 = vmul.f32 %v240, %v1540
  %v1558 = vadd.f32 %v1510, %v1542
  %v1559 = vadd.f32 %v1511, %v1543
  %v1560 = vadd.f32 %v1512, %v1544
  %v1561 = vadd.f32 %v1513, %v1545
  %v1562 = vadd.f32 %v1514, %v1546
  %v1563 = vadd.f32 %v1515, %v1547
  %v1564 = vadd.f32 %v1516, %v1548
  %v1565 = vadd.f32 %v1517, %v1549
  %v1566 = vadd.f32 %v1518, %v1550
  %v1567 = vadd.f32 %v1519, %v1551
  %v1568 = vadd.f32 %v1520, %v1552
  %v1569 = vadd.f32 %v1521, %v1553
  %v1570 = vadd.f32 %v1522, %v1554
  %v1571 = vadd.f32 %v1523, %v1555
  %v1572 = vadd.f32 %v1524, %v1556
  %v1573 = vadd.f32 %v1525, %v1557
  %1574 = vset.pattern.permute.xlu0 18
  %1575 = vperm.xlu0 %1574, %v29
  %v1576 = vpop.permute.xlu0 %1575
  %1578 = vset.pattern.permute.xlu0 18
  %1579 = vperm.xlu0 %1578, %v30
  %v1580 = vpop.permute.xlu0 %1579
  %1582 = vset.pattern.permute.xlu0 18
  %1583 = vperm.xlu0 %1582, %v31
  %v1584 = vpop.permute.xlu0 %1583
  %1586 = vset.pattern.permute.xlu0 18
  %1587 = vperm.xlu0 %1586, %v32
  %v1588 = vpop.permute.xlu0 %1587
  %v1590 = vmul.f32 %v479, %v1576
  %v1591 = vmul.f32 %v480, %v1576
  %v1592 = vmul.f32 %v481, %v1576
  %v1593 = vmul.f32 %v482, %v1576
  %v1594 = vmul.f32 %v483, %v1580
  %v1595 = vmul.f32 %v484, %v1580
  %v1596 = vmul.f32 %v485, %v1580
  %v1597 = vmul.f32 %v486, %v1580
  %v1598 = vmul.f32 %v487, %v1584
  %v1599 = vmul.f32 %v488, %v1584
  %v1600 = vmul.f32 %v489, %v1584
  %v1601 = vmul.f32 %v490, %v1584
  %v1602 = vmul.f32 %v491, %v1588
  %v1603 = vmul.f32 %v492, %v1588
  %v1604 = vmul.f32 %v493, %v1588
  %v1605 = vmul.f32 %v494, %v1588
  %v1606 = vadd.f32 %v1558, %v1590
  %v1607 = vadd.f32 %v1559, %v1591
  %v1608 = vadd.f32 %v1560, %v1592
  %v1609 = vadd.f32 %v1561, %v1593
  %v1610 = vadd.f32 %v1562, %v1594
  %v1611 = vadd.f32 %v1563, %v1595
  %v1612 = vadd.f32 %v1564, %v1596
  %v1613 = vadd.f32 %v1565, %v1597
  %v1614 = vadd.f32 %v1566, %v1598
  %v1615 = vadd.f32 %v1567, %v1599
  %v1616 = vadd.f32 %v1568, %v1600
  %v1617 = vadd.f32 %v1569, %v1601
  %v1618 = vadd.f32 %v1570, %v1602
  %v1619 = vadd.f32 %v1571, %v1603
  %v1620 = vadd.f32 %v1572, %v1604
  %v1621 = vadd.f32 %v1573, %v1605
  %1622 = vset.pattern.permute.xlu0 19
  %1623 = vperm.xlu0 %1622, %v29
  %v1624 = vpop.permute.xlu0 %1623
  %1626 = vset.pattern.permute.xlu0 19
  %1627 = vperm.xlu0 %1626, %v30
  %v1628 = vpop.permute.xlu0 %1627
  %1630 = vset.pattern.permute.xlu0 19
  %1631 = vperm.xlu0 %1630, %v31
  %v1632 = vpop.permute.xlu0 %1631
  %1634 = vset.pattern.permute.xlu0 19
  %1635 = vperm.xlu0 %1634, %v32
  %v1636 = vpop.permute.xlu0 %1635
  %v1638 = vmul.f32 %v560, %v1624
  %v1639 = vmul.f32 %v561, %v1624
  %v1640 = vmul.f32 %v562, %v1624
  %v1641 = vmul.f32 %v563, %v1624
  %v1642 = vmul.f32 %v564, %v1628
  %v1643 = vmul.f32 %v565, %v1628
  %v1644 = vmul.f32 %v566, %v1628
  %v1645 = vmul.f32 %v567, %v1628
  %v1646 = vmul.f32 %v568, %v1632
  %v1647 = vmul.f32 %v569, %v1632
  %v1648 = vmul.f32 %v570, %v1632
  %v1649 = vmul.f32 %v571, %v1632
  %v1650 = vmul.f32 %v572, %v1636
  %v1651 = vmul.f32 %v573, %v1636
  %v1652 = vmul.f32 %v574, %v1636
  %v1653 = vmul.f32 %v575, %v1636
  %v1654 = vadd.f32 %v1606, %v1638
  %v1655 = vadd.f32 %v1607, %v1639
  %v1656 = vadd.f32 %v1608, %v1640
  %v1657 = vadd.f32 %v1609, %v1641
  %v1658 = vadd.f32 %v1610, %v1642
  %v1659 = vadd.f32 %v1611, %v1643
  %v1660 = vadd.f32 %v1612, %v1644
  %v1661 = vadd.f32 %v1613, %v1645
  %v1662 = vadd.f32 %v1614, %v1646
  %v1663 = vadd.f32 %v1615, %v1647
  %v1664 = vadd.f32 %v1616, %v1648
  %v1665 = vadd.f32 %v1617, %v1649
  %v1666 = vadd.f32 %v1618, %v1650
  %v1667 = vadd.f32 %v1619, %v1651
  %v1668 = vadd.f32 %v1620, %v1652
  %v1669 = vadd.f32 %v1621, %v1653
  %1670 = vrot.lane.b32.xlu0 %v1654, 112
  %v1671 = vpop.permute.xlu0 %1670
  %1672 = vrot.lane.b32.xlu0 %v1658, 112
  %v1673 = vpop.permute.xlu0 %1672
  %1674 = vrot.lane.b32.xlu0 %v1662, 112
  %v1675 = vpop.permute.xlu0 %1674
  %1676 = vrot.lane.b32.xlu0 %v1666, 112
  %v1677 = vpop.permute.xlu0 %1676
  %1678 = vrot.lane.b32.xlu0 %v1655, 112
  %v1679 = vpop.permute.xlu0 %1678
  %1680 = vrot.lane.b32.xlu0 %v1659, 112
  %v1681 = vpop.permute.xlu0 %1680
  %1682 = vrot.lane.b32.xlu0 %v1663, 112
  %v1683 = vpop.permute.xlu0 %1682
  %1684 = vrot.lane.b32.xlu0 %v1667, 112
  %v1685 = vpop.permute.xlu0 %1684
  %1686 = vrot.lane.b32.xlu0 %v1656, 112
  %v1687 = vpop.permute.xlu0 %1686
  %1688 = vrot.lane.b32.xlu0 %v1660, 112
  %v1689 = vpop.permute.xlu0 %1688
  %1690 = vrot.lane.b32.xlu0 %v1664, 112
  %v1691 = vpop.permute.xlu0 %1690
  %1692 = vrot.lane.b32.xlu0 %v1668, 112
  %v1693 = vpop.permute.xlu0 %1692
  %1694 = vrot.lane.b32.xlu0 %v1657, 112
  %v1695 = vpop.permute.xlu0 %1694
  %1696 = vrot.lane.b32.xlu0 %v1661, 112
  %v1697 = vpop.permute.xlu0 %1696
  %1698 = vrot.lane.b32.xlu0 %v1665, 112
  %v1699 = vpop.permute.xlu0 %1698
  %1700 = vrot.lane.b32.xlu0 %v1669, 112
  %v1701 = vpop.permute.xlu0 %1700
  %vm1702 = vcmp.lt.s32.totalorder %v283, 112
  %v1703 = vsel %vm1702, %v1687, %v1695
  %v1704 = vsel %vm1702, %v1689, %v1697
  %v1705 = vsel %vm1702, %v1691, %v1699
  %v1706 = vsel %vm1702, %v1693, %v1701
  %v1707 = vsel %vm1702, %v1679, %v1687
  %v1708 = vsel %vm1702, %v1681, %v1689
  %v1709 = vsel %vm1702, %v1683, %v1691
  %v1710 = vsel %vm1702, %v1685, %v1693
  %v1711 = vsel %vm1702, %v1671, %v1679
  %v1712 = vsel %vm1702, %v1673, %v1681
  %v1713 = vsel %vm1702, %v1675, %v1683
  %v1714 = vsel %vm1702, %v1677, %v1685
  %v1715 = vsel %vm1702, %v1695, %v1671
  %v1716 = vsel %vm1702, %v1697, %v1673
  %v1717 = vsel %vm1702, %v1699, %v1675
  %v1718 = vsel %vm1702, %v1701, %v1677
  %v1719 = vlaneseq
  %v1720 = vshrl.u32 %v1719, 7
  %v1721 = vsub.s32 6, %v1720
  %v1722 = vrot.slane %v43, %v1721
  %v1723 = vlaneseq
  %v1724 = vshrl.u32 %v1723, 7
  %v1725 = vsub.s32 6, %v1724
  %v1726 = vrot.slane %v44, %v1725
  %v1727 = vlaneseq
  %v1728 = vshrl.u32 %v1727, 7
  %v1729 = vsub.s32 6, %v1728
  %v1730 = vrot.slane %v45, %v1729
  %v1731 = vlaneseq
  %v1732 = vshrl.u32 %v1731, 7
  %v1733 = vsub.s32 6, %v1732
  %v1734 = vrot.slane %v46, %v1733
  %v1735 = vmul.f32 %v1711, %v1722
  %v1736 = vmul.f32 %v1707, %v1726
  %v1737 = vmul.f32 %v1703, %v1730
  %v1738 = vmul.f32 %v1715, %v1734
  %v1739 = vmul.f32 %v1712, %v1722
  %v1740 = vmul.f32 %v1708, %v1726
  %v1741 = vmul.f32 %v1704, %v1730
  %v1742 = vmul.f32 %v1716, %v1734
  %v1743 = vmul.f32 %v1713, %v1722
  %v1744 = vmul.f32 %v1709, %v1726
  %v1745 = vmul.f32 %v1705, %v1730
  %v1746 = vmul.f32 %v1717, %v1734
  %v1747 = vmul.f32 %v1714, %v1722
  %v1748 = vmul.f32 %v1710, %v1726
  %v1749 = vmul.f32 %v1706, %v1730
  %v1750 = vmul.f32 %v1718, %v1734
  %v1751 = vadd.f32 %v1430, %v1735
  %v1752 = vadd.f32 %v1431, %v1736
  %v1753 = vadd.f32 %v1432, %v1737
  %v1754 = vadd.f32 %v1433, %v1738
  %v1755 = vadd.f32 %v1434, %v1739
  %v1756 = vadd.f32 %v1435, %v1740
  %v1757 = vadd.f32 %v1436, %v1741
  %v1758 = vadd.f32 %v1437, %v1742
  %v1759 = vadd.f32 %v1438, %v1743
  %v1760 = vadd.f32 %v1439, %v1744
  %v1761 = vadd.f32 %v1440, %v1745
  %v1762 = vadd.f32 %v1441, %v1746
  %v1763 = vadd.f32 %v1442, %v1747
  %v1764 = vadd.f32 %v1443, %v1748
  %v1765 = vadd.f32 %v1444, %v1749
  %v1766 = vadd.f32 %v1445, %v1750
  %1767 = vset.pattern.permute.xlu0 20
  %1768 = vperm.xlu0 %1767, %v29
  %v1769 = vpop.permute.xlu0 %1768
  %1771 = vset.pattern.permute.xlu0 20
  %1772 = vperm.xlu0 %1771, %v30
  %v1773 = vpop.permute.xlu0 %1772
  %1775 = vset.pattern.permute.xlu0 20
  %1776 = vperm.xlu0 %1775, %v31
  %v1777 = vpop.permute.xlu0 %1776
  %1779 = vset.pattern.permute.xlu0 20
  %1780 = vperm.xlu0 %1779, %v32
  %v1781 = vpop.permute.xlu0 %1780
  %v1783 = vmul.f32 %v317, %v1769
  %v1784 = vmul.f32 %v318, %v1769
  %v1785 = vmul.f32 %v319, %v1769
  %v1786 = vmul.f32 %v320, %v1769
  %v1787 = vmul.f32 %v321, %v1773
  %v1788 = vmul.f32 %v322, %v1773
  %v1789 = vmul.f32 %v323, %v1773
  %v1790 = vmul.f32 %v324, %v1773
  %v1791 = vmul.f32 %v325, %v1777
  %v1792 = vmul.f32 %v326, %v1777
  %v1793 = vmul.f32 %v327, %v1777
  %v1794 = vmul.f32 %v328, %v1777
  %v1795 = vmul.f32 %v329, %v1781
  %v1796 = vmul.f32 %v330, %v1781
  %v1797 = vmul.f32 %v331, %v1781
  %v1798 = vmul.f32 %v332, %v1781
  %1799 = vset.pattern.permute.xlu0 21
  %1800 = vperm.xlu0 %1799, %v29
  %v1801 = vpop.permute.xlu0 %1800
  %1803 = vset.pattern.permute.xlu0 21
  %1804 = vperm.xlu0 %1803, %v30
  %v1805 = vpop.permute.xlu0 %1804
  %1807 = vset.pattern.permute.xlu0 21
  %1808 = vperm.xlu0 %1807, %v31
  %v1809 = vpop.permute.xlu0 %1808
  %1811 = vset.pattern.permute.xlu0 21
  %1812 = vperm.xlu0 %1811, %v32
  %v1813 = vpop.permute.xlu0 %1812
  %v1815 = vmul.f32 %v398, %v1801
  %v1816 = vmul.f32 %v399, %v1801
  %v1817 = vmul.f32 %v400, %v1801
  %v1818 = vmul.f32 %v401, %v1801
  %v1819 = vmul.f32 %v402, %v1805
  %v1820 = vmul.f32 %v403, %v1805
  %v1821 = vmul.f32 %v404, %v1805
  %v1822 = vmul.f32 %v405, %v1805
  %v1823 = vmul.f32 %v406, %v1809
  %v1824 = vmul.f32 %v407, %v1809
  %v1825 = vmul.f32 %v408, %v1809
  %v1826 = vmul.f32 %v409, %v1809
  %v1827 = vmul.f32 %v410, %v1813
  %v1828 = vmul.f32 %v411, %v1813
  %v1829 = vmul.f32 %v412, %v1813
  %v1830 = vmul.f32 %v413, %v1813
  %v1831 = vadd.f32 %v1783, %v1815
  %v1832 = vadd.f32 %v1784, %v1816
  %v1833 = vadd.f32 %v1785, %v1817
  %v1834 = vadd.f32 %v1786, %v1818
  %v1835 = vadd.f32 %v1787, %v1819
  %v1836 = vadd.f32 %v1788, %v1820
  %v1837 = vadd.f32 %v1789, %v1821
  %v1838 = vadd.f32 %v1790, %v1822
  %v1839 = vadd.f32 %v1791, %v1823
  %v1840 = vadd.f32 %v1792, %v1824
  %v1841 = vadd.f32 %v1793, %v1825
  %v1842 = vadd.f32 %v1794, %v1826
  %v1843 = vadd.f32 %v1795, %v1827
  %v1844 = vadd.f32 %v1796, %v1828
  %v1845 = vadd.f32 %v1797, %v1829
  %v1846 = vadd.f32 %v1798, %v1830
  %1847 = vset.pattern.permute.xlu0 22
  %1848 = vperm.xlu0 %1847, %v29
  %v1849 = vpop.permute.xlu0 %1848
  %1851 = vset.pattern.permute.xlu0 22
  %1852 = vperm.xlu0 %1851, %v30
  %v1853 = vpop.permute.xlu0 %1852
  %1855 = vset.pattern.permute.xlu0 22
  %1856 = vperm.xlu0 %1855, %v31
  %v1857 = vpop.permute.xlu0 %1856
  %1859 = vset.pattern.permute.xlu0 22
  %1860 = vperm.xlu0 %1859, %v32
  %v1861 = vpop.permute.xlu0 %1860
  %v1863 = vmul.f32 %v163, %v1849
  %v1864 = vmul.f32 %v165, %v1849
  %v1865 = vmul.f32 %v224, %v1849
  %v1866 = vmul.f32 %v226, %v1849
  %v1867 = vmul.f32 %v167, %v1853
  %v1868 = vmul.f32 %v169, %v1853
  %v1869 = vmul.f32 %v228, %v1853
  %v1870 = vmul.f32 %v230, %v1853
  %v1871 = vmul.f32 %v173, %v1857
  %v1872 = vmul.f32 %v175, %v1857
  %v1873 = vmul.f32 %v234, %v1857
  %v1874 = vmul.f32 %v236, %v1857
  %v1875 = vmul.f32 %v177, %v1861
  %v1876 = vmul.f32 %v179, %v1861
  %v1877 = vmul.f32 %v238, %v1861
  %v1878 = vmul.f32 %v240, %v1861
  %v1879 = vadd.f32 %v1831, %v1863
  %v1880 = vadd.f32 %v1832, %v1864
  %v1881 = vadd.f32 %v1833, %v1865
  %v1882 = vadd.f32 %v1834, %v1866
  %v1883 = vadd.f32 %v1835, %v1867
  %v1884 = vadd.f32 %v1836, %v1868
  %v1885 = vadd.f32 %v1837, %v1869
  %v1886 = vadd.f32 %v1838, %v1870
  %v1887 = vadd.f32 %v1839, %v1871
  %v1888 = vadd.f32 %v1840, %v1872
  %v1889 = vadd.f32 %v1841, %v1873
  %v1890 = vadd.f32 %v1842, %v1874
  %v1891 = vadd.f32 %v1843, %v1875
  %v1892 = vadd.f32 %v1844, %v1876
  %v1893 = vadd.f32 %v1845, %v1877
  %v1894 = vadd.f32 %v1846, %v1878
  %1895 = vset.pattern.permute.xlu0 23
  %1896 = vperm.xlu0 %1895, %v29
  %v1897 = vpop.permute.xlu0 %1896
  %1899 = vset.pattern.permute.xlu0 23
  %1900 = vperm.xlu0 %1899, %v30
  %v1901 = vpop.permute.xlu0 %1900
  %1903 = vset.pattern.permute.xlu0 23
  %1904 = vperm.xlu0 %1903, %v31
  %v1905 = vpop.permute.xlu0 %1904
  %1907 = vset.pattern.permute.xlu0 23
  %1908 = vperm.xlu0 %1907, %v32
  %v1909 = vpop.permute.xlu0 %1908
  %v1911 = vmul.f32 %v479, %v1897
  %v1912 = vmul.f32 %v480, %v1897
  %v1913 = vmul.f32 %v481, %v1897
  %v1914 = vmul.f32 %v482, %v1897
  %v1915 = vmul.f32 %v483, %v1901
  %v1916 = vmul.f32 %v484, %v1901
  %v1917 = vmul.f32 %v485, %v1901
  %v1918 = vmul.f32 %v486, %v1901
  %v1919 = vmul.f32 %v487, %v1905
  %v1920 = vmul.f32 %v488, %v1905
  %v1921 = vmul.f32 %v489, %v1905
  %v1922 = vmul.f32 %v490, %v1905
  %v1923 = vmul.f32 %v491, %v1909
  %v1924 = vmul.f32 %v492, %v1909
  %v1925 = vmul.f32 %v493, %v1909
  %v1926 = vmul.f32 %v494, %v1909
  %v1927 = vadd.f32 %v1879, %v1911
  %v1928 = vadd.f32 %v1880, %v1912
  %v1929 = vadd.f32 %v1881, %v1913
  %v1930 = vadd.f32 %v1882, %v1914
  %v1931 = vadd.f32 %v1883, %v1915
  %v1932 = vadd.f32 %v1884, %v1916
  %v1933 = vadd.f32 %v1885, %v1917
  %v1934 = vadd.f32 %v1886, %v1918
  %v1935 = vadd.f32 %v1887, %v1919
  %v1936 = vadd.f32 %v1888, %v1920
  %v1937 = vadd.f32 %v1889, %v1921
  %v1938 = vadd.f32 %v1890, %v1922
  %v1939 = vadd.f32 %v1891, %v1923
  %v1940 = vadd.f32 %v1892, %v1924
  %v1941 = vadd.f32 %v1893, %v1925
  %v1942 = vadd.f32 %v1894, %v1926
  %1943 = vset.pattern.permute.xlu0 24
  %1944 = vperm.xlu0 %1943, %v29
  %v1945 = vpop.permute.xlu0 %1944
  %1947 = vset.pattern.permute.xlu0 24
  %1948 = vperm.xlu0 %1947, %v30
  %v1949 = vpop.permute.xlu0 %1948
  %1951 = vset.pattern.permute.xlu0 24
  %1952 = vperm.xlu0 %1951, %v31
  %v1953 = vpop.permute.xlu0 %1952
  %1955 = vset.pattern.permute.xlu0 24
  %1956 = vperm.xlu0 %1955, %v32
  %v1957 = vpop.permute.xlu0 %1956
  %v1959 = vmul.f32 %v560, %v1945
  %v1960 = vmul.f32 %v561, %v1945
  %v1961 = vmul.f32 %v562, %v1945
  %v1962 = vmul.f32 %v563, %v1945
  %v1963 = vmul.f32 %v564, %v1949
  %v1964 = vmul.f32 %v565, %v1949
  %v1965 = vmul.f32 %v566, %v1949
  %v1966 = vmul.f32 %v567, %v1949
  %v1967 = vmul.f32 %v568, %v1953
  %v1968 = vmul.f32 %v569, %v1953
  %v1969 = vmul.f32 %v570, %v1953
  %v1970 = vmul.f32 %v571, %v1953
  %v1971 = vmul.f32 %v572, %v1957
  %v1972 = vmul.f32 %v573, %v1957
  %v1973 = vmul.f32 %v574, %v1957
  %v1974 = vmul.f32 %v575, %v1957
  %v1975 = vadd.f32 %v1927, %v1959
  %v1976 = vadd.f32 %v1928, %v1960
  %v1977 = vadd.f32 %v1929, %v1961
  %v1978 = vadd.f32 %v1930, %v1962
  %v1979 = vadd.f32 %v1931, %v1963
  %v1980 = vadd.f32 %v1932, %v1964
  %v1981 = vadd.f32 %v1933, %v1965
  %v1982 = vadd.f32 %v1934, %v1966
  %v1983 = vadd.f32 %v1935, %v1967
  %v1984 = vadd.f32 %v1936, %v1968
  %v1985 = vadd.f32 %v1937, %v1969
  %v1986 = vadd.f32 %v1938, %v1970
  %v1987 = vadd.f32 %v1939, %v1971
  %v1988 = vadd.f32 %v1940, %v1972
  %v1989 = vadd.f32 %v1941, %v1973
  %v1990 = vadd.f32 %v1942, %v1974
  %1991 = vrot.lane.b32.xlu0 %v1975, 96
  %v1992 = vpop.permute.xlu0 %1991
  %1993 = vrot.lane.b32.xlu0 %v1979, 96
  %v1994 = vpop.permute.xlu0 %1993
  %1995 = vrot.lane.b32.xlu0 %v1983, 96
  %v1996 = vpop.permute.xlu0 %1995
  %1997 = vrot.lane.b32.xlu0 %v1987, 96
  %v1998 = vpop.permute.xlu0 %1997
  %1999 = vrot.lane.b32.xlu0 %v1976, 96
  %v2000 = vpop.permute.xlu0 %1999
  %2001 = vrot.lane.b32.xlu0 %v1980, 96
  %v2002 = vpop.permute.xlu0 %2001
  %2003 = vrot.lane.b32.xlu0 %v1984, 96
  %v2004 = vpop.permute.xlu0 %2003
  %2005 = vrot.lane.b32.xlu0 %v1988, 96
  %v2006 = vpop.permute.xlu0 %2005
  %2007 = vrot.lane.b32.xlu0 %v1977, 96
  %v2008 = vpop.permute.xlu0 %2007
  %2009 = vrot.lane.b32.xlu0 %v1981, 96
  %v2010 = vpop.permute.xlu0 %2009
  %2011 = vrot.lane.b32.xlu0 %v1985, 96
  %v2012 = vpop.permute.xlu0 %2011
  %2013 = vrot.lane.b32.xlu0 %v1989, 96
  %v2014 = vpop.permute.xlu0 %2013
  %2015 = vrot.lane.b32.xlu0 %v1978, 96
  %v2016 = vpop.permute.xlu0 %2015
  %2017 = vrot.lane.b32.xlu0 %v1982, 96
  %v2018 = vpop.permute.xlu0 %2017
  %2019 = vrot.lane.b32.xlu0 %v1986, 96
  %v2020 = vpop.permute.xlu0 %2019
  %2021 = vrot.lane.b32.xlu0 %v1990, 96
  %v2022 = vpop.permute.xlu0 %2021
  %vm2023 = vcmp.lt.s32.totalorder %v283, 96
  %v2024 = vsel %vm2023, %v2008, %v2016
  %v2025 = vsel %vm2023, %v2010, %v2018
  %v2026 = vsel %vm2023, %v2012, %v2020
  %v2027 = vsel %vm2023, %v2014, %v2022
  %v2028 = vsel %vm2023, %v2000, %v2008
  %v2029 = vsel %vm2023, %v2002, %v2010
  %v2030 = vsel %vm2023, %v2004, %v2012
  %v2031 = vsel %vm2023, %v2006, %v2014
  %v2032 = vsel %vm2023, %v1992, %v2000
  %v2033 = vsel %vm2023, %v1994, %v2002
  %v2034 = vsel %vm2023, %v1996, %v2004
  %v2035 = vsel %vm2023, %v1998, %v2006
  %v2036 = vsel %vm2023, %v2016, %v1992
  %v2037 = vsel %vm2023, %v2018, %v1994
  %v2038 = vsel %vm2023, %v2020, %v1996
  %v2039 = vsel %vm2023, %v2022, %v1998
  %v2040 = vlaneseq
  %v2041 = vshrl.u32 %v2040, 7
  %v2042 = vsub.s32 7, %v2041
  %v2043 = vrot.slane %v43, %v2042
  %v2044 = vlaneseq
  %v2045 = vshrl.u32 %v2044, 7
  %v2046 = vsub.s32 7, %v2045
  %v2047 = vrot.slane %v44, %v2046
  %v2048 = vlaneseq
  %v2049 = vshrl.u32 %v2048, 7
  %v2050 = vsub.s32 7, %v2049
  %v2051 = vrot.slane %v45, %v2050
  %v2052 = vlaneseq
  %v2053 = vshrl.u32 %v2052, 7
  %v2054 = vsub.s32 7, %v2053
  %v2055 = vrot.slane %v46, %v2054
  %v2056 = vmul.f32 %v2032, %v2043
  %v2057 = vmul.f32 %v2028, %v2047
  %v2058 = vmul.f32 %v2024, %v2051
  %v2059 = vmul.f32 %v2036, %v2055
  %v2060 = vmul.f32 %v2033, %v2043
  %v2061 = vmul.f32 %v2029, %v2047
  %v2062 = vmul.f32 %v2025, %v2051
  %v2063 = vmul.f32 %v2037, %v2055
  %v2064 = vmul.f32 %v2034, %v2043
  %v2065 = vmul.f32 %v2030, %v2047
  %v2066 = vmul.f32 %v2026, %v2051
  %v2067 = vmul.f32 %v2038, %v2055
  %v2068 = vmul.f32 %v2035, %v2043
  %v2069 = vmul.f32 %v2031, %v2047
  %v2070 = vmul.f32 %v2027, %v2051
  %v2071 = vmul.f32 %v2039, %v2055
  %v2072 = vadd.f32 %v1751, %v2056
  %v2073 = vadd.f32 %v1752, %v2057
  %v2074 = vadd.f32 %v1753, %v2058
  %v2075 = vadd.f32 %v1754, %v2059
  %v2076 = vadd.f32 %v1755, %v2060
  %v2077 = vadd.f32 %v1756, %v2061
  %v2078 = vadd.f32 %v1757, %v2062
  %v2079 = vadd.f32 %v1758, %v2063
  %v2080 = vadd.f32 %v1759, %v2064
  %v2081 = vadd.f32 %v1760, %v2065
  %v2082 = vadd.f32 %v1761, %v2066
  %v2083 = vadd.f32 %v1762, %v2067
  %v2084 = vadd.f32 %v1763, %v2068
  %v2085 = vadd.f32 %v1764, %v2069
  %v2086 = vadd.f32 %v1765, %v2070
  %v2087 = vadd.f32 %v1766, %v2071
  %2088 = vset.pattern.permute.xlu0 25
  %2089 = vperm.xlu0 %2088, %v29
  %v2090 = vpop.permute.xlu0 %2089
  %2092 = vset.pattern.permute.xlu0 25
  %2093 = vperm.xlu0 %2092, %v30
  %v2094 = vpop.permute.xlu0 %2093
  %2096 = vset.pattern.permute.xlu0 25
  %2097 = vperm.xlu0 %2096, %v31
  %v2098 = vpop.permute.xlu0 %2097
  %2100 = vset.pattern.permute.xlu0 25
  %2101 = vperm.xlu0 %2100, %v32
  %v2102 = vpop.permute.xlu0 %2101
  %v2104 = vadd.f32 %v2072, %v2090
  %v2105 = vadd.f32 %v2073, %v2090
  %v2106 = vadd.f32 %v2074, %v2090
  %v2107 = vadd.f32 %v2075, %v2090
  %v2108 = vadd.f32 %v2076, %v2094
  %v2109 = vadd.f32 %v2077, %v2094
  %v2110 = vadd.f32 %v2078, %v2094
  %v2111 = vadd.f32 %v2079, %v2094
  %v2112 = vadd.f32 %v2080, %v2098
  %v2113 = vadd.f32 %v2081, %v2098
  %v2114 = vadd.f32 %v2082, %v2098
  %v2115 = vadd.f32 %v2083, %v2098
  %v2116 = vadd.f32 %v2084, %v2102
  %v2117 = vadd.f32 %v2085, %v2102
  %v2118 = vadd.f32 %v2086, %v2102
  %v2119 = vadd.f32 %v2087, %v2102
  %vm2128 = vcmask 1045504
  %v2129 = vrot.slane %v2108, 2
  %v2130 = vrot.slane %v2112, 2
  %v2131 = vsel %vm2128, %v2129, %v2130
  %v2132 = vrot.slane %v2109, 2
  %v2133 = vrot.slane %v2113, 2
  %v2134 = vsel %vm2128, %v2132, %v2133
  %v2135 = vrot.slane %v2110, 2
  %v2136 = vrot.slane %v2114, 2
  %v2137 = vsel %vm2128, %v2135, %v2136
  %v2138 = vrot.slane %v2111, 2
  %v2139 = vrot.slane %v2115, 2
  %v2140 = vsel %vm2128, %v2138, %v2139
  %v2149 = vmul.f32 %v2104, %v2131
  %v2150 = vmul.f32 %v2105, %v2134
  %v2151 = vmul.f32 %v2106, %v2137
  %v2152 = vmul.f32 %v2107, %v2140
  %v2153 = vmul.f32 %v2108, %v2130
  %v2154 = vmul.f32 %v2109, %v2133
  %v2155 = vmul.f32 %v2110, %v2136
  %v2156 = vmul.f32 %v2111, %v2139
  %v2157 = vpack.c.bf16 %v34, %v33
  %v2158 = vpack.c.bf16 %v2153, %v2149
  %v2159 = vpack.c.bf16 %v2154, %v2150
  %v2160 = vpack.c.bf16 %v2155, %v2151
  %v2161 = vpack.c.bf16 %v2156, %v2152
  %2163 = vset.pattern.permute.xlu0 10
  %2164 = vperm.xlu0 %2163, %v33
  %v2165 = vpop.permute.xlu0 %2164
  %2168 = vset.pattern.permute.xlu0 10
  %2169 = vperm.xlu0 %2168, %v34
  %v2170 = vpop.permute.xlu0 %2169
  %vm2172 = vcmask 80896
  %v2174 = vsel %vm2172, %v2157, 0
  %vm2176 = vcmask 1044480
  %v2178 = vsel %vm2176, %v2158, 0
  %v2181 = vsel %vm2176, %v2159, 0
  %v2184 = vsel %vm2176, %v2160, 0
  %v2187 = vsel %vm2176, %v2161, 0
  %2189 = vmatprep.subr.bf16.mxu0 %v2181
  %2190 = vmatpush1.bf16.msra.mxu0 %v2178
  %2191 = vmatprep.subr.bf16.mxu0 0
  %2192 = vmatpush1.bf16.msra.mxu0 0
  %2193 = vmatprep.subr.bf16.mxu0 0
  %2194 = vmatpush1.bf16.msra.mxu0 0
  %2195 = vmatprep.subr.bf16.mxu0 0
  %2196 = vmatpush1.bf16.msra.mxu0 0
  %2197 = vmatprep.subr.bf16.mxu0 0
  %2198 = vmatpush1.bf16.msra.mxu0 0
  %2199 = vmatprep.subr.bf16.mxu0 0
  %2200 = vmatpush1.bf16.msra.mxu0 0
  %2201 = vmatprep.subr.bf16.mxu0 0
  %2202 = vmatpush1.bf16.msra.mxu0 0
  %2203 = vmatprep.subr.bf16.mxu0 0
  %2204 = vmatpush1.bf16.msra.mxu0 0
  %2205 = vmatprep.subr.bf16.mxu0 0
  %2206 = vmatpush1.bf16.msra.mxu0 0
  %2207 = vmatprep.subr.bf16.mxu0 0
  %2208 = vmatpush1.bf16.msra.mxu0 0
  %2209 = vmatprep.subr.bf16.mxu0 0
  %2210 = vmatpush1.bf16.msra.mxu0 0
  %2211 = vmatprep.subr.bf16.mxu0 0
  %2212 = vmatpush1.bf16.msra.mxu0 0
  %2213 = vmatprep.subr.bf16.mxu0 0
  %2214 = vmatpush1.bf16.msra.mxu0 0
  %2215 = vmatprep.subr.bf16.mxu0 0
  %2216 = vmatpush1.bf16.msra.mxu0 0
  %2217 = vmatprep.subr.bf16.mxu0 0
  %2218 = vmatpush1.bf16.msra.mxu0 0
  %2219 = vmatprep.subr.bf16.mxu0 0
  %2220 = vmatpush1.bf16.msra.mxu0 0
  %2221 = vmatprep.mubr.bf16.mxu0 0
  %2222 = vmatmul.mubr.bf16.gmra.mrb[0].mxu0 %v2174
  %v2223 = vpop.f32.mrb[0].mxu0
  %v2224 = vadd.f32 %v2165, %v2223
  %v2225 = vpop.f32.mrb[0].mxu0
  %v2226 = vadd.f32 %v2165, %v2225
  %v2227 = vpop.f32.mrb[0].mxu0
  %v2228 = vadd.f32 %v2170, %v2227
  %v2229 = vpop.f32.mrb[0].mxu0
  %v2230 = vadd.f32 %v2170, %v2229
  %2231 = vdwg.mxu0
  %2232 = vmatprep.subr.bf16.mxu0 %v2187
  %2233 = vmatpush1.bf16.msra.mxu0 %v2184
  %2234 = vmatprep.subr.bf16.mxu0 0
  %2235 = vmatpush1.bf16.msra.mxu0 0
  %2236 = vmatprep.subr.bf16.mxu0 0
  %2237 = vmatpush1.bf16.msra.mxu0 0
  %2238 = vmatprep.subr.bf16.mxu0 0
  %2239 = vmatpush1.bf16.msra.mxu0 0
  %2240 = vmatprep.subr.bf16.mxu0 0
  %2241 = vmatpush1.bf16.msra.mxu0 0
  %2242 = vmatprep.subr.bf16.mxu0 0
  %2243 = vmatpush1.bf16.msra.mxu0 0
  %2244 = vmatprep.subr.bf16.mxu0 0
  %2245 = vmatpush1.bf16.msra.mxu0 0
  %2246 = vmatprep.subr.bf16.mxu0 0
  %2247 = vmatpush1.bf16.msra.mxu0 0
  %2248 = vmatprep.subr.bf16.mxu0 0
  %2249 = vmatpush1.bf16.msra.mxu0 0
  %2250 = vmatprep.subr.bf16.mxu0 0
  %2251 = vmatpush1.bf16.msra.mxu0 0
  %2252 = vmatprep.subr.bf16.mxu0 0
  %2253 = vmatpush1.bf16.msra.mxu0 0
  %2254 = vmatprep.subr.bf16.mxu0 0
  %2255 = vmatpush1.bf16.msra.mxu0 0
  %2256 = vmatprep.subr.bf16.mxu0 0
  %2257 = vmatpush1.bf16.msra.mxu0 0
  %2258 = vmatprep.subr.bf16.mxu0 0
  %2259 = vmatpush1.bf16.msra.mxu0 0
  %2260 = vmatprep.subr.bf16.mxu0 0
  %2261 = vmatpush1.bf16.msra.mxu0 0
  %2262 = vmatprep.subr.bf16.mxu0 0
  %2263 = vmatpush1.bf16.msra.mxu0 0
  %2264 = vmatprep.mubr.bf16.mxu0 0
  %2265 = vmatmul.mubr.bf16.gmra.mrb[0].mxu0 %v2174
  %v2266 = vpop.f32.mrb[0].mxu0
  %v2267 = vadd.f32 %v2165, %v2266
  %v2268 = vpop.f32.mrb[0].mxu0
  %v2269 = vadd.f32 %v2165, %v2268
  %v2270 = vpop.f32.mrb[0].mxu0
  %v2271 = vadd.f32 %v2170, %v2270
  %v2272 = vpop.f32.mrb[0].mxu0
  %v2273 = vadd.f32 %v2170, %v2272
  %2274 = vdwg.mxu0
  %v2275 = vsub.f32 0.0, %v2224
  %v2276 = vsub.f32 0.0, %v2226
  %v2277 = vsub.f32 0.0, %v2267
  %v2278 = vsub.f32 0.0, %v2269
  %v2279 = vsub.f32 0.0, %v2228
  %v2280 = vsub.f32 0.0, %v2230
  %v2281 = vsub.f32 0.0, %v2271
  %v2282 = vsub.f32 0.0, %v2273
  %v2283 = vmul.f32 %v2275, 1.442695
  %v2284 = vpow.pop %v2283
  %v2285 = vmul.f32 %v2276, 1.442695
  %v2286 = vpow.pop %v2285
  %v2287 = vmul.f32 %v2277, 1.442695
  %v2288 = vpow.pop %v2287
  %v2289 = vmul.f32 %v2278, 1.442695
  %v2290 = vpow.pop %v2289
  %v2291 = vmul.f32 %v2279, 1.442695
  %v2292 = vpow.pop %v2291
  %v2293 = vmul.f32 %v2280, 1.442695
  %v2294 = vpow.pop %v2293
  %v2295 = vmul.f32 %v2281, 1.442695
  %v2296 = vpow.pop %v2295
  %v2297 = vmul.f32 %v2282, 1.442695
  %v2298 = vpow.pop %v2297
  %v2299 = vadd.f32 %v2284, 1.0
  %v2300 = vadd.f32 %v2286, 1.0
  %v2301 = vadd.f32 %v2288, 1.0
  %v2302 = vadd.f32 %v2290, 1.0
  %v2303 = vadd.f32 %v2292, 1.0
  %v2304 = vadd.f32 %v2294, 1.0
  %v2305 = vadd.f32 %v2296, 1.0
  %v2306 = vadd.f32 %v2298, 1.0
  %v2307 = vrcp.pop %v2299
  %v2308 = vrcp.pop %v2300
  %v2309 = vrcp.pop %v2301
  %v2310 = vrcp.pop %v2302
  %v2311 = vrcp.pop %v2303
  %v2312 = vrcp.pop %v2304
  %v2313 = vrcp.pop %v2305
  %v2314 = vrcp.pop %v2306
  %v2315 = vmul.f32 %v2224, %v2307
  %v2316 = vmul.f32 %v2226, %v2308
  %v2317 = vmul.f32 %v2267, %v2309
  %v2318 = vmul.f32 %v2269, %v2310
  %v2319 = vmul.f32 %v2228, %v2311
  %v2320 = vmul.f32 %v2230, %v2312
  %v2321 = vmul.f32 %v2271, %v2313
  %v2322 = vmul.f32 %v2273, %v2314
  %v2323 = vpack.c.bf16 %v36, %v35
  %v2324 = vpack.c.bf16 %v2319, %v2315
  %v2325 = vpack.c.bf16 %v2320, %v2316
  %v2326 = vpack.c.bf16 %v2321, %v2317
  %v2327 = vpack.c.bf16 %v2322, %v2318
  %2329 = vset.pattern.permute.xlu0 10
  %2330 = vperm.xlu0 %2329, %v35
  %v2331 = vpop.permute.xlu0 %2330
  %2334 = vset.pattern.permute.xlu0 10
  %2335 = vperm.xlu0 %2334, %v36
  %v2336 = vpop.permute.xlu0 %2335
  %v2339 = vsel %vm2172, %v2323, 0
  %v2342 = vsel %vm2176, %v2324, 0
  %v2345 = vsel %vm2176, %v2325, 0
  %v2348 = vsel %vm2176, %v2326, 0
  %v2351 = vsel %vm2176, %v2327, 0
  %2353 = vmatprep.subr.bf16.mxu0 %v2345
  %2354 = vmatpush1.bf16.msra.mxu0 %v2342
  %2355 = vmatprep.subr.bf16.mxu0 0
  %2356 = vmatpush1.bf16.msra.mxu0 0
  %2357 = vmatprep.subr.bf16.mxu0 0
  %2358 = vmatpush1.bf16.msra.mxu0 0
  %2359 = vmatprep.subr.bf16.mxu0 0
  %2360 = vmatpush1.bf16.msra.mxu0 0
  %2361 = vmatprep.subr.bf16.mxu0 0
  %2362 = vmatpush1.bf16.msra.mxu0 0
  %2363 = vmatprep.subr.bf16.mxu0 0
  %2364 = vmatpush1.bf16.msra.mxu0 0
  %2365 = vmatprep.subr.bf16.mxu0 0
  %2366 = vmatpush1.bf16.msra.mxu0 0
  %2367 = vmatprep.subr.bf16.mxu0 0
  %2368 = vmatpush1.bf16.msra.mxu0 0
  %2369 = vmatprep.subr.bf16.mxu0 0
  %2370 = vmatpush1.bf16.msra.mxu0 0
  %2371 = vmatprep.subr.bf16.mxu0 0
  %2372 = vmatpush1.bf16.msra.mxu0 0
  %2373 = vmatprep.subr.bf16.mxu0 0
  %2374 = vmatpush1.bf16.msra.mxu0 0
  %2375 = vmatprep.subr.bf16.mxu0 0
  %2376 = vmatpush1.bf16.msra.mxu0 0
  %2377 = vmatprep.subr.bf16.mxu0 0
  %2378 = vmatpush1.bf16.msra.mxu0 0
  %2379 = vmatprep.subr.bf16.mxu0 0
  %2380 = vmatpush1.bf16.msra.mxu0 0
  %2381 = vmatprep.subr.bf16.mxu0 0
  %2382 = vmatpush1.bf16.msra.mxu0 0
  %2383 = vmatprep.subr.bf16.mxu0 0
  %2384 = vmatpush1.bf16.msra.mxu0 0
  %2385 = vmatprep.mubr.bf16.mxu0 0
  %2386 = vmatmul.mubr.bf16.gmra.mrb[0].mxu0 %v2339
  %v2387 = vpop.f32.mrb[0].mxu0
  %v2388 = vadd.f32 %v2331, %v2387
  %v2389 = vpop.f32.mrb[0].mxu0
  %v2390 = vadd.f32 %v2331, %v2389
  %v2391 = vpop.f32.mrb[0].mxu0
  %v2392 = vadd.f32 %v2336, %v2391
  %v2393 = vpop.f32.mrb[0].mxu0
  %v2394 = vadd.f32 %v2336, %v2393
  %2395 = vdwg.mxu0
  %2396 = vmatprep.subr.bf16.mxu0 %v2351
  %2397 = vmatpush1.bf16.msra.mxu0 %v2348
  %2398 = vmatprep.subr.bf16.mxu0 0
  %2399 = vmatpush1.bf16.msra.mxu0 0
  %2400 = vmatprep.subr.bf16.mxu0 0
  %2401 = vmatpush1.bf16.msra.mxu0 0
  %2402 = vmatprep.subr.bf16.mxu0 0
  %2403 = vmatpush1.bf16.msra.mxu0 0
  %2404 = vmatprep.subr.bf16.mxu0 0
  %2405 = vmatpush1.bf16.msra.mxu0 0
  %2406 = vmatprep.subr.bf16.mxu0 0
  %2407 = vmatpush1.bf16.msra.mxu0 0
  %2408 = vmatprep.subr.bf16.mxu0 0
  %2409 = vmatpush1.bf16.msra.mxu0 0
  %2410 = vmatprep.subr.bf16.mxu0 0
  %2411 = vmatpush1.bf16.msra.mxu0 0
  %2412 = vmatprep.subr.bf16.mxu0 0
  %2413 = vmatpush1.bf16.msra.mxu0 0
  %2414 = vmatprep.subr.bf16.mxu0 0
  %2415 = vmatpush1.bf16.msra.mxu0 0
  %2416 = vmatprep.subr.bf16.mxu0 0
  %2417 = vmatpush1.bf16.msra.mxu0 0
  %2418 = vmatprep.subr.bf16.mxu0 0
  %2419 = vmatpush1.bf16.msra.mxu0 0
  %2420 = vmatprep.subr.bf16.mxu0 0
  %2421 = vmatpush1.bf16.msra.mxu0 0
  %2422 = vmatprep.subr.bf16.mxu0 0
  %2423 = vmatpush1.bf16.msra.mxu0 0
  %2424 = vmatprep.subr.bf16.mxu0 0
  %2425 = vmatpush1.bf16.msra.mxu0 0
  %2426 = vmatprep.subr.bf16.mxu0 0
  %2427 = vmatpush1.bf16.msra.mxu0 0
  %2428 = vmatprep.mubr.bf16.mxu0 0
  %2429 = vmatmul.mubr.bf16.gmra.mrb[0].mxu0 %v2339
  %v2430 = vpop.f32.mrb[0].mxu0
  %v2431 = vadd.f32 %v2331, %v2430
  %v2432 = vpop.f32.mrb[0].mxu0
  %v2433 = vadd.f32 %v2331, %v2432
  %v2434 = vpop.f32.mrb[0].mxu0
  %v2435 = vadd.f32 %v2336, %v2434
  %v2436 = vpop.f32.mrb[0].mxu0
  %v2437 = vadd.f32 %v2336, %v2436
  %2438 = vdwg.mxu0
  %v2439 = vmul.f32 %v2388, 0.70710677
  %v2440 = vmul.f32 %v2390, 0.70710677
  %v2441 = vmul.f32 %v2431, 0.70710677
  %v2442 = vmul.f32 %v2433, 0.70710677
  %v2443 = vmul.f32 %v2392, 0.70710677
  %v2444 = vmul.f32 %v2394, 0.70710677
  %v2445 = vmul.f32 %v2435, 0.70710677
  %v2446 = vmul.f32 %v2437, 0.70710677
  %v2447 = vtanh.pop %v2439
  %v2448 = vtanh.pop %v2440
  %v2449 = vtanh.pop %v2441
  %v2450 = vtanh.pop %v2442
  %v2451 = vtanh.pop %v2443
  %v2452 = vtanh.pop %v2444
  %v2453 = vtanh.pop %v2445
  %v2454 = vtanh.pop %v2446
  %vm2459 = vcmask 1043456
  %v2460 = vrot.slane %v2112, 4
  %v2461 = vrot.slane %v2116, 4
  %v2462 = vsel %vm2459, %v2460, %v2461
  %v2463 = vrot.slane %v2113, 4
  %v2464 = vrot.slane %v2117, 4
  %v2465 = vsel %vm2459, %v2463, %v2464
  %v2466 = vrot.slane %v2114, 4
  %v2467 = vrot.slane %v2118, 4
  %v2468 = vsel %vm2459, %v2466, %v2467
  %v2469 = vrot.slane %v2115, 4
  %v2470 = vrot.slane %v2119, 4
  %v2471 = vsel %vm2459, %v2469, %v2470
  %v2480 = vmul.f32 %v2447, %v2462
  %v2481 = vmul.f32 %v2448, %v2465
  %v2482 = vmul.f32 %v2449, %v2468
  %v2483 = vmul.f32 %v2450, %v2471
  %v2484 = vmul.f32 %v2451, %v2461
  %v2485 = vmul.f32 %v2452, %v2464
  %v2486 = vmul.f32 %v2453, %v2467
  %v2487 = vmul.f32 %v2454, %v2470
  %v2488 = vpack.c.bf16 %v41, %v40
  %v2489 = vpack.c.bf16 %v42, %v42
  %v2490 = vpack.c.bf16 %v2484, %v2480
  %v2491 = vpack.c.bf16 %v2485, %v2481
  %v2492 = vpack.c.bf16 %v2486, %v2482
  %v2493 = vpack.c.bf16 %v2487, %v2483
  %v2495 = vsel %vm2172, %v2488, 0
  %v2498 = vsel %vm2172, %v2489, 0
  %v2501 = vsel %vm2176, %v2490, 0
  %v2504 = vsel %vm2176, %v2491, 0
  %v2507 = vsel %vm2176, %v2492, 0
  %v2510 = vsel %vm2176, %v2493, 0
  %2512 = vmatprep.subr.bf16.mxu0 %v2504
  %2513 = vmatpush1.bf16.msra.mxu0 %v2501
  %2514 = vmatprep.subr.bf16.mxu0 0
  %2515 = vmatpush1.bf16.msra.mxu0 0
  %2516 = vmatprep.subr.bf16.mxu0 0
  %2517 = vmatpush1.bf16.msra.mxu0 0
  %2518 = vmatprep.subr.bf16.mxu0 0
  %2519 = vmatpush1.bf16.msra.mxu0 0
  %2520 = vmatprep.subr.bf16.mxu0 0
  %2521 = vmatpush1.bf16.msra.mxu0 0
  %2522 = vmatprep.subr.bf16.mxu0 0
  %2523 = vmatpush1.bf16.msra.mxu0 0
  %2524 = vmatprep.subr.bf16.mxu0 0
  %2525 = vmatpush1.bf16.msra.mxu0 0
  %2526 = vmatprep.subr.bf16.mxu0 0
  %2527 = vmatpush1.bf16.msra.mxu0 0
  %2528 = vmatprep.subr.bf16.mxu0 0
  %2529 = vmatpush1.bf16.msra.mxu0 0
  %2530 = vmatprep.subr.bf16.mxu0 0
  %2531 = vmatpush1.bf16.msra.mxu0 0
  %2532 = vmatprep.subr.bf16.mxu0 0
  %2533 = vmatpush1.bf16.msra.mxu0 0
  %2534 = vmatprep.subr.bf16.mxu0 0
  %2535 = vmatpush1.bf16.msra.mxu0 0
  %2536 = vmatprep.subr.bf16.mxu0 0
  %2537 = vmatpush1.bf16.msra.mxu0 0
  %2538 = vmatprep.subr.bf16.mxu0 0
  %2539 = vmatpush1.bf16.msra.mxu0 0
  %2540 = vmatprep.subr.bf16.mxu0 0
  %2541 = vmatpush1.bf16.msra.mxu0 0
  %2542 = vmatprep.subr.bf16.mxu0 0
  %2543 = vmatpush1.bf16.msra.mxu0 0
  %2544 = vmatprep.mubr.bf16.mxu0 0
  %2545 = vmatmul.mubr.bf16.gmra.mrb[0].mxu0 %v2495
  %v2546 = vpop.f32.mrb[0].mxu0
  %v2547 = vadd.f32 0.0, %v2546
  %v2548 = vpop.f32.mrb[0].mxu0
  %v2549 = vadd.f32 0.0, %v2548
  %v2550 = vpop.f32.mrb[0].mxu0
  %v2551 = vadd.f32 0.0, %v2550
  %v2552 = vpop.f32.mrb[0].mxu0
  %v2553 = vadd.f32 0.0, %v2552
  %2554 = vmatprep.mubr.bf16.mxu0 0
  %2555 = vmatmul.mubr.bf16.gmra.mrb[0].mxu0 %v2498
  %v2556 = vpop.f32.mrb[0].mxu0
  %v2557 = vadd.f32 0.0, %v2556
  %v2558 = vpop.f32.mrb[0].mxu0
  %v2559 = vadd.f32 0.0, %v2558
  %v2560 = vpop.f32.mrb[0].mxu0
  %v2561 = vpop.f32.mrb[0].mxu0
  %2562 = vdwg.mxu0
  %2563 = vmatprep.subr.bf16.mxu0 %v2510
  %2564 = vmatpush1.bf16.msra.mxu0 %v2507
  %2565 = vmatprep.subr.bf16.mxu0 0
  %2566 = vmatpush1.bf16.msra.mxu0 0
  %2567 = vmatprep.subr.bf16.mxu0 0
  %2568 = vmatpush1.bf16.msra.mxu0 0
  %2569 = vmatprep.subr.bf16.mxu0 0
  %2570 = vmatpush1.bf16.msra.mxu0 0
  %2571 = vmatprep.subr.bf16.mxu0 0
  %2572 = vmatpush1.bf16.msra.mxu0 0
  %2573 = vmatprep.subr.bf16.mxu0 0
  %2574 = vmatpush1.bf16.msra.mxu0 0
  %2575 = vmatprep.subr.bf16.mxu0 0
  %2576 = vmatpush1.bf16.msra.mxu0 0
  %2577 = vmatprep.subr.bf16.mxu0 0
  %2578 = vmatpush1.bf16.msra.mxu0 0
  %2579 = vmatprep.subr.bf16.mxu0 0
  %2580 = vmatpush1.bf16.msra.mxu0 0
  %2581 = vmatprep.subr.bf16.mxu0 0
  %2582 = vmatpush1.bf16.msra.mxu0 0
  %2583 = vmatprep.subr.bf16.mxu0 0
  %2584 = vmatpush1.bf16.msra.mxu0 0
  %2585 = vmatprep.subr.bf16.mxu0 0
  %2586 = vmatpush1.bf16.msra.mxu0 0
  %2587 = vmatprep.subr.bf16.mxu0 0
  %2588 = vmatpush1.bf16.msra.mxu0 0
  %2589 = vmatprep.subr.bf16.mxu0 0
  %2590 = vmatpush1.bf16.msra.mxu0 0
  %2591 = vmatprep.subr.bf16.mxu0 0
  %2592 = vmatpush1.bf16.msra.mxu0 0
  %2593 = vmatprep.subr.bf16.mxu0 0
  %2594 = vmatpush1.bf16.msra.mxu0 0
  %2595 = vmatprep.mubr.bf16.mxu0 0
  %2596 = vmatmul.mubr.bf16.gmra.mrb[0].mxu0 %v2495
  %v2597 = vpop.f32.mrb[0].mxu0
  %v2598 = vadd.f32 0.0, %v2597
  %v2599 = vpop.f32.mrb[0].mxu0
  %v2600 = vadd.f32 0.0, %v2599
  %v2601 = vpop.f32.mrb[0].mxu0
  %v2602 = vadd.f32 0.0, %v2601
  %v2603 = vpop.f32.mrb[0].mxu0
  %v2604 = vadd.f32 0.0, %v2603
  %2605 = vmatprep.mubr.bf16.mxu0 0
  %2606 = vmatmul.mubr.bf16.gmra.mrb[0].mxu0 %v2498
  %v2607 = vpop.f32.mrb[0].mxu0
  %v2608 = vadd.f32 0.0, %v2607
  %v2609 = vpop.f32.mrb[0].mxu0
  %v2610 = vadd.f32 0.0, %v2609
  %v2611 = vpop.f32.mrb[0].mxu0
  %v2612 = vpop.f32.mrb[0].mxu0
  %2613 = vdwg.mxu0
  %v2614 = vld [vmem:[%s1] sm:$0xf]
  %v2615 = vld [vmem:[%s1 + $0x4] sm:$0xf]
  %v2616 = vld [vmem:[%s1 + $0x8] sm:$0x3]
  %v2617 = vpack.c.bf16 %v38, %v37
  %v2618 = vpack.c.bf16 %v39, %v39
  %2620 = vset.pattern.permute.xlu0 20
  %2621 = vperm.xlu0 %2620, %v37
  %v2622 = vpop.permute.xlu0 %2621
  %2625 = vset.pattern.permute.xlu0 20
  %2626 = vperm.xlu0 %2625, %v38
  %v2627 = vpop.permute.xlu0 %2626
  %2630 = vset.pattern.permute.xlu0 20
  %2631 = vperm.xlu0 %2630, %v39
  %v2632 = vpop.permute.xlu0 %2631
  %v2637 = vunpack.c.l.b16 %v2614
  %v2638 = vunpack.c.l.b16 %v2615
  %v2639 = vunpack.c.l.b16 %v2616
  %v2640 = vpack.c.b16 %v2638, %v2637
  %v2641 = vpack.c.b16 %v2639, %v2639
  %v2644 = vsel %vm105, %v2617, 0
  %v2647 = vsel %vm105, %v2618, 0
  %v2650 = vsel %vm115, %v2641, 0
  %2652 = vmatprep.subr.bf16.mxu0 0
  %2653 = vmatpush1.bf16.msra.mxu0 %v2640
  %2654 = vmatprep.subr.bf16.mxu0 0
  %2655 = vmatpush1.bf16.msra.mxu0 %v2650
  %2656 = vmatprep.subr.bf16.mxu0 0
  %2657 = vmatpush1.bf16.msra.mxu0 0
  %2658 = vmatprep.subr.bf16.mxu0 0
  %2659 = vmatpush1.bf16.msra.mxu0 0
  %2660 = vmatprep.subr.bf16.mxu0 0
  %2661 = vmatpush1.bf16.msra.mxu0 0
  %2662 = vmatprep.subr.bf16.mxu0 0
  %2663 = vmatpush1.bf16.msra.mxu0 0
  %2664 = vmatprep.subr.bf16.mxu0 0
  %2665 = vmatpush1.bf16.msra.mxu0 0
  %2666 = vmatprep.subr.bf16.mxu0 0
  %2667 = vmatpush1.bf16.msra.mxu0 0
  %2668 = vmatprep.subr.bf16.mxu0 0
  %2669 = vmatpush1.bf16.msra.mxu0 0
  %2670 = vmatprep.subr.bf16.mxu0 0
  %2671 = vmatpush1.bf16.msra.mxu0 0
  %2672 = vmatprep.subr.bf16.mxu0 0
  %2673 = vmatpush1.bf16.msra.mxu0 0
  %2674 = vmatprep.subr.bf16.mxu0 0
  %2675 = vmatpush1.bf16.msra.mxu0 0
  %2676 = vmatprep.subr.bf16.mxu0 0
  %2677 = vmatpush1.bf16.msra.mxu0 0
  %2678 = vmatprep.subr.bf16.mxu0 0
  %2679 = vmatpush1.bf16.msra.mxu0 0
  %2680 = vmatprep.subr.bf16.mxu0 0
  %2681 = vmatpush1.bf16.msra.mxu0 0
  %2682 = vmatprep.subr.bf16.mxu0 0
  %2683 = vmatpush1.bf16.msra.mxu0 0
  %2684 = vmatprep.mubr.bf16.mxu0 0
  %2685 = vmatmul.mubr.bf16.gmra.mrb[0].mxu0 %v2644
  %v2686 = vpop.f32.mrb[0].mxu0
  %v2687 = vadd.f32 %v2622, %v2686
  %v2688 = vpop.f32.mrb[0].mxu0
  %v2689 = vpop.f32.mrb[0].mxu0
  %v2690 = vadd.f32 %v2627, %v2689
  %v2691 = vpop.f32.mrb[0].mxu0
  %2692 = vmatprep.mubr.bf16.mxu0 0
  %2693 = vmatmul.mubr.bf16.gmra.mrb[0].mxu0 %v2647
  %v2694 = vpop.f32.mrb[0].mxu0
  %v2695 = vadd.f32 %v2632, %v2694
  %v2696 = vpop.f32.mrb[0].mxu0
  %v2697 = vpop.f32.mrb[0].mxu0
  %v2698 = vpop.f32.mrb[0].mxu0
  %2699 = vdwg.mxu0
  %v2700 = vpack.c.bf16 %v2687, %v2687
  %v2701 = vpack.c.bf16 %v177, %v177
  %v2702 = vpack.c.bf16 %v179, %v179
  %2703 = vxpose.xlu0.c.b16.start [1/8] %v2700, 128
  %2704 = vxpose.xlu0.c.b16.cont [2/8] 0, 128
  %2705 = vxpose.xlu0.c.b16.cont [3/8] 0, 128
  %2706 = vxpose.xlu0.c.b16.cont [4/8] 0, 128
  %2707 = vxpose.xlu0.c.b16.cont [5/8] 0, 128
  %2708 = vxpose.xlu0.c.b16.cont [6/8] 0, 128
  %2709 = vxpose.xlu0.c.b16.cont [7/8] 0, 128
  %2710 = vxpose.xlu0.c.b16.end [8/8] 0, 128
  %v2711 = vpop.trf.xlu0
  %v2712 = vpop.trf.xlu0
  %v2713 = vpop.trf.xlu0
  %v2714 = vpop.trf.xlu0
  %v2715 = vpop.trf.xlu0
  %v2716 = vpop.trf.xlu0
  %v2717 = vpop.trf.xlu0
  %v2718 = vpop.trf.xlu0
  %v2721 = vrot.slane %v2701, 3
  %v2722 = vrot.slane %v2702, 3
  %vm2723 = vcmask 15360
  %v2725 = vsel %vm2723, %v2711, 0
  %vm2727 = vcmask 1040384
  %v2729 = vsel %vm2727, %v2721, 0
  %v2732 = vsel %vm2727, %v2722, 0
  %2734 = vmatprep.subr.bf16.mxu0 %v2732
  %2735 = vmatpush1.bf16.msra.mxu0 %v2729
  %2736 = vmatprep.subr.bf16.mxu0 0
  %2737 = vmatpush1.bf16.msra.mxu0 0
  %2738 = vmatprep.subr.bf16.mxu0 0
  %2739 = vmatpush1.bf16.msra.mxu0 0
  %2740 = vmatprep.subr.bf16.mxu0 0
  %2741 = vmatpush1.bf16.msra.mxu0 0
  %2742 = vmatprep.subr.bf16.mxu0 0
  %2743 = vmatpush1.bf16.msra.mxu0 0
  %2744 = vmatprep.subr.bf16.mxu0 0
  %2745 = vmatpush1.bf16.msra.mxu0 0
  %2746 = vmatprep.subr.bf16.mxu0 0
  %2747 = vmatpush1.bf16.msra.mxu0 0
  %2748 = vmatprep.subr.bf16.mxu0 0
  %2749 = vmatpush1.bf16.msra.mxu0 0
  %2750 = vmatprep.subr.bf16.mxu0 0
  %2751 = vmatpush1.bf16.msra.mxu0 0
  %2752 = vmatprep.subr.bf16.mxu0 0
  %2753 = vmatpush1.bf16.msra.mxu0 0
  %2754 = vmatprep.subr.bf16.mxu0 0
  %2755 = vmatpush1.bf16.msra.mxu0 0
  %2756 = vmatprep.subr.bf16.mxu0 0
  %2757 = vmatpush1.bf16.msra.mxu0 0
  %2758 = vmatprep.subr.bf16.mxu0 0
  %2759 = vmatpush1.bf16.msra.mxu0 0
  %2760 = vmatprep.subr.bf16.mxu0 0
  %2761 = vmatpush1.bf16.msra.mxu0 0
  %2762 = vmatprep.subr.bf16.mxu0 0
  %2763 = vmatpush1.bf16.msra.mxu0 0
  %2764 = vmatprep.subr.bf16.mxu0 0
  %2765 = vmatpush1.bf16.msra.mxu0 0
  %2766 = vmatprep.mubr.bf16.mxu0 0
  %2767 = vmatmul.mubr.bf16.gmra.mrb[0].mxu0 %v2725
  %v2768 = vpop.f32.mrb[0].mxu0
  %v2769 = vadd.f32 0.0, %v2768
  %v2770 = vpop.f32.mrb[0].mxu0
  %v2771 = vadd.f32 0.0, %v2770
  %v2772 = vpop.f32.mrb[0].mxu0
  %v2773 = vadd.f32 0.0, %v2772
  %v2774 = vpop.f32.mrb[0].mxu0
  %v2775 = vadd.f32 0.0, %v2774
  %2776 = vdwg.mxu0
  %v2777 = vmul.f32 %v2769, 0.70710677
  %v2778 = vmul.f32 %v2771, 0.70710677
  %v2779 = vmul.f32 %v2773, 0.70710677
  %v2780 = vmul.f32 %v2775, 0.70710677
  %v2781 = vmax.f32 %v2777, %v2779
  %v2782 = vrot.slane %v2781, 4
  %v2783 = vmax.f32 %v2781, %v2782
  %v2784 = vrot.slane %v2783, 2
  %v2785 = vmax.f32 %v2783, %v2784
  %v2786 = vrot.slane %v2785, 1
  %v2787 = vmax.f32 %v2785, %v2786
  %v2788 = vmax.f32 %v2778, %v2780
  %v2789 = vrot.slane %v2788, 4
  %v2790 = vmax.f32 %v2788, %v2789
  %v2791 = vrot.slane %v2790, 2
  %v2792 = vmax.f32 %v2790, %v2791
  %v2793 = vrot.slane %v2792, 1
  %v2794 = vmax.f32 %v2792, %v2793
  %v2795 = vsub.f32 %v2777, %v2787
  %v2796 = vsub.f32 %v2778, %v2794
  %v2797 = vsub.f32 %v2779, %v2787
  %v2798 = vsub.f32 %v2780, %v2794
  %v2799 = vmul.f32 %v2795, 1.442695
  %v2800 = vpow.pop %v2799
  %v2801 = vmul.f32 %v2796, 1.442695
  %v2802 = vpow.pop %v2801
  %v2803 = vmul.f32 %v2797, 1.442695
  %v2804 = vpow.pop %v2803
  %v2805 = vmul.f32 %v2798, 1.442695
  %v2806 = vpow.pop %v2805
  %v2807 = vadd.f32 %v2800, %v2804
  %v2808 = vrot.slane %v2807, 4
  %v2809 = vadd.f32 %v2807, %v2808
  %v2810 = vrot.slane %v2809, 2
  %v2811 = vadd.f32 %v2809, %v2810
  %v2812 = vrot.slane %v2811, 1
  %v2813 = vadd.f32 %v2811, %v2812
  %v2814 = vadd.f32 %v2802, %v2806
  %v2815 = vrot.slane %v2814, 4
  %v2816 = vadd.f32 %v2814, %v2815
  %v2817 = vrot.slane %v2816, 2
  %v2818 = vadd.f32 %v2816, %v2817
  %v2819 = vrot.slane %v2818, 1
  %v2820 = vadd.f32 %v2818, %v2819
  %v2821 = vrcp.pop %v2813
  %v2822 = vrcp.pop %v2820
  %v2823 = vmul.f32 %v2800, %v2821
  %v2824 = vmul.f32 %v2802, %v2822
  %v2825 = vmul.f32 %v2804, %v2821
  %v2826 = vmul.f32 %v2806, %v2822
  %v2827 = vpack.c.bf16 %v2690, %v2690
  %2830 = vrot.lane.b32.xlu0 %v2488, 118
  %v2831 = vpop.permute.xlu0 %2830
  %2832 = vrot.lane.b32.xlu0 %v2489, 118
  %v2833 = vpop.permute.xlu0 %2832
  %v2835 = vrot.slane %v2827, 1
  %v2837 = vsel %vm2723, %v2831, 0
  %v2840 = vsel %vm2723, %v2833, 0
  %v2843 = vsel %vm2727, %v2835, 0
  %2845 = vmatprep.subr.bf16.mxu0 0
  %2846 = vmatpush1.bf16.msra.mxu0 %v2843
  %2847 = vmatprep.subr.bf16.mxu0 0
  %2848 = vmatpush1.bf16.msra.mxu0 0
  %2849 = vmatprep.subr.bf16.mxu0 0
  %2850 = vmatpush1.bf16.msra.mxu0 0
  %2851 = vmatprep.subr.bf16.mxu0 0
  %2852 = vmatpush1.bf16.msra.mxu0 0
  %2853 = vmatprep.subr.bf16.mxu0 0
  %2854 = vmatpush1.bf16.msra.mxu0 0
  %2855 = vmatprep.subr.bf16.mxu0 0
  %2856 = vmatpush1.bf16.msra.mxu0 0
  %2857 = vmatprep.subr.bf16.mxu0 0
  %2858 = vmatpush1.bf16.msra.mxu0 0
  %2859 = vmatprep.subr.bf16.mxu0 0
  %2860 = vmatpush1.bf16.msra.mxu0 0
  %2861 = vmatprep.subr.bf16.mxu0 0
  %2862 = vmatpush1.bf16.msra.mxu0 0
  %2863 = vmatprep.subr.bf16.mxu0 0
  %2864 = vmatpush1.bf16.msra.mxu0 0
  %2865 = vmatprep.subr.bf16.mxu0 0
  %2866 = vmatpush1.bf16.msra.mxu0 0
  %2867 = vmatprep.subr.bf16.mxu0 0
  %2868 = vmatpush1.bf16.msra.mxu0 0
  %2869 = vmatprep.subr.bf16.mxu0 0
  %2870 = vmatpush1.bf16.msra.mxu0 0
  %2871 = vmatprep.subr.bf16.mxu0 0
  %2872 = vmatpush1.bf16.msra.mxu0 0
  %2873 = vmatprep.subr.bf16.mxu0 0
  %2874 = vmatpush1.bf16.msra.mxu0 0
  %2875 = vmatprep.subr.bf16.mxu0 0
  %2876 = vmatpush1.bf16.msra.mxu0 0
  %2877 = vmatprep.mubr.bf16.mxu0 0
  %2878 = vmatmul.mubr.bf16.gmra.mrb[0].mxu0 %v2837
  %v2879 = vpop.f32.mrb[0].mxu0
  %v2880 = vadd.f32 0.0, %v2879
  %v2881 = vpop.f32.mrb[0].mxu0
  %v2882 = vpop.f32.mrb[0].mxu0
  %v2883 = vadd.f32 0.0, %v2882
  %v2884 = vpop.f32.mrb[0].mxu0
  %2885 = vmatprep.mubr.bf16.mxu0 0
  %2886 = vmatmul.mubr.bf16.gmra.mrb[0].mxu0 %v2840
  %v2887 = vpop.f32.mrb[0].mxu0
  %v2888 = vadd.f32 0.0, %v2887
  %v2889 = vpop.f32.mrb[0].mxu0
  %v2890 = vpop.f32.mrb[0].mxu0
  %v2891 = vpop.f32.mrb[0].mxu0
  %2892 = vdwg.mxu0
  %v2893 = vpack.c.bf16 %v2883, %v2880
  %v2894 = vpack.c.bf16 %v2888, %v2888
  %v2895 = vpack.c.bf16 %v2825, %v2823
  %v2896 = vpack.c.bf16 %v2826, %v2824
  %v2897 = vpack.c.bf16 %v183, %v183
  %v2898 = vpack.c.bf16 %v185, %v185
  %v2900 = vrot.slane %v2700, 1
  %2902 = vxpose.xlu0.c.b16.start [1/8] %v2900, 128
  %2903 = vxpose.xlu0.c.b16.cont [2/8] 0, 128
  %2904 = vxpose.xlu0.c.b16.cont [3/8] 0, 128
  %2905 = vxpose.xlu0.c.b16.cont [4/8] 0, 128
  %2906 = vxpose.xlu0.c.b16.cont [5/8] 0, 128
  %2907 = vxpose.xlu0.c.b16.cont [6/8] 0, 128
  %2908 = vxpose.xlu0.c.b16.cont [7/8] 0, 128
  %2909 = vxpose.xlu0.c.b16.end [8/8] 0, 128
  %v2910 = vpop.trf.xlu0
  %v2911 = vpop.trf.xlu0
  %v2912 = vpop.trf.xlu0
  %v2913 = vpop.trf.xlu0
  %v2914 = vpop.trf.xlu0
  %v2915 = vpop.trf.xlu0
  %v2916 = vpop.trf.xlu0
  %v2917 = vpop.trf.xlu0
  %v2919 = vsel %vm2723, %v2910, 0
  %v2922 = vsel %vm2727, %v2897, 0
  %v2925 = vsel %vm2727, %v2898, 0
  %2927 = vmatprep.subr.bf16.mxu0 %v2925
  %2928 = vmatpush1.bf16.msra.mxu0 %v2922
  %2929 = vmatprep.subr.bf16.mxu0 0
  %2930 = vmatpush1.bf16.msra.mxu0 0
  %2931 = vmatprep.subr.bf16.mxu0 0
  %2932 = vmatpush1.bf16.msra.mxu0 0
  %2933 = vmatprep.subr.bf16.mxu0 0
  %2934 = vmatpush1.bf16.msra.mxu0 0
  %2935 = vmatprep.subr.bf16.mxu0 0
  %2936 = vmatpush1.bf16.msra.mxu0 0
  %2937 = vmatprep.subr.bf16.mxu0 0
  %2938 = vmatpush1.bf16.msra.mxu0 0
  %2939 = vmatprep.subr.bf16.mxu0 0
  %2940 = vmatpush1.bf16.msra.mxu0 0
  %2941 = vmatprep.subr.bf16.mxu0 0
  %2942 = vmatpush1.bf16.msra.mxu0 0
  %2943 = vmatprep.subr.bf16.mxu0 0
  %2944 = vmatpush1.bf16.msra.mxu0 0
  %2945 = vmatprep.subr.bf16.mxu0 0
  %2946 = vmatpush1.bf16.msra.mxu0 0
  %2947 = vmatprep.subr.bf16.mxu0 0
  %2948 = vmatpush1.bf16.msra.mxu0 0
  %2949 = vmatprep.subr.bf16.mxu0 0
  %2950 = vmatpush1.bf16.msra.mxu0 0
  %2951 = vmatprep.subr.bf16.mxu0 0
  %2952 = vmatpush1.bf16.msra.mxu0 0
  %2953 = vmatprep.subr.bf16.mxu0 0
  %2954 = vmatpush1.bf16.msra.mxu0 0
  %2955 = vmatprep.subr.bf16.mxu0 0
  %2956 = vmatpush1.bf16.msra.mxu0 0
  %2957 = vmatprep.subr.bf16.mxu0 0
  %2958 = vmatpush1.bf16.msra.mxu0 0
  %2959 = vmatprep.mubr.bf16.mxu0 0
  %2960 = vmatmul.mubr.bf16.gmra.mrb[0].mxu0 %v2919
  %v2961 = vpop.f32.mrb[0].mxu0
  %v2962 = vadd.f32 0.0, %v2961
  %v2963 = vpop.f32.mrb[0].mxu0
  %v2964 = vadd.f32 0.0, %v2963
  %v2965 = vpop.f32.mrb[0].mxu0
  %v2966 = vadd.f32 0.0, %v2965
  %v2967 = vpop.f32.mrb[0].mxu0
  %v2968 = vadd.f32 0.0, %v2967
  %2969 = vdwg.mxu0
  %v2970 = vmul.f32 %v2962, 0.70710677
  %v2971 = vmul.f32 %v2964, 0.70710677
  %v2972 = vmul.f32 %v2966, 0.70710677
  %v2973 = vmul.f32 %v2968, 0.70710677
  %v2974 = vmax.f32 %v2970, %v2972
  %v2975 = vrot.slane %v2974, 4
  %v2976 = vmax.f32 %v2974, %v2975
  %v2977 = vrot.slane %v2976, 2
  %v2978 = vmax.f32 %v2976, %v2977
  %v2979 = vrot.slane %v2978, 1
  %v2980 = vmax.f32 %v2978, %v2979
  %v2981 = vmax.f32 %v2971, %v2973
  %v2982 = vrot.slane %v2981, 4
  %v2983 = vmax.f32 %v2981, %v2982
  %v2984 = vrot.slane %v2983, 2
  %v2985 = vmax.f32 %v2983, %v2984
  %v2986 = vrot.slane %v2985, 1
  %v2987 = vmax.f32 %v2985, %v2986
  %v2988 = vsub.f32 %v2970, %v2980
  %v2989 = vsub.f32 %v2971, %v2987
  %v2990 = vsub.f32 %v2972, %v2980
  %v2991 = vsub.f32 %v2973, %v2987
  %v2992 = vmul.f32 %v2988, 1.442695
  %v2993 = vpow.pop %v2992
  %v2994 = vmul.f32 %v2989, 1.442695
  %v2995 = vpow.pop %v2994
  %v2996 = vmul.f32 %v2990, 1.442695
  %v2997 = vpow.pop %v2996
  %v2998 = vmul.f32 %v2991, 1.442695
  %v2999 = vpow.pop %v2998
  %v3000 = vadd.f32 %v2993, %v2997
  %v3001 = vrot.slane %v3000, 4
  %v3002 = vadd.f32 %v3000, %v3001
  %v3003 = vrot.slane %v3002, 2
  %v3004 = vadd.f32 %v3002, %v3003
  %v3005 = vrot.slane %v3004, 1
  %v3006 = vadd.f32 %v3004, %v3005
  %v3007 = vadd.f32 %v2995, %v2999
  %v3008 = vrot.slane %v3007, 4
  %v3009 = vadd.f32 %v3007, %v3008
  %v3010 = vrot.slane %v3009, 2
  %v3011 = vadd.f32 %v3009, %v3010
  %v3012 = vrot.slane %v3011, 1
  %v3013 = vadd.f32 %v3011, %v3012
  %v3014 = vrcp.pop %v3006
  %v3015 = vrcp.pop %v3013
  %v3016 = vmul.f32 %v2993, %v3014
  %v3017 = vmul.f32 %v2995, %v3015
  %v3018 = vmul.f32 %v2997, %v3014
  %v3019 = vmul.f32 %v2999, %v3015
  %3020 = vrot.lane.b32.xlu0 %v2488, 116
  %v3021 = vpop.permute.xlu0 %3020
  %3022 = vrot.lane.b32.xlu0 %v2489, 116
  %v3023 = vpop.permute.xlu0 %3022
  %v3024 = vrot.slane %v2827, 2
  %v3026 = vsel %vm2723, %v3021, 0
  %v3029 = vsel %vm2723, %v3023, 0
  %v3032 = vsel %vm2727, %v3024, 0
  %3034 = vmatprep.subr.bf16.mxu0 0
  %3035 = vmatpush1.bf16.msra.mxu0 %v3032
  %3036 = vmatprep.subr.bf16.mxu0 0
  %3037 = vmatpush1.bf16.msra.mxu0 0
  %3038 = vmatprep.subr.bf16.mxu0 0
  %3039 = vmatpush1.bf16.msra.mxu0 0
  %3040 = vmatprep.subr.bf16.mxu0 0
  %3041 = vmatpush1.bf16.msra.mxu0 0
  %3042 = vmatprep.subr.bf16.mxu0 0
  %3043 = vmatpush1.bf16.msra.mxu0 0
  %3044 = vmatprep.subr.bf16.mxu0 0
  %3045 = vmatpush1.bf16.msra.mxu0 0
  %3046 = vmatprep.subr.bf16.mxu0 0
  %3047 = vmatpush1.bf16.msra.mxu0 0
  %3048 = vmatprep.subr.bf16.mxu0 0
  %3049 = vmatpush1.bf16.msra.mxu0 0
  %3050 = vmatprep.subr.bf16.mxu0 0
  %3051 = vmatpush1.bf16.msra.mxu0 0
  %3052 = vmatprep.subr.bf16.mxu0 0
  %3053 = vmatpush1.bf16.msra.mxu0 0
  %3054 = vmatprep.subr.bf16.mxu0 0
  %3055 = vmatpush1.bf16.msra.mxu0 0
  %3056 = vmatprep.subr.bf16.mxu0 0
  %3057 = vmatpush1.bf16.msra.mxu0 0
  %3058 = vmatprep.subr.bf16.mxu0 0
  %3059 = vmatpush1.bf16.msra.mxu0 0
  %3060 = vmatprep.subr.bf16.mxu0 0
  %3061 = vmatpush1.bf16.msra.mxu0 0
  %3062 = vmatprep.subr.bf16.mxu0 0
  %3063 = vmatpush1.bf16.msra.mxu0 0
  %3064 = vmatprep.subr.bf16.mxu0 0
  %3065 = vmatpush1.bf16.msra.mxu0 0
  %3066 = vmatprep.mubr.bf16.mxu0 0
  %3067 = vmatmul.mubr.bf16.gmra.mrb[0].mxu0 %v3026
  %v3068 = vpop.f32.mrb[0].mxu0
  %v3069 = vadd.f32 0.0, %v3068
  %v3070 = vpop.f32.mrb[0].mxu0
  %v3071 = vpop.f32.mrb[0].mxu0
  %v3072 = vadd.f32 0.0, %v3071
  %v3073 = vpop.f32.mrb[0].mxu0
  %3074 = vmatprep.mubr.bf16.mxu0 0
  %3075 = vmatmul.mubr.bf16.gmra.mrb[0].mxu0 %v3029
  %v3076 = vpop.f32.mrb[0].mxu0
  %v3077 = vadd.f32 0.0, %v3076
  %v3078 = vpop.f32.mrb[0].mxu0
  %v3079 = vpop.f32.mrb[0].mxu0
  %v3080 = vpop.f32.mrb[0].mxu0
  %3081 = vdwg.mxu0
  %v3082 = vpack.c.bf16 %v3072, %v3069
  %v3083 = vpack.c.bf16 %v3077, %v3077
  %v3084 = vpack.c.bf16 %v3018, %v3016
  %v3085 = vpack.c.bf16 %v3019, %v3017
  %vm3086 = vcmask 130048
  %v3088 = vsel %vm3086, %v3082, 0
  %v3091 = vsel %vm3086, %v3083, 0
  %3093 = vmatprep.subr.bf16.mxu0 %v3085
  %3094 = vmatpush1.bf16.msra.mxu0 %v3084
  %3095 = vmatprep.subr.bf16.mxu0 0
  %3096 = vmatpush1.bf16.msra.mxu0 0
  %3097 = vmatprep.subr.bf16.mxu0 0
  %3098 = vmatpush1.bf16.msra.mxu0 0
  %3099 = vmatprep.subr.bf16.mxu0 0
  %3100 = vmatpush1.bf16.msra.mxu0 0
  %3101 = vmatprep.subr.bf16.mxu0 0
  %3102 = vmatpush1.bf16.msra.mxu0 0
  %3103 = vmatprep.subr.bf16.mxu0 0
  %3104 = vmatpush1.bf16.msra.mxu0 0
  %3105 = vmatprep.subr.bf16.mxu0 0
  %3106 = vmatpush1.bf16.msra.mxu0 0
  %3107 = vmatprep.subr.bf16.mxu0 0
  %3108 = vmatpush1.bf16.msra.mxu0 0
  %3109 = vmatprep.subr.bf16.mxu0 0
  %3110 = vmatpush1.bf16.msra.mxu0 0
  %3111 = vmatprep.subr.bf16.mxu0 0
  %3112 = vmatpush1.bf16.msra.mxu0 0
  %3113 = vmatprep.subr.bf16.mxu0 0
  %3114 = vmatpush1.bf16.msra.mxu0 0
  %3115 = vmatprep.subr.bf16.mxu0 0
  %3116 = vmatpush1.bf16.msra.mxu0 0
  %3117 = vmatprep.subr.bf16.mxu0 0
  %3118 = vmatpush1.bf16.msra.mxu0 0
  %3119 = vmatprep.subr.bf16.mxu0 0
  %3120 = vmatpush1.bf16.msra.mxu0 0
  %3121 = vmatprep.subr.bf16.mxu0 0
  %3122 = vmatpush1.bf16.msra.mxu0 0
  %3123 = vmatprep.subr.bf16.mxu0 0
  %3124 = vmatpush1.bf16.msra.mxu0 0
  %3125 = vmatprep.mubr.bf16.mxu0 0
  %3126 = vmatmul.mubr.bf16.gmra.mrb[0].mxu0 %v3088
  %v3127 = vpop.f32.mrb[0].mxu0
  %v3128 = vadd.f32 0.0, %v3127
  %v3129 = vpop.f32.mrb[0].mxu0
  %v3130 = vadd.f32 0.0, %v3129
  %v3131 = vpop.f32.mrb[0].mxu0
  %v3132 = vadd.f32 0.0, %v3131
  %v3133 = vpop.f32.mrb[0].mxu0
  %v3134 = vadd.f32 0.0, %v3133
  %3135 = vmatprep.mubr.bf16.mxu0 0
  %3136 = vmatmul.mubr.bf16.gmra.mrb[0].mxu0 %v3091
  %v3137 = vpop.f32.mrb[0].mxu0
  %v3138 = vadd.f32 0.0, %v3137
  %v3139 = vpop.f32.mrb[0].mxu0
  %v3140 = vadd.f32 0.0, %v3139
  %v3141 = vpop.f32.mrb[0].mxu0
  %v3142 = vpop.f32.mrb[0].mxu0
  %3143 = vdwg.mxu0
  %v3145 = vsel %vm3086, %v2893, 0
  %v3148 = vsel %vm3086, %v2894, 0
  %3150 = vmatprep.subr.bf16.mxu0 %v2896
  %3151 = vmatpush1.bf16.msra.mxu0 %v2895
  %3152 = vmatprep.subr.bf16.mxu0 0
  %3153 = vmatpush1.bf16.msra.mxu0 0
  %3154 = vmatprep.subr.bf16.mxu0 0
  %3155 = vmatpush1.bf16.msra.mxu0 0
  %3156 = vmatprep.subr.bf16.mxu0 0
  %3157 = vmatpush1.bf16.msra.mxu0 0
  %3158 = vmatprep.subr.bf16.mxu0 0
  %3159 = vmatpush1.bf16.msra.mxu0 0
  %3160 = vmatprep.subr.bf16.mxu0 0
  %3161 = vmatpush1.bf16.msra.mxu0 0
  %3162 = vmatprep.subr.bf16.mxu0 0
  %3163 = vmatpush1.bf16.msra.mxu0 0
  %3164 = vmatprep.subr.bf16.mxu0 0
  %3165 = vmatpush1.bf16.msra.mxu0 0
  %3166 = vmatprep.subr.bf16.mxu0 0
  %3167 = vmatpush1.bf16.msra.mxu0 0
  %3168 = vmatprep.subr.bf16.mxu0 0
  %3169 = vmatpush1.bf16.msra.mxu0 0
  %3170 = vmatprep.subr.bf16.mxu0 0
  %3171 = vmatpush1.bf16.msra.mxu0 0
  %3172 = vmatprep.subr.bf16.mxu0 0
  %3173 = vmatpush1.bf16.msra.mxu0 0
  %3174 = vmatprep.subr.bf16.mxu0 0
  %3175 = vmatpush1.bf16.msra.mxu0 0
  %3176 = vmatprep.subr.bf16.mxu0 0
  %3177 = vmatpush1.bf16.msra.mxu0 0
  %3178 = vmatprep.subr.bf16.mxu0 0
  %3179 = vmatpush1.bf16.msra.mxu0 0
  %3180 = vmatprep.subr.bf16.mxu0 0
  %3181 = vmatpush1.bf16.msra.mxu0 0
  %3182 = vmatprep.mubr.bf16.mxu0 0
  %3183 = vmatmul.mubr.bf16.gmra.mrb[0].mxu0 %v3145
  %v3184 = vpop.f32.mrb[0].mxu0
  %v3185 = vadd.f32 %v3128, %v3184
  %v3186 = vpop.f32.mrb[0].mxu0
  %v3187 = vadd.f32 %v3130, %v3186
  %v3188 = vpop.f32.mrb[0].mxu0
  %v3189 = vadd.f32 %v3132, %v3188
  %v3190 = vpop.f32.mrb[0].mxu0
  %v3191 = vadd.f32 %v3134, %v3190
  %3192 = vmatprep.mubr.bf16.mxu0 0
  %3193 = vmatmul.mubr.bf16.gmra.mrb[0].mxu0 %v3148
  %v3194 = vpop.f32.mrb[0].mxu0
  %v3195 = vadd.f32 %v3138, %v3194
  %v3196 = vpop.f32.mrb[0].mxu0
  %v3197 = vadd.f32 %v3140, %v3196
  %v3198 = vpop.f32.mrb[0].mxu0
  %v3199 = vpop.f32.mrb[0].mxu0
  %3200 = vdwg.mxu0
  %v3201 = vrot.slane %v2700, 2
  %3203 = vxpose.xlu0.c.b16.start [1/8] %v3201, 128
  %3204 = vxpose.xlu0.c.b16.cont [2/8] 0, 128
  %3205 = vxpose.xlu0.c.b16.cont [3/8] 0, 128
  %3206 = vxpose.xlu0.c.b16.cont [4/8] 0, 128
  %3207 = vxpose.xlu0.c.b16.cont [5/8] 0, 128
  %3208 = vxpose.xlu0.c.b16.cont [6/8] 0, 128
  %3209 = vxpose.xlu0.c.b16.cont [7/8] 0, 128
  %3210 = vxpose.xlu0.c.b16.end [8/8] 0, 128
  %v3211 = vpop.trf.xlu0
  %v3212 = vpop.trf.xlu0
  %v3213 = vpop.trf.xlu0
  %v3214 = vpop.trf.xlu0
  %v3215 = vpop.trf.xlu0
  %v3216 = vpop.trf.xlu0
  %v3217 = vpop.trf.xlu0
  %v3218 = vpop.trf.xlu0
  %v3221 = vrot.slane %v2897, 1
  %v3222 = vrot.slane %v2898, 1
  %v3224 = vsel %vm2723, %v3211, 0
  %v3227 = vsel %vm2727, %v3221, 0
  %v3230 = vsel %vm2727, %v3222, 0
  %3232 = vmatprep.subr.bf16.mxu0 %v3230
  %3233 = vmatpush1.bf16.msra.mxu0 %v3227
  %3234 = vmatprep.subr.bf16.mxu0 0
  %3235 = vmatpush1.bf16.msra.mxu0 0
  %3236 = vmatprep.subr.bf16.mxu0 0
  %3237 = vmatpush1.bf16.msra.mxu0 0
  %3238 = vmatprep.subr.bf16.mxu0 0
  %3239 = vmatpush1.bf16.msra.mxu0 0
  %3240 = vmatprep.subr.bf16.mxu0 0
  %3241 = vmatpush1.bf16.msra.mxu0 0
  %3242 = vmatprep.subr.bf16.mxu0 0
  %3243 = vmatpush1.bf16.msra.mxu0 0
  %3244 = vmatprep.subr.bf16.mxu0 0
  %3245 = vmatpush1.bf16.msra.mxu0 0
  %3246 = vmatprep.subr.bf16.mxu0 0
  %3247 = vmatpush1.bf16.msra.mxu0 0
  %3248 = vmatprep.subr.bf16.mxu0 0
  %3249 = vmatpush1.bf16.msra.mxu0 0
  %3250 = vmatprep.subr.bf16.mxu0 0
  %3251 = vmatpush1.bf16.msra.mxu0 0
  %3252 = vmatprep.subr.bf16.mxu0 0
  %3253 = vmatpush1.bf16.msra.mxu0 0
  %3254 = vmatprep.subr.bf16.mxu0 0
  %3255 = vmatpush1.bf16.msra.mxu0 0
  %3256 = vmatprep.subr.bf16.mxu0 0
  %3257 = vmatpush1.bf16.msra.mxu0 0
  %3258 = vmatprep.subr.bf16.mxu0 0
  %3259 = vmatpush1.bf16.msra.mxu0 0
  %3260 = vmatprep.subr.bf16.mxu0 0
  %3261 = vmatpush1.bf16.msra.mxu0 0
  %3262 = vmatprep.subr.bf16.mxu0 0
  %3263 = vmatpush1.bf16.msra.mxu0 0
  %3264 = vmatprep.mubr.bf16.mxu0 0
  %3265 = vmatmul.mubr.bf16.gmra.mrb[0].mxu0 %v3224
  %v3266 = vpop.f32.mrb[0].mxu0
  %v3267 = vadd.f32 0.0, %v3266
  %v3268 = vpop.f32.mrb[0].mxu0
  %v3269 = vadd.f32 0.0, %v3268
  %v3270 = vpop.f32.mrb[0].mxu0
  %v3271 = vadd.f32 0.0, %v3270
  %v3272 = vpop.f32.mrb[0].mxu0
  %v3273 = vadd.f32 0.0, %v3272
  %3274 = vdwg.mxu0
  %v3275 = vmul.f32 %v3267, 0.70710677
  %v3276 = vmul.f32 %v3269, 0.70710677
  %v3277 = vmul.f32 %v3271, 0.70710677
  %v3278 = vmul.f32 %v3273, 0.70710677
  %v3279 = vmax.f32 %v3275, %v3277
  %v3280 = vrot.slane %v3279, 4
  %v3281 = vmax.f32 %v3279, %v3280
  %v3282 = vrot.slane %v3281, 2
  %v3283 = vmax.f32 %v3281, %v3282
  %v3284 = vrot.slane %v3283, 1
  %v3285 = vmax.f32 %v3283, %v3284
  %v3286 = vmax.f32 %v3276, %v3278
  %v3287 = vrot.slane %v3286, 4
  %v3288 = vmax.f32 %v3286, %v3287
  %v3289 = vrot.slane %v3288, 2
  %v3290 = vmax.f32 %v3288, %v3289
  %v3291 = vrot.slane %v3290, 1
  %v3292 = vmax.f32 %v3290, %v3291
  %v3293 = vsub.f32 %v3275, %v3285
  %v3294 = vsub.f32 %v3276, %v3292
  %v3295 = vsub.f32 %v3277, %v3285
  %v3296 = vsub.f32 %v3278, %v3292
  %v3297 = vmul.f32 %v3293, 1.442695
  %v3298 = vpow.pop %v3297
  %v3299 = vmul.f32 %v3294, 1.442695
  %v3300 = vpow.pop %v3299
  %v3301 = vmul.f32 %v3295, 1.442695
  %v3302 = vpow.pop %v3301
  %v3303 = vmul.f32 %v3296, 1.442695
  %v3304 = vpow.pop %v3303
  %v3305 = vadd.f32 %v3298, %v3302
  %v3306 = vrot.slane %v3305, 4
  %v3307 = vadd.f32 %v3305, %v3306
  %v3308 = vrot.slane %v3307, 2
  %v3309 = vadd.f32 %v3307, %v3308
  %v3310 = vrot.slane %v3309, 1
  %v3311 = vadd.f32 %v3309, %v3310
  %v3312 = vadd.f32 %v3300, %v3304
  %v3313 = vrot.slane %v3312, 4
  %v3314 = vadd.f32 %v3312, %v3313
  %v3315 = vrot.slane %v3314, 2
  %v3316 = vadd.f32 %v3314, %v3315
  %v3317 = vrot.slane %v3316, 1
  %v3318 = vadd.f32 %v3316, %v3317
  %v3319 = vrcp.pop %v3311
  %v3320 = vrcp.pop %v3318
  %v3321 = vmul.f32 %v3298, %v3319
  %v3322 = vmul.f32 %v3300, %v3320
  %v3323 = vmul.f32 %v3302, %v3319
  %v3324 = vmul.f32 %v3304, %v3320
  %3325 = vrot.lane.b32.xlu0 %v2488, 114
  %v3326 = vpop.permute.xlu0 %3325
  %3327 = vrot.lane.b32.xlu0 %v2489, 114
  %v3328 = vpop.permute.xlu0 %3327
  %v3329 = vrot.slane %v2827, 3
  %v3331 = vsel %vm2723, %v3326, 0
  %v3334 = vsel %vm2723, %v3328, 0
  %v3337 = vsel %vm2727, %v3329, 0
  %3339 = vmatprep.subr.bf16.mxu0 0
  %3340 = vmatpush1.bf16.msra.mxu0 %v3337
  %3341 = vmatprep.subr.bf16.mxu0 0
  %3342 = vmatpush1.bf16.msra.mxu0 0
  %3343 = vmatprep.subr.bf16.mxu0 0
  %3344 = vmatpush1.bf16.msra.mxu0 0
  %3345 = vmatprep.subr.bf16.mxu0 0
  %3346 = vmatpush1.bf16.msra.mxu0 0
  %3347 = vmatprep.subr.bf16.mxu0 0
  %3348 = vmatpush1.bf16.msra.mxu0 0
  %3349 = vmatprep.subr.bf16.mxu0 0
  %3350 = vmatpush1.bf16.msra.mxu0 0
  %3351 = vmatprep.subr.bf16.mxu0 0
  %3352 = vmatpush1.bf16.msra.mxu0 0
  %3353 = vmatprep.subr.bf16.mxu0 0
  %3354 = vmatpush1.bf16.msra.mxu0 0
  %3355 = vmatprep.subr.bf16.mxu0 0
  %3356 = vmatpush1.bf16.msra.mxu0 0
  %3357 = vmatprep.subr.bf16.mxu0 0
  %3358 = vmatpush1.bf16.msra.mxu0 0
  %3359 = vmatprep.subr.bf16.mxu0 0
  %3360 = vmatpush1.bf16.msra.mxu0 0
  %3361 = vmatprep.subr.bf16.mxu0 0
  %3362 = vmatpush1.bf16.msra.mxu0 0
  %3363 = vmatprep.subr.bf16.mxu0 0
  %3364 = vmatpush1.bf16.msra.mxu0 0
  %3365 = vmatprep.subr.bf16.mxu0 0
  %3366 = vmatpush1.bf16.msra.mxu0 0
  %3367 = vmatprep.subr.bf16.mxu0 0
  %3368 = vmatpush1.bf16.msra.mxu0 0
  %3369 = vmatprep.subr.bf16.mxu0 0
  %3370 = vmatpush1.bf16.msra.mxu0 0
  %3371 = vmatprep.mubr.bf16.mxu0 0
  %3372 = vmatmul.mubr.bf16.gmra.mrb[0].mxu0 %v3331
  %v3373 = vpop.f32.mrb[0].mxu0
  %v3374 = vadd.f32 0.0, %v3373
  %v3375 = vpop.f32.mrb[0].mxu0
  %v3376 = vpop.f32.mrb[0].mxu0
  %v3377 = vadd.f32 0.0, %v3376
  %v3378 = vpop.f32.mrb[0].mxu0
  %3379 = vmatprep.mubr.bf16.mxu0 0
  %3380 = vmatmul.mubr.bf16.gmra.mrb[0].mxu0 %v3334
  %v3381 = vpop.f32.mrb[0].mxu0
  %v3382 = vadd.f32 0.0, %v3381
  %v3383 = vpop.f32.mrb[0].mxu0
  %v3384 = vpop.f32.mrb[0].mxu0
  %v3385 = vpop.f32.mrb[0].mxu0
  %3386 = vdwg.mxu0
  %v3387 = vpack.c.bf16 %v3377, %v3374
  %v3388 = vpack.c.bf16 %v3382, %v3382
  %v3389 = vpack.c.bf16 %v3323, %v3321
  %v3390 = vpack.c.bf16 %v3324, %v3322
  %v3392 = vsel %vm3086, %v3387, 0
  %v3395 = vsel %vm3086, %v3388, 0
  %3397 = vmatprep.subr.bf16.mxu0 %v3390
  %3398 = vmatpush1.bf16.msra.mxu0 %v3389
  %3399 = vmatprep.subr.bf16.mxu0 0
  %3400 = vmatpush1.bf16.msra.mxu0 0
  %3401 = vmatprep.subr.bf16.mxu0 0
  %3402 = vmatpush1.bf16.msra.mxu0 0
  %3403 = vmatprep.subr.bf16.mxu0 0
  %3404 = vmatpush1.bf16.msra.mxu0 0
  %3405 = vmatprep.subr.bf16.mxu0 0
  %3406 = vmatpush1.bf16.msra.mxu0 0
  %3407 = vmatprep.subr.bf16.mxu0 0
  %3408 = vmatpush1.bf16.msra.mxu0 0
  %3409 = vmatprep.subr.bf16.mxu0 0
  %3410 = vmatpush1.bf16.msra.mxu0 0
  %3411 = vmatprep.subr.bf16.mxu0 0
  %3412 = vmatpush1.bf16.msra.mxu0 0
  %3413 = vmatprep.subr.bf16.mxu0 0
  %3414 = vmatpush1.bf16.msra.mxu0 0
  %3415 = vmatprep.subr.bf16.mxu0 0
  %3416 = vmatpush1.bf16.msra.mxu0 0
  %3417 = vmatprep.subr.bf16.mxu0 0
  %3418 = vmatpush1.bf16.msra.mxu0 0
  %3419 = vmatprep.subr.bf16.mxu0 0
  %3420 = vmatpush1.bf16.msra.mxu0 0
  %3421 = vmatprep.subr.bf16.mxu0 0
  %3422 = vmatpush1.bf16.msra.mxu0 0
  %3423 = vmatprep.subr.bf16.mxu0 0
  %3424 = vmatpush1.bf16.msra.mxu0 0
  %3425 = vmatprep.subr.bf16.mxu0 0
  %3426 = vmatpush1.bf16.msra.mxu0 0
  %3427 = vmatprep.subr.bf16.mxu0 0
  %3428 = vmatpush1.bf16.msra.mxu0 0
  %3429 = vmatprep.mubr.bf16.mxu0 0
  %3430 = vmatmul.mubr.bf16.gmra.mrb[0].mxu0 %v3392
  %v3431 = vpop.f32.mrb[0].mxu0
  %v3432 = vadd.f32 0.0, %v3431
  %v3433 = vpop.f32.mrb[0].mxu0
  %v3434 = vadd.f32 0.0, %v3433
  %v3435 = vpop.f32.mrb[0].mxu0
  %v3436 = vadd.f32 0.0, %v3435
  %v3437 = vpop.f32.mrb[0].mxu0
  %v3438 = vadd.f32 0.0, %v3437
  %3439 = vmatprep.mubr.bf16.mxu0 0
  %3440 = vmatmul.mubr.bf16.gmra.mrb[0].mxu0 %v3395
  %v3441 = vpop.f32.mrb[0].mxu0
  %v3442 = vadd.f32 0.0, %v3441
  %v3443 = vpop.f32.mrb[0].mxu0
  %v3444 = vadd.f32 0.0, %v3443
  %v3445 = vpop.f32.mrb[0].mxu0
  %v3446 = vpop.f32.mrb[0].mxu0
  %3447 = vdwg.mxu0
  %v3448 = vadd.f32 %v3185, %v3432
  %v3449 = vadd.f32 %v3187, %v3434
  %v3450 = vadd.f32 %v3189, %v3436
  %v3451 = vadd.f32 %v3191, %v3438
  %v3452 = vadd.f32 %v3195, %v3442
  %v3453 = vadd.f32 %v3197, %v3444
  %v3454 = vrot.slane %v2700, 3
  %3456 = vxpose.xlu0.c.b16.start [1/8] %v3454, 128
  %3457 = vxpose.xlu0.c.b16.cont [2/8] 0, 128
  %3458 = vxpose.xlu0.c.b16.cont [3/8] 0, 128
  %3459 = vxpose.xlu0.c.b16.cont [4/8] 0, 128
  %3460 = vxpose.xlu0.c.b16.cont [5/8] 0, 128
  %3461 = vxpose.xlu0.c.b16.cont [6/8] 0, 128
  %3462 = vxpose.xlu0.c.b16.cont [7/8] 0, 128
  %3463 = vxpose.xlu0.c.b16.end [8/8] 0, 128
  %v3464 = vpop.trf.xlu0
  %v3465 = vpop.trf.xlu0
  %v3466 = vpop.trf.xlu0
  %v3467 = vpop.trf.xlu0
  %v3468 = vpop.trf.xlu0
  %v3469 = vpop.trf.xlu0
  %v3470 = vpop.trf.xlu0
  %v3471 = vpop.trf.xlu0
  %v3472 = vrot.slane %v2897, 2
  %v3473 = vrot.slane %v2898, 2
  %v3475 = vsel %vm2723, %v3464, 0
  %v3478 = vsel %vm2727, %v3472, 0
  %v3481 = vsel %vm2727, %v3473, 0
  %3483 = vmatprep.subr.bf16.mxu0 %v3481
  %3484 = vmatpush1.bf16.msra.mxu0 %v3478
  %3485 = vmatprep.subr.bf16.mxu0 0
  %3486 = vmatpush1.bf16.msra.mxu0 0
  %3487 = vmatprep.subr.bf16.mxu0 0
  %3488 = vmatpush1.bf16.msra.mxu0 0
  %3489 = vmatprep.subr.bf16.mxu0 0
  %3490 = vmatpush1.bf16.msra.mxu0 0
  %3491 = vmatprep.subr.bf16.mxu0 0
  %3492 = vmatpush1.bf16.msra.mxu0 0
  %3493 = vmatprep.subr.bf16.mxu0 0
  %3494 = vmatpush1.bf16.msra.mxu0 0
  %3495 = vmatprep.subr.bf16.mxu0 0
  %3496 = vmatpush1.bf16.msra.mxu0 0
  %3497 = vmatprep.subr.bf16.mxu0 0
  %3498 = vmatpush1.bf16.msra.mxu0 0
  %3499 = vmatprep.subr.bf16.mxu0 0
  %3500 = vmatpush1.bf16.msra.mxu0 0
  %3501 = vmatprep.subr.bf16.mxu0 0
  %3502 = vmatpush1.bf16.msra.mxu0 0
  %3503 = vmatprep.subr.bf16.mxu0 0
  %3504 = vmatpush1.bf16.msra.mxu0 0
  %3505 = vmatprep.subr.bf16.mxu0 0
  %3506 = vmatpush1.bf16.msra.mxu0 0
  %3507 = vmatprep.subr.bf16.mxu0 0
  %3508 = vmatpush1.bf16.msra.mxu0 0
  %3509 = vmatprep.subr.bf16.mxu0 0
  %3510 = vmatpush1.bf16.msra.mxu0 0
  %3511 = vmatprep.subr.bf16.mxu0 0
  %3512 = vmatpush1.bf16.msra.mxu0 0
  %3513 = vmatprep.subr.bf16.mxu0 0
  %3514 = vmatpush1.bf16.msra.mxu0 0
  %3515 = vmatprep.mubr.bf16.mxu0 0
  %3516 = vmatmul.mubr.bf16.gmra.mrb[0].mxu0 %v3475
  %v3517 = vpop.f32.mrb[0].mxu0
  %v3518 = vadd.f32 0.0, %v3517
  %v3519 = vpop.f32.mrb[0].mxu0
  %v3520 = vadd.f32 0.0, %v3519
  %v3521 = vpop.f32.mrb[0].mxu0
  %v3522 = vadd.f32 0.0, %v3521
  %v3523 = vpop.f32.mrb[0].mxu0
  %v3524 = vadd.f32 0.0, %v3523
  %3525 = vdwg.mxu0
  %v3526 = vmul.f32 %v3518, 0.70710677
  %v3527 = vmul.f32 %v3520, 0.70710677
  %v3528 = vmul.f32 %v3522, 0.70710677
  %v3529 = vmul.f32 %v3524, 0.70710677
  %v3530 = vmax.f32 %v3526, %v3528
  %v3531 = vrot.slane %v3530, 4
  %v3532 = vmax.f32 %v3530, %v3531
  %v3533 = vrot.slane %v3532, 2
  %v3534 = vmax.f32 %v3532, %v3533
  %v3535 = vrot.slane %v3534, 1
  %v3536 = vmax.f32 %v3534, %v3535
  %v3537 = vmax.f32 %v3527, %v3529
  %v3538 = vrot.slane %v3537, 4
  %v3539 = vmax.f32 %v3537, %v3538
  %v3540 = vrot.slane %v3539, 2
  %v3541 = vmax.f32 %v3539, %v3540
  %v3542 = vrot.slane %v3541, 1
  %v3543 = vmax.f32 %v3541, %v3542
  %v3544 = vsub.f32 %v3526, %v3536
  %v3545 = vsub.f32 %v3527, %v3543
  %v3546 = vsub.f32 %v3528, %v3536
  %v3547 = vsub.f32 %v3529, %v3543
  %v3548 = vmul.f32 %v3544, 1.442695
  %v3549 = vpow.pop %v3548
  %v3550 = vmul.f32 %v3545, 1.442695
  %v3551 = vpow.pop %v3550
  %v3552 = vmul.f32 %v3546, 1.442695
  %v3553 = vpow.pop %v3552
  %v3554 = vmul.f32 %v3547, 1.442695
  %v3555 = vpow.pop %v3554
  %v3556 = vadd.f32 %v3549, %v3553
  %v3557 = vrot.slane %v3556, 4
  %v3558 = vadd.f32 %v3556, %v3557
  %v3559 = vrot.slane %v3558, 2
  %v3560 = vadd.f32 %v3558, %v3559
  %v3561 = vrot.slane %v3560, 1
  %v3562 = vadd.f32 %v3560, %v3561
  %v3563 = vadd.f32 %v3551, %v3555
  %v3564 = vrot.slane %v3563, 4
  %v3565 = vadd.f32 %v3563, %v3564
  %v3566 = vrot.slane %v3565, 2
  %v3567 = vadd.f32 %v3565, %v3566
  %v3568 = vrot.slane %v3567, 1
  %v3569 = vadd.f32 %v3567, %v3568
  %v3570 = vrcp.pop %v3562
  %v3571 = vrcp.pop %v3569
  %v3572 = vmul.f32 %v3549, %v3570
  %v3573 = vmul.f32 %v3551, %v3571
  %v3574 = vmul.f32 %v3553, %v3570
  %v3575 = vmul.f32 %v3555, %v3571
  %v3576 = vpack.c.bf16 %v2695, %v2695
  %3577 = vrot.lane.b32.xlu0 %v2488, 112
  %v3578 = vpop.permute.xlu0 %3577
  %3579 = vrot.lane.b32.xlu0 %v2489, 112
  %v3580 = vpop.permute.xlu0 %3579
  %v3582 = vsel %vm2723, %v3578, 0
  %v3585 = vsel %vm2723, %v3580, 0
  %v3588 = vsel %vm2727, %v3576, 0
  %3590 = vmatprep.subr.bf16.mxu0 0
  %3591 = vmatpush1.bf16.msra.mxu0 %v3588
  %3592 = vmatprep.subr.bf16.mxu0 0
  %3593 = vmatpush1.bf16.msra.mxu0 0
  %3594 = vmatprep.subr.bf16.mxu0 0
  %3595 = vmatpush1.bf16.msra.mxu0 0
  %3596 = vmatprep.subr.bf16.mxu0 0
  %3597 = vmatpush1.bf16.msra.mxu0 0
  %3598 = vmatprep.subr.bf16.mxu0 0
  %3599 = vmatpush1.bf16.msra.mxu0 0
  %3600 = vmatprep.subr.bf16.mxu0 0
  %3601 = vmatpush1.bf16.msra.mxu0 0
  %3602 = vmatprep.subr.bf16.mxu0 0
  %3603 = vmatpush1.bf16.msra.mxu0 0
  %3604 = vmatprep.subr.bf16.mxu0 0
  %3605 = vmatpush1.bf16.msra.mxu0 0
  %3606 = vmatprep.subr.bf16.mxu0 0
  %3607 = vmatpush1.bf16.msra.mxu0 0
  %3608 = vmatprep.subr.bf16.mxu0 0
  %3609 = vmatpush1.bf16.msra.mxu0 0
  %3610 = vmatprep.subr.bf16.mxu0 0
  %3611 = vmatpush1.bf16.msra.mxu0 0
  %3612 = vmatprep.subr.bf16.mxu0 0
  %3613 = vmatpush1.bf16.msra.mxu0 0
  %3614 = vmatprep.subr.bf16.mxu0 0
  %3615 = vmatpush1.bf16.msra.mxu0 0
  %3616 = vmatprep.subr.bf16.mxu0 0
  %3617 = vmatpush1.bf16.msra.mxu0 0
  %3618 = vmatprep.subr.bf16.mxu0 0
  %3619 = vmatpush1.bf16.msra.mxu0 0
  %3620 = vmatprep.subr.bf16.mxu0 0
  %3621 = vmatpush1.bf16.msra.mxu0 0
  %3622 = vmatprep.mubr.bf16.mxu0 0
  %3623 = vmatmul.mubr.bf16.gmra.mrb[0].mxu0 %v3582
  %v3624 = vpop.f32.mrb[0].mxu0
  %v3625 = vadd.f32 0.0, %v3624
  %v3626 = vpop.f32.mrb[0].mxu0
  %v3627 = vpop.f32.mrb[0].mxu0
  %v3628 = vadd.f32 0.0, %v3627
  %v3629 = vpop.f32.mrb[0].mxu0
  %3630 = vmatprep.mubr.bf16.mxu0 0
  %3631 = vmatmul.mubr.bf16.gmra.mrb[0].mxu0 %v3585
  %v3632 = vpop.f32.mrb[0].mxu0
  %v3633 = vadd.f32 0.0, %v3632
  %v3634 = vpop.f32.mrb[0].mxu0
  %v3635 = vpop.f32.mrb[0].mxu0
  %v3636 = vpop.f32.mrb[0].mxu0
  %3637 = vdwg.mxu0
  %v3638 = vpack.c.bf16 %v3628, %v3625
  %v3639 = vpack.c.bf16 %v3633, %v3633
  %v3640 = vpack.c.bf16 %v3574, %v3572
  %v3641 = vpack.c.bf16 %v3575, %v3573
  %v3643 = vsel %vm3086, %v3638, 0
  %v3646 = vsel %vm3086, %v3639, 0
  %3648 = vmatprep.subr.bf16.mxu0 %v3641
  %3649 = vmatpush1.bf16.msra.mxu0 %v3640
  %3650 = vmatprep.subr.bf16.mxu0 0
  %3651 = vmatpush1.bf16.msra.mxu0 0
  %3652 = vmatprep.subr.bf16.mxu0 0
  %3653 = vmatpush1.bf16.msra.mxu0 0
  %3654 = vmatprep.subr.bf16.mxu0 0
  %3655 = vmatpush1.bf16.msra.mxu0 0
  %3656 = vmatprep.subr.bf16.mxu0 0
  %3657 = vmatpush1.bf16.msra.mxu0 0
  %3658 = vmatprep.subr.bf16.mxu0 0
  %3659 = vmatpush1.bf16.msra.mxu0 0
  %3660 = vmatprep.subr.bf16.mxu0 0
  %3661 = vmatpush1.bf16.msra.mxu0 0
  %3662 = vmatprep.subr.bf16.mxu0 0
  %3663 = vmatpush1.bf16.msra.mxu0 0
  %3664 = vmatprep.subr.bf16.mxu0 0
  %3665 = vmatpush1.bf16.msra.mxu0 0
  %3666 = vmatprep.subr.bf16.mxu0 0
  %3667 = vmatpush1.bf16.msra.mxu0 0
  %3668 = vmatprep.subr.bf16.mxu0 0
  %3669 = vmatpush1.bf16.msra.mxu0 0
  %3670 = vmatprep.subr.bf16.mxu0 0
  %3671 = vmatpush1.bf16.msra.mxu0 0
  %3672 = vmatprep.subr.bf16.mxu0 0
  %3673 = vmatpush1.bf16.msra.mxu0 0
  %3674 = vmatprep.subr.bf16.mxu0 0
  %3675 = vmatpush1.bf16.msra.mxu0 0
  %3676 = vmatprep.subr.bf16.mxu0 0
  %3677 = vmatpush1.bf16.msra.mxu0 0
  %3678 = vmatprep.subr.bf16.mxu0 0
  %3679 = vmatpush1.bf16.msra.mxu0 0
  %3680 = vmatprep.mubr.bf16.mxu0 0
  %3681 = vmatmul.mubr.bf16.gmra.mrb[0].mxu0 %v3643
  %v3682 = vpop.f32.mrb[0].mxu0
  %v3683 = vadd.f32 0.0, %v3682
  %v3684 = vpop.f32.mrb[0].mxu0
  %v3685 = vadd.f32 0.0, %v3684
  %v3686 = vpop.f32.mrb[0].mxu0
  %v3687 = vadd.f32 0.0, %v3686
  %v3688 = vpop.f32.mrb[0].mxu0
  %v3689 = vadd.f32 0.0, %v3688
  %3690 = vmatprep.mubr.bf16.mxu0 0
  %3691 = vmatmul.mubr.bf16.gmra.mrb[0].mxu0 %v3646
  %v3692 = vpop.f32.mrb[0].mxu0
  %v3693 = vadd.f32 0.0, %v3692
  %v3694 = vpop.f32.mrb[0].mxu0
  %v3695 = vadd.f32 0.0, %v3694
  %v3696 = vpop.f32.mrb[0].mxu0
  %v3697 = vpop.f32.mrb[0].mxu0
  %3698 = vdwg.mxu0
  %v3699 = vadd.f32 %v3448, %v3683
  %v3700 = vadd.f32 %v3449, %v3685
  %v3701 = vadd.f32 %v3450, %v3687
  %v3702 = vadd.f32 %v3451, %v3689
  %v3703 = vadd.f32 %v3452, %v3693
  %v3704 = vadd.f32 %v3453, %v3695
  %3705 = vxpose.xlu0.c.b16.start [1/8] %v2827, 128
  %3706 = vxpose.xlu0.c.b16.cont [2/8] 0, 128
  %3707 = vxpose.xlu0.c.b16.cont [3/8] 0, 128
  %3708 = vxpose.xlu0.c.b16.cont [4/8] 0, 128
  %3709 = vxpose.xlu0.c.b16.cont [5/8] 0, 128
  %3710 = vxpose.xlu0.c.b16.cont [6/8] 0, 128
  %3711 = vxpose.xlu0.c.b16.cont [7/8] 0, 128
  %3712 = vxpose.xlu0.c.b16.end [8/8] 0, 128
  %v3713 = vpop.trf.xlu0
  %v3714 = vpop.trf.xlu0
  %v3715 = vpop.trf.xlu0
  %v3716 = vpop.trf.xlu0
  %v3717 = vpop.trf.xlu0
  %v3718 = vpop.trf.xlu0
  %v3719 = vpop.trf.xlu0
  %v3720 = vpop.trf.xlu0
  %v3721 = vrot.slane %v2897, 3
  %v3722 = vrot.slane %v2898, 3
  %v3724 = vsel %vm2723, %v3713, 0
  %v3727 = vsel %vm2727, %v3721, 0
  %v3730 = vsel %vm2727, %v3722, 0
  %3732 = vmatprep.subr.bf16.mxu0 %v3730
  %3733 = vmatpush1.bf16.msra.mxu0 %v3727
  %3734 = vmatprep.subr.bf16.mxu0 0
  %3735 = vmatpush1.bf16.msra.mxu0 0
  %3736 = vmatprep.subr.bf16.mxu0 0
  %3737 = vmatpush1.bf16.msra.mxu0 0
  %3738 = vmatprep.subr.bf16.mxu0 0
  %3739 = vmatpush1.bf16.msra.mxu0 0
  %3740 = vmatprep.subr.bf16.mxu0 0
  %3741 = vmatpush1.bf16.msra.mxu0 0
  %3742 = vmatprep.subr.bf16.mxu0 0
  %3743 = vmatpush1.bf16.msra.mxu0 0
  %3744 = vmatprep.subr.bf16.mxu0 0
  %3745 = vmatpush1.bf16.msra.mxu0 0
  %3746 = vmatprep.subr.bf16.mxu0 0
  %3747 = vmatpush1.bf16.msra.mxu0 0
  %3748 = vmatprep.subr.bf16.mxu0 0
  %3749 = vmatpush1.bf16.msra.mxu0 0
  %3750 = vmatprep.subr.bf16.mxu0 0
  %3751 = vmatpush1.bf16.msra.mxu0 0
  %3752 = vmatprep.subr.bf16.mxu0 0
  %3753 = vmatpush1.bf16.msra.mxu0 0
  %3754 = vmatprep.subr.bf16.mxu0 0
  %3755 = vmatpush1.bf16.msra.mxu0 0
  %3756 = vmatprep.subr.bf16.mxu0 0
  %3757 = vmatpush1.bf16.msra.mxu0 0
  %3758 = vmatprep.subr.bf16.mxu0 0
  %3759 = vmatpush1.bf16.msra.mxu0 0
  %3760 = vmatprep.subr.bf16.mxu0 0
  %3761 = vmatpush1.bf16.msra.mxu0 0
  %3762 = vmatprep.subr.bf16.mxu0 0
  %3763 = vmatpush1.bf16.msra.mxu0 0
  %3764 = vmatprep.mubr.bf16.mxu0 0
  %3765 = vmatmul.mubr.bf16.gmra.mrb[0].mxu0 %v3724
  %v3766 = vpop.f32.mrb[0].mxu0
  %v3767 = vadd.f32 0.0, %v3766
  %v3768 = vpop.f32.mrb[0].mxu0
  %v3769 = vadd.f32 0.0, %v3768
  %v3770 = vpop.f32.mrb[0].mxu0
  %v3771 = vadd.f32 0.0, %v3770
  %v3772 = vpop.f32.mrb[0].mxu0
  %v3773 = vadd.f32 0.0, %v3772
  %3774 = vdwg.mxu0
  %v3775 = vmul.f32 %v3767, 0.70710677
  %v3776 = vmul.f32 %v3769, 0.70710677
  %v3777 = vmul.f32 %v3771, 0.70710677
  %v3778 = vmul.f32 %v3773, 0.70710677
  %v3779 = vmax.f32 %v3775, %v3777
  %v3780 = vrot.slane %v3779, 4
  %v3781 = vmax.f32 %v3779, %v3780
  %v3782 = vrot.slane %v3781, 2
  %v3783 = vmax.f32 %v3781, %v3782
  %v3784 = vrot.slane %v3783, 1
  %v3785 = vmax.f32 %v3783, %v3784
  %v3786 = vmax.f32 %v3776, %v3778
  %v3787 = vrot.slane %v3786, 4
  %v3788 = vmax.f32 %v3786, %v3787
  %v3789 = vrot.slane %v3788, 2
  %v3790 = vmax.f32 %v3788, %v3789
  %v3791 = vrot.slane %v3790, 1
  %v3792 = vmax.f32 %v3790, %v3791
  %v3793 = vsub.f32 %v3775, %v3785
  %v3794 = vsub.f32 %v3776, %v3792
  %v3795 = vsub.f32 %v3777, %v3785
  %v3796 = vsub.f32 %v3778, %v3792
  %v3797 = vmul.f32 %v3793, 1.442695
  %v3798 = vpow.pop %v3797
  %v3799 = vmul.f32 %v3794, 1.442695
  %v3800 = vpow.pop %v3799
  %v3801 = vmul.f32 %v3795, 1.442695
  %v3802 = vpow.pop %v3801
  %v3803 = vmul.f32 %v3796, 1.442695
  %v3804 = vpow.pop %v3803
  %v3805 = vadd.f32 %v3798, %v3802
  %v3806 = vrot.slane %v3805, 4
  %v3807 = vadd.f32 %v3805, %v3806
  %v3808 = vrot.slane %v3807, 2
  %v3809 = vadd.f32 %v3807, %v3808
  %v3810 = vrot.slane %v3809, 1
  %v3811 = vadd.f32 %v3809, %v3810
  %v3812 = vadd.f32 %v3800, %v3804
  %v3813 = vrot.slane %v3812, 4
  %v3814 = vadd.f32 %v3812, %v3813
  %v3815 = vrot.slane %v3814, 2
  %v3816 = vadd.f32 %v3814, %v3815
  %v3817 = vrot.slane %v3816, 1
  %v3818 = vadd.f32 %v3816, %v3817
  %v3819 = vrcp.pop %v3811
  %v3820 = vrcp.pop %v3818
  %v3821 = vmul.f32 %v3798, %v3819
  %v3822 = vmul.f32 %v3800, %v3820
  %v3823 = vmul.f32 %v3802, %v3819
  %v3824 = vmul.f32 %v3804, %v3820
  %3825 = vrot.lane.b32.xlu0 %v2488, 110
  %v3826 = vpop.permute.xlu0 %3825
  %3827 = vrot.lane.b32.xlu0 %v2489, 110
  %v3828 = vpop.permute.xlu0 %3827
  %v3830 = vrot.slane %v3576, 1
  %v3832 = vsel %vm2723, %v3826, 0
  %v3835 = vsel %vm2723, %v3828, 0
  %v3838 = vsel %vm2727, %v3830, 0
  %3840 = vmatprep.subr.bf16.mxu0 0
  %3841 = vmatpush1.bf16.msra.mxu0 %v3838
  %3842 = vmatprep.subr.bf16.mxu0 0
  %3843 = vmatpush1.bf16.msra.mxu0 0
  %3844 = vmatprep.subr.bf16.mxu0 0
  %3845 = vmatpush1.bf16.msra.mxu0 0
  %3846 = vmatprep.subr.bf16.mxu0 0
  %3847 = vmatpush1.bf16.msra.mxu0 0
  %3848 = vmatprep.subr.bf16.mxu0 0
  %3849 = vmatpush1.bf16.msra.mxu0 0
  %3850 = vmatprep.subr.bf16.mxu0 0
  %3851 = vmatpush1.bf16.msra.mxu0 0
  %3852 = vmatprep.subr.bf16.mxu0 0
  %3853 = vmatpush1.bf16.msra.mxu0 0
  %3854 = vmatprep.subr.bf16.mxu0 0
  %3855 = vmatpush1.bf16.msra.mxu0 0
  %3856 = vmatprep.subr.bf16.mxu0 0
  %3857 = vmatpush1.bf16.msra.mxu0 0
  %3858 = vmatprep.subr.bf16.mxu0 0
  %3859 = vmatpush1.bf16.msra.mxu0 0
  %3860 = vmatprep.subr.bf16.mxu0 0
  %3861 = vmatpush1.bf16.msra.mxu0 0
  %3862 = vmatprep.subr.bf16.mxu0 0
  %3863 = vmatpush1.bf16.msra.mxu0 0
  %3864 = vmatprep.subr.bf16.mxu0 0
  %3865 = vmatpush1.bf16.msra.mxu0 0
  %3866 = vmatprep.subr.bf16.mxu0 0
  %3867 = vmatpush1.bf16.msra.mxu0 0
  %3868 = vmatprep.subr.bf16.mxu0 0
  %3869 = vmatpush1.bf16.msra.mxu0 0
  %3870 = vmatprep.subr.bf16.mxu0 0
  %3871 = vmatpush1.bf16.msra.mxu0 0
  %3872 = vmatprep.mubr.bf16.mxu0 0
  %3873 = vmatmul.mubr.bf16.gmra.mrb[0].mxu0 %v3832
  %v3874 = vpop.f32.mrb[0].mxu0
  %v3875 = vadd.f32 0.0, %v3874
  %v3876 = vpop.f32.mrb[0].mxu0
  %v3877 = vpop.f32.mrb[0].mxu0
  %v3878 = vadd.f32 0.0, %v3877
  %v3879 = vpop.f32.mrb[0].mxu0
  %3880 = vmatprep.mubr.bf16.mxu0 0
  %3881 = vmatmul.mubr.bf16.gmra.mrb[0].mxu0 %v3835
  %v3882 = vpop.f32.mrb[0].mxu0
  %v3883 = vadd.f32 0.0, %v3882
  %v3884 = vpop.f32.mrb[0].mxu0
  %v3885 = vpop.f32.mrb[0].mxu0
  %v3886 = vpop.f32.mrb[0].mxu0
  %3887 = vdwg.mxu0
  %v3888 = vpack.c.bf16 %v3878, %v3875
  %v3889 = vpack.c.bf16 %v3883, %v3883
  %v3890 = vpack.c.bf16 %v3823, %v3821
  %v3891 = vpack.c.bf16 %v3824, %v3822
  %v3893 = vsel %vm3086, %v3888, 0
  %v3896 = vsel %vm3086, %v3889, 0
  %3898 = vmatprep.subr.bf16.mxu0 %v3891
  %3899 = vmatpush1.bf16.msra.mxu0 %v3890
  %3900 = vmatprep.subr.bf16.mxu0 0
  %3901 = vmatpush1.bf16.msra.mxu0 0
  %3902 = vmatprep.subr.bf16.mxu0 0
  %3903 = vmatpush1.bf16.msra.mxu0 0
  %3904 = vmatprep.subr.bf16.mxu0 0
  %3905 = vmatpush1.bf16.msra.mxu0 0
  %3906 = vmatprep.subr.bf16.mxu0 0
  %3907 = vmatpush1.bf16.msra.mxu0 0
  %3908 = vmatprep.subr.bf16.mxu0 0
  %3909 = vmatpush1.bf16.msra.mxu0 0
  %3910 = vmatprep.subr.bf16.mxu0 0
  %3911 = vmatpush1.bf16.msra.mxu0 0
  %3912 = vmatprep.subr.bf16.mxu0 0
  %3913 = vmatpush1.bf16.msra.mxu0 0
  %3914 = vmatprep.subr.bf16.mxu0 0
  %3915 = vmatpush1.bf16.msra.mxu0 0
  %3916 = vmatprep.subr.bf16.mxu0 0
  %3917 = vmatpush1.bf16.msra.mxu0 0
  %3918 = vmatprep.subr.bf16.mxu0 0
  %3919 = vmatpush1.bf16.msra.mxu0 0
  %3920 = vmatprep.subr.bf16.mxu0 0
  %3921 = vmatpush1.bf16.msra.mxu0 0
  %3922 = vmatprep.subr.bf16.mxu0 0
  %3923 = vmatpush1.bf16.msra.mxu0 0
  %3924 = vmatprep.subr.bf16.mxu0 0
  %3925 = vmatpush1.bf16.msra.mxu0 0
  %3926 = vmatprep.subr.bf16.mxu0 0
  %3927 = vmatpush1.bf16.msra.mxu0 0
  %3928 = vmatprep.subr.bf16.mxu0 0
  %3929 = vmatpush1.bf16.msra.mxu0 0
  %3930 = vmatprep.mubr.bf16.mxu0 0
  %3931 = vmatmul.mubr.bf16.gmra.mrb[0].mxu0 %v3893
  %v3932 = vpop.f32.mrb[0].mxu0
  %v3933 = vadd.f32 0.0, %v3932
  %v3934 = vpop.f32.mrb[0].mxu0
  %v3935 = vadd.f32 0.0, %v3934
  %v3936 = vpop.f32.mrb[0].mxu0
  %v3937 = vadd.f32 0.0, %v3936
  %v3938 = vpop.f32.mrb[0].mxu0
  %v3939 = vadd.f32 0.0, %v3938
  %3940 = vmatprep.mubr.bf16.mxu0 0
  %3941 = vmatmul.mubr.bf16.gmra.mrb[0].mxu0 %v3896
  %v3942 = vpop.f32.mrb[0].mxu0
  %v3943 = vadd.f32 0.0, %v3942
  %v3944 = vpop.f32.mrb[0].mxu0
  %v3945 = vadd.f32 0.0, %v3944
  %v3946 = vpop.f32.mrb[0].mxu0
  %v3947 = vpop.f32.mrb[0].mxu0
  %3948 = vdwg.mxu0
  %v3949 = vadd.f32 %v3699, %v3933
  %v3950 = vadd.f32 %v3700, %v3935
  %v3951 = vadd.f32 %v3701, %v3937
  %v3952 = vadd.f32 %v3702, %v3939
  %v3953 = vadd.f32 %v3703, %v3943
  %v3954 = vadd.f32 %v3704, %v3945
  %v3955 = vadd.f32 %v2547, %v3949
  %v3956 = vadd.f32 %v2549, %v3950
  %v3957 = vadd.f32 %v2551, %v3951
  %v3958 = vadd.f32 %v2553, %v3952
  %v3959 = vadd.f32 %v2557, %v3953
  %v3960 = vadd.f32 %v2559, %v3954
  %3962 = vset.pattern.permute.xlu0 20
  %3963 = vperm.xlu0 %3962, %v40
  %v3964 = vpop.permute.xlu0 %3963
  %3967 = vset.pattern.permute.xlu0 20
  %3968 = vperm.xlu0 %3967, %v41
  %v3969 = vpop.permute.xlu0 %3968
  %3972 = vset.pattern.permute.xlu0 20
  %3973 = vperm.xlu0 %3972, %v42
  %v3974 = vpop.permute.xlu0 %3973
  %v3976 = vadd.f32 %v3955, %v3964
  %v3977 = vadd.f32 %v3956, %v3964
  %v3978 = vadd.f32 %v3957, %v3969
  %v3979 = vadd.f32 %v3958, %v3969
  %v3980 = vadd.f32 %v3959, %v3974
  %v3981 = vadd.f32 %v3960, %v3974
  %3982 = vst [vmem:[%s4] sm:$0xff] %v3976
  %3983 = vst [vmem:[%s4 + $0x8] sm:$0xff] %v3977
  %3984 = vst [vmem:[%s4 + $0x20] sm:$0xff] %v3978
  %3985 = vst [vmem:[%s4 + $0x28] sm:$0xff] %v3979
  %3986 = vst [vmem:[%s4 + $0x40] sm:$0xf] %v3980
  %3987 = vst [vmem:[%s4 + $0x48] sm:$0xf] %v3981
  %v3988 = vpack.c.bf16 %v238, %v238
  %v3989 = vpack.c.bf16 %v240, %v240
  %3990 = vrot.lane.b32.xlu0 %v2700, 112
  %v3991 = vpop.permute.xlu0 %3990
  %3993 = vxpose.xlu0.c.b16.start [1/8] %v3991, 128
  %3994 = vxpose.xlu0.c.b16.cont [2/8] 0, 128
  %3995 = vxpose.xlu0.c.b16.cont [3/8] 0, 128
  %3996 = vxpose.xlu0.c.b16.cont [4/8] 0, 128
  %3997 = vxpose.xlu0.c.b16.cont [5/8] 0, 128
  %3998 = vxpose.xlu0.c.b16.cont [6/8] 0, 128
  %3999 = vxpose.xlu0.c.b16.cont [7/8] 0, 128
  %4000 = vxpose.xlu0.c.b16.end [8/8] 0, 128
  %v4001 = vpop.trf.xlu0
  %v4002 = vpop.trf.xlu0
  %v4003 = vpop.trf.xlu0
  %v4004 = vpop.trf.xlu0
  %v4005 = vpop.trf.xlu0
  %v4006 = vpop.trf.xlu0
  %v4007 = vpop.trf.xlu0
  %v4008 = vpop.trf.xlu0
  %v4011 = vrot.slane %v3988, 3
  %v4012 = vrot.slane %v3989, 3
  %v4014 = vsel %vm2723, %v4001, 0
  %v4017 = vsel %vm2727, %v4011, 0
  %v4020 = vsel %vm2727, %v4012, 0
  %4022 = vmatprep.subr.bf16.mxu0 %v4020
  %4023 = vmatpush1.bf16.msra.mxu0 %v4017
  %4024 = vmatprep.subr.bf16.mxu0 0
  %4025 = vmatpush1.bf16.msra.mxu0 0
  %4026 = vmatprep.subr.bf16.mxu0 0
  %4027 = vmatpush1.bf16.msra.mxu0 0
  %4028 = vmatprep.subr.bf16.mxu0 0
  %4029 = vmatpush1.bf16.msra.mxu0 0
  %4030 = vmatprep.subr.bf16.mxu0 0
  %4031 = vmatpush1.bf16.msra.mxu0 0
  %4032 = vmatprep.subr.bf16.mxu0 0
  %4033 = vmatpush1.bf16.msra.mxu0 0
  %4034 = vmatprep.subr.bf16.mxu0 0
  %4035 = vmatpush1.bf16.msra.mxu0 0
  %4036 = vmatprep.subr.bf16.mxu0 0
  %4037 = vmatpush1.bf16.msra.mxu0 0
  %4038 = vmatprep.subr.bf16.mxu0 0
  %4039 = vmatpush1.bf16.msra.mxu0 0
  %4040 = vmatprep.subr.bf16.mxu0 0
  %4041 = vmatpush1.bf16.msra.mxu0 0
  %4042 = vmatprep.subr.bf16.mxu0 0
  %4043 = vmatpush1.bf16.msra.mxu0 0
  %4044 = vmatprep.subr.bf16.mxu0 0
  %4045 = vmatpush1.bf16.msra.mxu0 0
  %4046 = vmatprep.subr.bf16.mxu0 0
  %4047 = vmatpush1.bf16.msra.mxu0 0
  %4048 = vmatprep.subr.bf16.mxu0 0
  %4049 = vmatpush1.bf16.msra.mxu0 0
  %4050 = vmatprep.subr.bf16.mxu0 0
  %4051 = vmatpush1.bf16.msra.mxu0 0
  %4052 = vmatprep.subr.bf16.mxu0 0
  %4053 = vmatpush1.bf16.msra.mxu0 0
  %4054 = vmatprep.mubr.bf16.mxu0 0
  %4055 = vmatmul.mubr.bf16.gmra.mrb[0].mxu0 %v4014
  %v4056 = vpop.f32.mrb[0].mxu0
  %v4057 = vadd.f32 0.0, %v4056
  %v4058 = vpop.f32.mrb[0].mxu0
  %v4059 = vadd.f32 0.0, %v4058
  %v4060 = vpop.f32.mrb[0].mxu0
  %v4061 = vadd.f32 0.0, %v4060
  %v4062 = vpop.f32.mrb[0].mxu0
  %v4063 = vadd.f32 0.0, %v4062
  %4064 = vdwg.mxu0
  %v4065 = vmul.f32 %v4057, 0.70710677
  %v4066 = vmul.f32 %v4059, 0.70710677
  %v4067 = vmul.f32 %v4061, 0.70710677
  %v4068 = vmul.f32 %v4063, 0.70710677
  %v4069 = vmax.f32 %v4065, %v4067
  %v4070 = vrot.slane %v4069, 4
  %v4071 = vmax.f32 %v4069, %v4070
  %v4072 = vrot.slane %v4071, 2
  %v4073 = vmax.f32 %v4071, %v4072
  %v4074 = vrot.slane %v4073, 1
  %v4075 = vmax.f32 %v4073, %v4074
  %v4076 = vmax.f32 %v4066, %v4068
  %v4077 = vrot.slane %v4076, 4
  %v4078 = vmax.f32 %v4076, %v4077
  %v4079 = vrot.slane %v4078, 2
  %v4080 = vmax.f32 %v4078, %v4079
  %v4081 = vrot.slane %v4080, 1
  %v4082 = vmax.f32 %v4080, %v4081
  %v4083 = vsub.f32 %v4065, %v4075
  %v4084 = vsub.f32 %v4066, %v4082
  %v4085 = vsub.f32 %v4067, %v4075
  %v4086 = vsub.f32 %v4068, %v4082
  %v4087 = vmul.f32 %v4083, 1.442695
  %v4088 = vpow.pop %v4087
  %v4089 = vmul.f32 %v4084, 1.442695
  %v4090 = vpow.pop %v4089
  %v4091 = vmul.f32 %v4085, 1.442695
  %v4092 = vpow.pop %v4091
  %v4093 = vmul.f32 %v4086, 1.442695
  %v4094 = vpow.pop %v4093
  %v4095 = vadd.f32 %v4088, %v4092
  %v4096 = vrot.slane %v4095, 4
  %v4097 = vadd.f32 %v4095, %v4096
  %v4098 = vrot.slane %v4097, 2
  %v4099 = vadd.f32 %v4097, %v4098
  %v4100 = vrot.slane %v4099, 1
  %v4101 = vadd.f32 %v4099, %v4100
  %v4102 = vadd.f32 %v4090, %v4094
  %v4103 = vrot.slane %v4102, 4
  %v4104 = vadd.f32 %v4102, %v4103
  %v4105 = vrot.slane %v4104, 2
  %v4106 = vadd.f32 %v4104, %v4105
  %v4107 = vrot.slane %v4106, 1
  %v4108 = vadd.f32 %v4106, %v4107
  %v4109 = vrcp.pop %v4101
  %v4110 = vrcp.pop %v4108
  %v4111 = vmul.f32 %v4088, %v4109
  %v4112 = vmul.f32 %v4090, %v4110
  %v4113 = vmul.f32 %v4092, %v4109
  %v4114 = vmul.f32 %v4094, %v4110
  %4115 = vrot.lane.b32.xlu0 %v2835, 112
  %v4116 = vpop.permute.xlu0 %4115
  %v4118 = vsel %vm2727, %v4116, 0
  %4120 = vmatprep.subr.bf16.mxu0 0
  %4121 = vmatpush1.bf16.msra.mxu0 %v4118
  %4122 = vmatprep.subr.bf16.mxu0 0
  %4123 = vmatpush1.bf16.msra.mxu0 0
  %4124 = vmatprep.subr.bf16.mxu0 0
  %4125 = vmatpush1.bf16.msra.mxu0 0
  %4126 = vmatprep.subr.bf16.mxu0 0
  %4127 = vmatpush1.bf16.msra.mxu0 0
  %4128 = vmatprep.subr.bf16.mxu0 0
  %4129 = vmatpush1.bf16.msra.mxu0 0
  %4130 = vmatprep.subr.bf16.mxu0 0
  %4131 = vmatpush1.bf16.msra.mxu0 0
  %4132 = vmatprep.subr.bf16.mxu0 0
  %4133 = vmatpush1.bf16.msra.mxu0 0
  %4134 = vmatprep.subr.bf16.mxu0 0
  %4135 = vmatpush1.bf16.msra.mxu0 0
  %4136 = vmatprep.subr.bf16.mxu0 0
  %4137 = vmatpush1.bf16.msra.mxu0 0
  %4138 = vmatprep.subr.bf16.mxu0 0
  %4139 = vmatpush1.bf16.msra.mxu0 0
  %4140 = vmatprep.subr.bf16.mxu0 0
  %4141 = vmatpush1.bf16.msra.mxu0 0
  %4142 = vmatprep.subr.bf16.mxu0 0
  %4143 = vmatpush1.bf16.msra.mxu0 0
  %4144 = vmatprep.subr.bf16.mxu0 0
  %4145 = vmatpush1.bf16.msra.mxu0 0
  %4146 = vmatprep.subr.bf16.mxu0 0
  %4147 = vmatpush1.bf16.msra.mxu0 0
  %4148 = vmatprep.subr.bf16.mxu0 0
  %4149 = vmatpush1.bf16.msra.mxu0 0
  %4150 = vmatprep.subr.bf16.mxu0 0
  %4151 = vmatpush1.bf16.msra.mxu0 0
  %4152 = vmatprep.mubr.bf16.mxu0 0
  %4153 = vmatmul.mubr.bf16.gmra.mrb[0].mxu0 %v2837
  %v4154 = vpop.f32.mrb[0].mxu0
  %v4155 = vadd.f32 0.0, %v4154
  %v4156 = vpop.f32.mrb[0].mxu0
  %v4157 = vpop.f32.mrb[0].mxu0
  %v4158 = vadd.f32 0.0, %v4157
  %v4159 = vpop.f32.mrb[0].mxu0
  %4160 = vmatprep.mubr.bf16.mxu0 0
  %4161 = vmatmul.mubr.bf16.gmra.mrb[0].mxu0 %v2840
  %v4162 = vpop.f32.mrb[0].mxu0
  %v4163 = vadd.f32 0.0, %v4162
  %v4164 = vpop.f32.mrb[0].mxu0
  %v4165 = vpop.f32.mrb[0].mxu0
  %v4166 = vpop.f32.mrb[0].mxu0
  %4167 = vdwg.mxu0
  %v4168 = vpack.c.bf16 %v4158, %v4155
  %v4169 = vpack.c.bf16 %v4163, %v4163
  %v4170 = vpack.c.bf16 %v4113, %v4111
  %v4171 = vpack.c.bf16 %v4114, %v4112
  %v4172 = vpack.c.bf16 %v244, %v244
  %v4173 = vpack.c.bf16 %v246, %v246
  %4174 = vrot.lane.b32.xlu0 %v2900, 112
  %v4175 = vpop.permute.xlu0 %4174
  %4177 = vxpose.xlu0.c.b16.start [1/8] %v4175, 128
  %4178 = vxpose.xlu0.c.b16.cont [2/8] 0, 128
  %4179 = vxpose.xlu0.c.b16.cont [3/8] 0, 128
  %4180 = vxpose.xlu0.c.b16.cont [4/8] 0, 128
  %4181 = vxpose.xlu0.c.b16.cont [5/8] 0, 128
  %4182 = vxpose.xlu0.c.b16.cont [6/8] 0, 128
  %4183 = vxpose.xlu0.c.b16.cont [7/8] 0, 128
  %4184 = vxpose.xlu0.c.b16.end [8/8] 0, 128
  %v4185 = vpop.trf.xlu0
  %v4186 = vpop.trf.xlu0
  %v4187 = vpop.trf.xlu0
  %v4188 = vpop.trf.xlu0
  %v4189 = vpop.trf.xlu0
  %v4190 = vpop.trf.xlu0
  %v4191 = vpop.trf.xlu0
  %v4192 = vpop.trf.xlu0
  %v4194 = vsel %vm2723, %v4185, 0
  %v4197 = vsel %vm2727, %v4172, 0
  %v4200 = vsel %vm2727, %v4173, 0
  %4202 = vmatprep.subr.bf16.mxu0 %v4200
  %4203 = vmatpush1.bf16.msra.mxu0 %v4197
  %4204 = vmatprep.subr.bf16.mxu0 0
  %4205 = vmatpush1.bf16.msra.mxu0 0
  %4206 = vmatprep.subr.bf16.mxu0 0
  %4207 = vmatpush1.bf16.msra.mxu0 0
  %4208 = vmatprep.subr.bf16.mxu0 0
  %4209 = vmatpush1.bf16.msra.mxu0 0
  %4210 = vmatprep.subr.bf16.mxu0 0
  %4211 = vmatpush1.bf16.msra.mxu0 0
  %4212 = vmatprep.subr.bf16.mxu0 0
  %4213 = vmatpush1.bf16.msra.mxu0 0
  %4214 = vmatprep.subr.bf16.mxu0 0
  %4215 = vmatpush1.bf16.msra.mxu0 0
  %4216 = vmatprep.subr.bf16.mxu0 0
  %4217 = vmatpush1.bf16.msra.mxu0 0
  %4218 = vmatprep.subr.bf16.mxu0 0
  %4219 = vmatpush1.bf16.msra.mxu0 0
  %4220 = vmatprep.subr.bf16.mxu0 0
  %4221 = vmatpush1.bf16.msra.mxu0 0
  %4222 = vmatprep.subr.bf16.mxu0 0
  %4223 = vmatpush1.bf16.msra.mxu0 0
  %4224 = vmatprep.subr.bf16.mxu0 0
  %4225 = vmatpush1.bf16.msra.mxu0 0
  %4226 = vmatprep.subr.bf16.mxu0 0
  %4227 = vmatpush1.bf16.msra.mxu0 0
  %4228 = vmatprep.subr.bf16.mxu0 0
  %4229 = vmatpush1.bf16.msra.mxu0 0
  %4230 = vmatprep.subr.bf16.mxu0 0
  %4231 = vmatpush1.bf16.msra.mxu0 0
  %4232 = vmatprep.subr.bf16.mxu0 0
  %4233 = vmatpush1.bf16.msra.mxu0 0
  %4234 = vmatprep.mubr.bf16.mxu0 0
  %4235 = vmatmul.mubr.bf16.gmra.mrb[0].mxu0 %v4194
  %v4236 = vpop.f32.mrb[0].mxu0
  %v4237 = vadd.f32 0.0, %v4236
  %v4238 = vpop.f32.mrb[0].mxu0
  %v4239 = vadd.f32 0.0, %v4238
  %v4240 = vpop.f32.mrb[0].mxu0
  %v4241 = vadd.f32 0.0, %v4240
  %v4242 = vpop.f32.mrb[0].mxu0
  %v4243 = vadd.f32 0.0, %v4242
  %4244 = vdwg.mxu0
  %v4245 = vmul.f32 %v4237, 0.70710677
  %v4246 = vmul.f32 %v4239, 0.70710677
  %v4247 = vmul.f32 %v4241, 0.70710677
  %v4248 = vmul.f32 %v4243, 0.70710677
  %v4249 = vmax.f32 %v4245, %v4247
  %v4250 = vrot.slane %v4249, 4
  %v4251 = vmax.f32 %v4249, %v4250
  %v4252 = vrot.slane %v4251, 2
  %v4253 = vmax.f32 %v4251, %v4252
  %v4254 = vrot.slane %v4253, 1
  %v4255 = vmax.f32 %v4253, %v4254
  %v4256 = vmax.f32 %v4246, %v4248
  %v4257 = vrot.slane %v4256, 4
  %v4258 = vmax.f32 %v4256, %v4257
  %v4259 = vrot.slane %v4258, 2
  %v4260 = vmax.f32 %v4258, %v4259
  %v4261 = vrot.slane %v4260, 1
  %v4262 = vmax.f32 %v4260, %v4261
  %v4263 = vsub.f32 %v4245, %v4255
  %v4264 = vsub.f32 %v4246, %v4262
  %v4265 = vsub.f32 %v4247, %v4255
  %v4266 = vsub.f32 %v4248, %v4262
  %v4267 = vmul.f32 %v4263, 1.442695
  %v4268 = vpow.pop %v4267
  %v4269 = vmul.f32 %v4264, 1.442695
  %v4270 = vpow.pop %v4269
  %v4271 = vmul.f32 %v4265, 1.442695
  %v4272 = vpow.pop %v4271
  %v4273 = vmul.f32 %v4266, 1.442695
  %v4274 = vpow.pop %v4273
  %v4275 = vadd.f32 %v4268, %v4272
  %v4276 = vrot.slane %v4275, 4
  %v4277 = vadd.f32 %v4275, %v4276
  %v4278 = vrot.slane %v4277, 2
  %v4279 = vadd.f32 %v4277, %v4278
  %v4280 = vrot.slane %v4279, 1
  %v4281 = vadd.f32 %v4279, %v4280
  %v4282 = vadd.f32 %v4270, %v4274
  %v4283 = vrot.slane %v4282, 4
  %v4284 = vadd.f32 %v4282, %v4283
  %v4285 = vrot.slane %v4284, 2
  %v4286 = vadd.f32 %v4284, %v4285
  %v4287 = vrot.slane %v4286, 1
  %v4288 = vadd.f32 %v4286, %v4287
  %v4289 = vrcp.pop %v4281
  %v4290 = vrcp.pop %v4288
  %v4291 = vmul.f32 %v4268, %v4289
  %v4292 = vmul.f32 %v4270, %v4290
  %v4293 = vmul.f32 %v4272, %v4289
  %v4294 = vmul.f32 %v4274, %v4290
  %4295 = vrot.lane.b32.xlu0 %v3024, 112
  %v4296 = vpop.permute.xlu0 %4295
  %v4298 = vsel %vm2727, %v4296, 0
  %4300 = vmatprep.subr.bf16.mxu0 0
  %4301 = vmatpush1.bf16.msra.mxu0 %v4298
  %4302 = vmatprep.subr.bf16.mxu0 0
  %4303 = vmatpush1.bf16.msra.mxu0 0
  %4304 = vmatprep.subr.bf16.mxu0 0
  %4305 = vmatpush1.bf16.msra.mxu0 0
  %4306 = vmatprep.subr.bf16.mxu0 0
  %4307 = vmatpush1.bf16.msra.mxu0 0
  %4308 = vmatprep.subr.bf16.mxu0 0
  %4309 = vmatpush1.bf16.msra.mxu0 0
  %4310 = vmatprep.subr.bf16.mxu0 0
  %4311 = vmatpush1.bf16.msra.mxu0 0
  %4312 = vmatprep.subr.bf16.mxu0 0
  %4313 = vmatpush1.bf16.msra.mxu0 0
  %4314 = vmatprep.subr.bf16.mxu0 0
  %4315 = vmatpush1.bf16.msra.mxu0 0
  %4316 = vmatprep.subr.bf16.mxu0 0
  %4317 = vmatpush1.bf16.msra.mxu0 0
  %4318 = vmatprep.subr.bf16.mxu0 0
  %4319 = vmatpush1.bf16.msra.mxu0 0
  %4320 = vmatprep.subr.bf16.mxu0 0
  %4321 = vmatpush1.bf16.msra.mxu0 0
  %4322 = vmatprep.subr.bf16.mxu0 0
  %4323 = vmatpush1.bf16.msra.mxu0 0
  %4324 = vmatprep.subr.bf16.mxu0 0
  %4325 = vmatpush1.bf16.msra.mxu0 0
  %4326 = vmatprep.subr.bf16.mxu0 0
  %4327 = vmatpush1.bf16.msra.mxu0 0
  %4328 = vmatprep.subr.bf16.mxu0 0
  %4329 = vmatpush1.bf16.msra.mxu0 0
  %4330 = vmatprep.subr.bf16.mxu0 0
  %4331 = vmatpush1.bf16.msra.mxu0 0
  %4332 = vmatprep.mubr.bf16.mxu0 0
  %4333 = vmatmul.mubr.bf16.gmra.mrb[0].mxu0 %v3026
  %v4334 = vpop.f32.mrb[0].mxu0
  %v4335 = vadd.f32 0.0, %v4334
  %v4336 = vpop.f32.mrb[0].mxu0
  %v4337 = vpop.f32.mrb[0].mxu0
  %v4338 = vadd.f32 0.0, %v4337
  %v4339 = vpop.f32.mrb[0].mxu0
  %4340 = vmatprep.mubr.bf16.mxu0 0
  %4341 = vmatmul.mubr.bf16.gmra.mrb[0].mxu0 %v3029
  %v4342 = vpop.f32.mrb[0].mxu0
  %v4343 = vadd.f32 0.0, %v4342
  %v4344 = vpop.f32.mrb[0].mxu0
  %v4345 = vpop.f32.mrb[0].mxu0
  %v4346 = vpop.f32.mrb[0].mxu0
  %4347 = vdwg.mxu0
  %v4348 = vpack.c.bf16 %v4338, %v4335
  %v4349 = vpack.c.bf16 %v4343, %v4343
  %v4350 = vpack.c.bf16 %v4293, %v4291
  %v4351 = vpack.c.bf16 %v4294, %v4292
  %v4353 = vsel %vm3086, %v4348, 0
  %v4356 = vsel %vm3086, %v4349, 0
  %4358 = vmatprep.subr.bf16.mxu0 %v4351
  %4359 = vmatpush1.bf16.msra.mxu0 %v4350
  %4360 = vmatprep.subr.bf16.mxu0 0
  %4361 = vmatpush1.bf16.msra.mxu0 0
  %4362 = vmatprep.subr.bf16.mxu0 0
  %4363 = vmatpush1.bf16.msra.mxu0 0
  %4364 = vmatprep.subr.bf16.mxu0 0
  %4365 = vmatpush1.bf16.msra.mxu0 0
  %4366 = vmatprep.subr.bf16.mxu0 0
  %4367 = vmatpush1.bf16.msra.mxu0 0
  %4368 = vmatprep.subr.bf16.mxu0 0
  %4369 = vmatpush1.bf16.msra.mxu0 0
  %4370 = vmatprep.subr.bf16.mxu0 0
  %4371 = vmatpush1.bf16.msra.mxu0 0
  %4372 = vmatprep.subr.bf16.mxu0 0
  %4373 = vmatpush1.bf16.msra.mxu0 0
  %4374 = vmatprep.subr.bf16.mxu0 0
  %4375 = vmatpush1.bf16.msra.mxu0 0
  %4376 = vmatprep.subr.bf16.mxu0 0
  %4377 = vmatpush1.bf16.msra.mxu0 0
  %4378 = vmatprep.subr.bf16.mxu0 0
  %4379 = vmatpush1.bf16.msra.mxu0 0
  %4380 = vmatprep.subr.bf16.mxu0 0
  %4381 = vmatpush1.bf16.msra.mxu0 0
  %4382 = vmatprep.subr.bf16.mxu0 0
  %4383 = vmatpush1.bf16.msra.mxu0 0
  %4384 = vmatprep.subr.bf16.mxu0 0
  %4385 = vmatpush1.bf16.msra.mxu0 0
  %4386 = vmatprep.subr.bf16.mxu0 0
  %4387 = vmatpush1.bf16.msra.mxu0 0
  %4388 = vmatprep.subr.bf16.mxu0 0
  %4389 = vmatpush1.bf16.msra.mxu0 0
  %4390 = vmatprep.mubr.bf16.mxu0 0
  %4391 = vmatmul.mubr.bf16.gmra.mrb[0].mxu0 %v4353
  %v4392 = vpop.f32.mrb[0].mxu0
  %v4393 = vadd.f32 0.0, %v4392
  %v4394 = vpop.f32.mrb[0].mxu0
  %v4395 = vadd.f32 0.0, %v4394
  %v4396 = vpop.f32.mrb[0].mxu0
  %v4397 = vadd.f32 0.0, %v4396
  %v4398 = vpop.f32.mrb[0].mxu0
  %v4399 = vadd.f32 0.0, %v4398
  %4400 = vmatprep.mubr.bf16.mxu0 0
  %4401 = vmatmul.mubr.bf16.gmra.mrb[0].mxu0 %v4356
  %v4402 = vpop.f32.mrb[0].mxu0
  %v4403 = vadd.f32 0.0, %v4402
  %v4404 = vpop.f32.mrb[0].mxu0
  %v4405 = vadd.f32 0.0, %v4404
  %v4406 = vpop.f32.mrb[0].mxu0
  %v4407 = vpop.f32.mrb[0].mxu0
  %4408 = vdwg.mxu0
  %v4410 = vsel %vm3086, %v4168, 0
  %v4413 = vsel %vm3086, %v4169, 0
  %4415 = vmatprep.subr.bf16.mxu0 %v4171
  %4416 = vmatpush1.bf16.msra.mxu0 %v4170
  %4417 = vmatprep.subr.bf16.mxu0 0
  %4418 = vmatpush1.bf16.msra.mxu0 0
  %4419 = vmatprep.subr.bf16.mxu0 0
  %4420 = vmatpush1.bf16.msra.mxu0 0
  %4421 = vmatprep.subr.bf16.mxu0 0
  %4422 = vmatpush1.bf16.msra.mxu0 0
  %4423 = vmatprep.subr.bf16.mxu0 0
  %4424 = vmatpush1.bf16.msra.mxu0 0
  %4425 = vmatprep.subr.bf16.mxu0 0
  %4426 = vmatpush1.bf16.msra.mxu0 0
  %4427 = vmatprep.subr.bf16.mxu0 0
  %4428 = vmatpush1.bf16.msra.mxu0 0
  %4429 = vmatprep.subr.bf16.mxu0 0
  %4430 = vmatpush1.bf16.msra.mxu0 0
  %4431 = vmatprep.subr.bf16.mxu0 0
  %4432 = vmatpush1.bf16.msra.mxu0 0
  %4433 = vmatprep.subr.bf16.mxu0 0
  %4434 = vmatpush1.bf16.msra.mxu0 0
  %4435 = vmatprep.subr.bf16.mxu0 0
  %4436 = vmatpush1.bf16.msra.mxu0 0
  %4437 = vmatprep.subr.bf16.mxu0 0
  %4438 = vmatpush1.bf16.msra.mxu0 0
  %4439 = vmatprep.subr.bf16.mxu0 0
  %4440 = vmatpush1.bf16.msra.mxu0 0
  %4441 = vmatprep.subr.bf16.mxu0 0
  %4442 = vmatpush1.bf16.msra.mxu0 0
  %4443 = vmatprep.subr.bf16.mxu0 0
  %4444 = vmatpush1.bf16.msra.mxu0 0
  %4445 = vmatprep.subr.bf16.mxu0 0
  %4446 = vmatpush1.bf16.msra.mxu0 0
  %4447 = vmatprep.mubr.bf16.mxu0 0
  %4448 = vmatmul.mubr.bf16.gmra.mrb[0].mxu0 %v4410
  %v4449 = vpop.f32.mrb[0].mxu0
  %v4450 = vadd.f32 %v4393, %v4449
  %v4451 = vpop.f32.mrb[0].mxu0
  %v4452 = vadd.f32 %v4395, %v4451
  %v4453 = vpop.f32.mrb[0].mxu0
  %v4454 = vadd.f32 %v4397, %v4453
  %v4455 = vpop.f32.mrb[0].mxu0
  %v4456 = vadd.f32 %v4399, %v4455
  %4457 = vmatprep.mubr.bf16.mxu0 0
  %4458 = vmatmul.mubr.bf16.gmra.mrb[0].mxu0 %v4413
  %v4459 = vpop.f32.mrb[0].mxu0
  %v4460 = vadd.f32 %v4403, %v4459
  %v4461 = vpop.f32.mrb[0].mxu0
  %v4462 = vadd.f32 %v4405, %v4461
  %v4463 = vpop.f32.mrb[0].mxu0
  %v4464 = vpop.f32.mrb[0].mxu0
  %4465 = vdwg.mxu0
  %4466 = vrot.lane.b32.xlu0 %v3201, 112
  %v4467 = vpop.permute.xlu0 %4466
  %4469 = vxpose.xlu0.c.b16.start [1/8] %v4467, 128
  %4470 = vxpose.xlu0.c.b16.cont [2/8] 0, 128
  %4471 = vxpose.xlu0.c.b16.cont [3/8] 0, 128
  %4472 = vxpose.xlu0.c.b16.cont [4/8] 0, 128
  %4473 = vxpose.xlu0.c.b16.cont [5/8] 0, 128
  %4474 = vxpose.xlu0.c.b16.cont [6/8] 0, 128
  %4475 = vxpose.xlu0.c.b16.cont [7/8] 0, 128
  %4476 = vxpose.xlu0.c.b16.end [8/8] 0, 128
  %v4477 = vpop.trf.xlu0
  %v4478 = vpop.trf.xlu0
  %v4479 = vpop.trf.xlu0
  %v4480 = vpop.trf.xlu0
  %v4481 = vpop.trf.xlu0
  %v4482 = vpop.trf.xlu0
  %v4483 = vpop.trf.xlu0
  %v4484 = vpop.trf.xlu0
  %v4487 = vrot.slane %v4172, 1
  %v4488 = vrot.slane %v4173, 1
  %v4490 = vsel %vm2723, %v4477, 0
  %v4493 = vsel %vm2727, %v4487, 0
  %v4496 = vsel %vm2727, %v4488, 0
  %4498 = vmatprep.subr.bf16.mxu0 %v4496
  %4499 = vmatpush1.bf16.msra.mxu0 %v4493
  %4500 = vmatprep.subr.bf16.mxu0 0
  %4501 = vmatpush1.bf16.msra.mxu0 0
  %4502 = vmatprep.subr.bf16.mxu0 0
  %4503 = vmatpush1.bf16.msra.mxu0 0
  %4504 = vmatprep.subr.bf16.mxu0 0
  %4505 = vmatpush1.bf16.msra.mxu0 0
  %4506 = vmatprep.subr.bf16.mxu0 0
  %4507 = vmatpush1.bf16.msra.mxu0 0
  %4508 = vmatprep.subr.bf16.mxu0 0
  %4509 = vmatpush1.bf16.msra.mxu0 0
  %4510 = vmatprep.subr.bf16.mxu0 0
  %4511 = vmatpush1.bf16.msra.mxu0 0
  %4512 = vmatprep.subr.bf16.mxu0 0
  %4513 = vmatpush1.bf16.msra.mxu0 0
  %4514 = vmatprep.subr.bf16.mxu0 0
  %4515 = vmatpush1.bf16.msra.mxu0 0
  %4516 = vmatprep.subr.bf16.mxu0 0
  %4517 = vmatpush1.bf16.msra.mxu0 0
  %4518 = vmatprep.subr.bf16.mxu0 0
  %4519 = vmatpush1.bf16.msra.mxu0 0
  %4520 = vmatprep.subr.bf16.mxu0 0
  %4521 = vmatpush1.bf16.msra.mxu0 0
  %4522 = vmatprep.subr.bf16.mxu0 0
  %4523 = vmatpush1.bf16.msra.mxu0 0
  %4524 = vmatprep.subr.bf16.mxu0 0
  %4525 = vmatpush1.bf16.msra.mxu0 0
  %4526 = vmatprep.subr.bf16.mxu0 0
  %4527 = vmatpush1.bf16.msra.mxu0 0
  %4528 = vmatprep.subr.bf16.mxu0 0
  %4529 = vmatpush1.bf16.msra.mxu0 0
  %4530 = vmatprep.mubr.bf16.mxu0 0
  %4531 = vmatmul.mubr.bf16.gmra.mrb[0].mxu0 %v4490
  %v4532 = vpop.f32.mrb[0].mxu0
  %v4533 = vadd.f32 0.0, %v4532
  %v4534 = vpop.f32.mrb[0].mxu0
  %v4535 = vadd.f32 0.0, %v4534
  %v4536 = vpop.f32.mrb[0].mxu0
  %v4537 = vadd.f32 0.0, %v4536
  %v4538 = vpop.f32.mrb[0].mxu0
  %v4539 = vadd.f32 0.0, %v4538
  %4540 = vdwg.mxu0
  %v4541 = vmul.f32 %v4533, 0.70710677
  %v4542 = vmul.f32 %v4535, 0.70710677
  %v4543 = vmul.f32 %v4537, 0.70710677
  %v4544 = vmul.f32 %v4539, 0.70710677
  %v4545 = vmax.f32 %v4541, %v4543
  %v4546 = vrot.slane %v4545, 4
  %v4547 = vmax.f32 %v4545, %v4546
  %v4548 = vrot.slane %v4547, 2
  %v4549 = vmax.f32 %v4547, %v4548
  %v4550 = vrot.slane %v4549, 1
  %v4551 = vmax.f32 %v4549, %v4550
  %v4552 = vmax.f32 %v4542, %v4544
  %v4553 = vrot.slane %v4552, 4
  %v4554 = vmax.f32 %v4552, %v4553
  %v4555 = vrot.slane %v4554, 2
  %v4556 = vmax.f32 %v4554, %v4555
  %v4557 = vrot.slane %v4556, 1
  %v4558 = vmax.f32 %v4556, %v4557
  %v4559 = vsub.f32 %v4541, %v4551
  %v4560 = vsub.f32 %v4542, %v4558
  %v4561 = vsub.f32 %v4543, %v4551
  %v4562 = vsub.f32 %v4544, %v4558
  %v4563 = vmul.f32 %v4559, 1.442695
  %v4564 = vpow.pop %v4563
  %v4565 = vmul.f32 %v4560, 1.442695
  %v4566 = vpow.pop %v4565
  %v4567 = vmul.f32 %v4561, 1.442695
  %v4568 = vpow.pop %v4567
  %v4569 = vmul.f32 %v4562, 1.442695
  %v4570 = vpow.pop %v4569
  %v4571 = vadd.f32 %v4564, %v4568
  %v4572 = vrot.slane %v4571, 4
  %v4573 = vadd.f32 %v4571, %v4572
  %v4574 = vrot.slane %v4573, 2
  %v4575 = vadd.f32 %v4573, %v4574
  %v4576 = vrot.slane %v4575, 1
  %v4577 = vadd.f32 %v4575, %v4576
  %v4578 = vadd.f32 %v4566, %v4570
  %v4579 = vrot.slane %v4578, 4
  %v4580 = vadd.f32 %v4578, %v4579
  %v4581 = vrot.slane %v4580, 2
  %v4582 = vadd.f32 %v4580, %v4581
  %v4583 = vrot.slane %v4582, 1
  %v4584 = vadd.f32 %v4582, %v4583
  %v4585 = vrcp.pop %v4577
  %v4586 = vrcp.pop %v4584
  %v4587 = vmul.f32 %v4564, %v4585
  %v4588 = vmul.f32 %v4566, %v4586
  %v4589 = vmul.f32 %v4568, %v4585
  %v4590 = vmul.f32 %v4570, %v4586
  %4591 = vrot.lane.b32.xlu0 %v3329, 112
  %v4592 = vpop.permute.xlu0 %4591
  %v4594 = vsel %vm2727, %v4592, 0
  %4596 = vmatprep.subr.bf16.mxu0 0
  %4597 = vmatpush1.bf16.msra.mxu0 %v4594
  %4598 = vmatprep.subr.bf16.mxu0 0
  %4599 = vmatpush1.bf16.msra.mxu0 0
  %4600 = vmatprep.subr.bf16.mxu0 0
  %4601 = vmatpush1.bf16.msra.mxu0 0
  %4602 = vmatprep.subr.bf16.mxu0 0
  %4603 = vmatpush1.bf16.msra.mxu0 0
  %4604 = vmatprep.subr.bf16.mxu0 0
  %4605 = vmatpush1.bf16.msra.mxu0 0
  %4606 = vmatprep.subr.bf16.mxu0 0
  %4607 = vmatpush1.bf16.msra.mxu0 0
  %4608 = vmatprep.subr.bf16.mxu0 0
  %4609 = vmatpush1.bf16.msra.mxu0 0
  %4610 = vmatprep.subr.bf16.mxu0 0
  %4611 = vmatpush1.bf16.msra.mxu0 0
  %4612 = vmatprep.subr.bf16.mxu0 0
  %4613 = vmatpush1.bf16.msra.mxu0 0
  %4614 = vmatprep.subr.bf16.mxu0 0
  %4615 = vmatpush1.bf16.msra.mxu0 0
  %4616 = vmatprep.subr.bf16.mxu0 0
  %4617 = vmatpush1.bf16.msra.mxu0 0
  %4618 = vmatprep.subr.bf16.mxu0 0
  %4619 = vmatpush1.bf16.msra.mxu0 0
  %4620 = vmatprep.subr.bf16.mxu0 0
  %4621 = vmatpush1.bf16.msra.mxu0 0
  %4622 = vmatprep.subr.bf16.mxu0 0
  %4623 = vmatpush1.bf16.msra.mxu0 0
  %4624 = vmatprep.subr.bf16.mxu0 0
  %4625 = vmatpush1.bf16.msra.mxu0 0
  %4626 = vmatprep.subr.bf16.mxu0 0
  %4627 = vmatpush1.bf16.msra.mxu0 0
  %4628 = vmatprep.mubr.bf16.mxu0 0
  %4629 = vmatmul.mubr.bf16.gmra.mrb[0].mxu0 %v3331
  %v4630 = vpop.f32.mrb[0].mxu0
  %v4631 = vadd.f32 0.0, %v4630
  %v4632 = vpop.f32.mrb[0].mxu0
  %v4633 = vpop.f32.mrb[0].mxu0
  %v4634 = vadd.f32 0.0, %v4633
  %v4635 = vpop.f32.mrb[0].mxu0
  %4636 = vmatprep.mubr.bf16.mxu0 0
  %4637 = vmatmul.mubr.bf16.gmra.mrb[0].mxu0 %v3334
  %v4638 = vpop.f32.mrb[0].mxu0
  %v4639 = vadd.f32 0.0, %v4638
  %v4640 = vpop.f32.mrb[0].mxu0
  %v4641 = vpop.f32.mrb[0].mxu0
  %v4642 = vpop.f32.mrb[0].mxu0
  %4643 = vdwg.mxu0
  %v4644 = vpack.c.bf16 %v4634, %v4631
  %v4645 = vpack.c.bf16 %v4639, %v4639
  %v4646 = vpack.c.bf16 %v4589, %v4587
  %v4647 = vpack.c.bf16 %v4590, %v4588
  %v4649 = vsel %vm3086, %v4644, 0
  %v4652 = vsel %vm3086, %v4645, 0
  %4654 = vmatprep.subr.bf16.mxu0 %v4647
  %4655 = vmatpush1.bf16.msra.mxu0 %v4646
  %4656 = vmatprep.subr.bf16.mxu0 0
  %4657 = vmatpush1.bf16.msra.mxu0 0
  %4658 = vmatprep.subr.bf16.mxu0 0
  %4659 = vmatpush1.bf16.msra.mxu0 0
  %4660 = vmatprep.subr.bf16.mxu0 0
  %4661 = vmatpush1.bf16.msra.mxu0 0
  %4662 = vmatprep.subr.bf16.mxu0 0
  %4663 = vmatpush1.bf16.msra.mxu0 0
  %4664 = vmatprep.subr.bf16.mxu0 0
  %4665 = vmatpush1.bf16.msra.mxu0 0
  %4666 = vmatprep.subr.bf16.mxu0 0
  %4667 = vmatpush1.bf16.msra.mxu0 0
  %4668 = vmatprep.subr.bf16.mxu0 0
  %4669 = vmatpush1.bf16.msra.mxu0 0
  %4670 = vmatprep.subr.bf16.mxu0 0
  %4671 = vmatpush1.bf16.msra.mxu0 0
  %4672 = vmatprep.subr.bf16.mxu0 0
  %4673 = vmatpush1.bf16.msra.mxu0 0
  %4674 = vmatprep.subr.bf16.mxu0 0
  %4675 = vmatpush1.bf16.msra.mxu0 0
  %4676 = vmatprep.subr.bf16.mxu0 0
  %4677 = vmatpush1.bf16.msra.mxu0 0
  %4678 = vmatprep.subr.bf16.mxu0 0
  %4679 = vmatpush1.bf16.msra.mxu0 0
  %4680 = vmatprep.subr.bf16.mxu0 0
  %4681 = vmatpush1.bf16.msra.mxu0 0
  %4682 = vmatprep.subr.bf16.mxu0 0
  %4683 = vmatpush1.bf16.msra.mxu0 0
  %4684 = vmatprep.subr.bf16.mxu0 0
  %4685 = vmatpush1.bf16.msra.mxu0 0
  %4686 = vmatprep.mubr.bf16.mxu0 0
  %4687 = vmatmul.mubr.bf16.gmra.mrb[0].mxu0 %v4649
  %v4688 = vpop.f32.mrb[0].mxu0
  %v4689 = vadd.f32 0.0, %v4688
  %v4690 = vpop.f32.mrb[0].mxu0
  %v4691 = vadd.f32 0.0, %v4690
  %v4692 = vpop.f32.mrb[0].mxu0
  %v4693 = vadd.f32 0.0, %v4692
  %v4694 = vpop.f32.mrb[0].mxu0
  %v4695 = vadd.f32 0.0, %v4694
  %4696 = vmatprep.mubr.bf16.mxu0 0
  %4697 = vmatmul.mubr.bf16.gmra.mrb[0].mxu0 %v4652
  %v4698 = vpop.f32.mrb[0].mxu0
  %v4699 = vadd.f32 0.0, %v4698
  %v4700 = vpop.f32.mrb[0].mxu0
  %v4701 = vadd.f32 0.0, %v4700
  %v4702 = vpop.f32.mrb[0].mxu0
  %v4703 = vpop.f32.mrb[0].mxu0
  %4704 = vdwg.mxu0
  %v4705 = vadd.f32 %v4450, %v4689
  %v4706 = vadd.f32 %v4452, %v4691
  %v4707 = vadd.f32 %v4454, %v4693
  %v4708 = vadd.f32 %v4456, %v4695
  %v4709 = vadd.f32 %v4460, %v4699
  %v4710 = vadd.f32 %v4462, %v4701
  %4711 = vrot.lane.b32.xlu0 %v3454, 112
  %v4712 = vpop.permute.xlu0 %4711
  %4714 = vxpose.xlu0.c.b16.start [1/8] %v4712, 128
  %4715 = vxpose.xlu0.c.b16.cont [2/8] 0, 128
  %4716 = vxpose.xlu0.c.b16.cont [3/8] 0, 128
  %4717 = vxpose.xlu0.c.b16.cont [4/8] 0, 128
  %4718 = vxpose.xlu0.c.b16.cont [5/8] 0, 128
  %4719 = vxpose.xlu0.c.b16.cont [6/8] 0, 128
  %4720 = vxpose.xlu0.c.b16.cont [7/8] 0, 128
  %4721 = vxpose.xlu0.c.b16.end [8/8] 0, 128
  %v4722 = vpop.trf.xlu0
  %v4723 = vpop.trf.xlu0
  %v4724 = vpop.trf.xlu0
  %v4725 = vpop.trf.xlu0
  %v4726 = vpop.trf.xlu0
  %v4727 = vpop.trf.xlu0
  %v4728 = vpop.trf.xlu0
  %v4729 = vpop.trf.xlu0
  %v4730 = vrot.slane %v4172, 2
  %v4731 = vrot.slane %v4173, 2
  %v4733 = vsel %vm2723, %v4722, 0
  %v4736 = vsel %vm2727, %v4730, 0
  %v4739 = vsel %vm2727, %v4731, 0
  %4741 = vmatprep.subr.bf16.mxu0 %v4739
  %4742 = vmatpush1.bf16.msra.mxu0 %v4736
  %4743 = vmatprep.subr.bf16.mxu0 0
  %4744 = vmatpush1.bf16.msra.mxu0 0
  %4745 = vmatprep.subr.bf16.mxu0 0
  %4746 = vmatpush1.bf16.msra.mxu0 0
  %4747 = vmatprep.subr.bf16.mxu0 0
  %4748 = vmatpush1.bf16.msra.mxu0 0
  %4749 = vmatprep.subr.bf16.mxu0 0
  %4750 = vmatpush1.bf16.msra.mxu0 0
  %4751 = vmatprep.subr.bf16.mxu0 0
  %4752 = vmatpush1.bf16.msra.mxu0 0
  %4753 = vmatprep.subr.bf16.mxu0 0
  %4754 = vmatpush1.bf16.msra.mxu0 0
  %4755 = vmatprep.subr.bf16.mxu0 0
  %4756 = vmatpush1.bf16.msra.mxu0 0
  %4757 = vmatprep.subr.bf16.mxu0 0
  %4758 = vmatpush1.bf16.msra.mxu0 0
  %4759 = vmatprep.subr.bf16.mxu0 0
  %4760 = vmatpush1.bf16.msra.mxu0 0
  %4761 = vmatprep.subr.bf16.mxu0 0
  %4762 = vmatpush1.bf16.msra.mxu0 0
  %4763 = vmatprep.subr.bf16.mxu0 0
  %4764 = vmatpush1.bf16.msra.mxu0 0
  %4765 = vmatprep.subr.bf16.mxu0 0
  %4766 = vmatpush1.bf16.msra.mxu0 0
  %4767 = vmatprep.subr.bf16.mxu0 0
  %4768 = vmatpush1.bf16.msra.mxu0 0
  %4769 = vmatprep.subr.bf16.mxu0 0
  %4770 = vmatpush1.bf16.msra.mxu0 0
  %4771 = vmatprep.subr.bf16.mxu0 0
  %4772 = vmatpush1.bf16.msra.mxu0 0
  %4773 = vmatprep.mubr.bf16.mxu0 0
  %4774 = vmatmul.mubr.bf16.gmra.mrb[0].mxu0 %v4733
  %v4775 = vpop.f32.mrb[0].mxu0
  %v4776 = vadd.f32 0.0, %v4775
  %v4777 = vpop.f32.mrb[0].mxu0
  %v4778 = vadd.f32 0.0, %v4777
  %v4779 = vpop.f32.mrb[0].mxu0
  %v4780 = vadd.f32 0.0, %v4779
  %v4781 = vpop.f32.mrb[0].mxu0
  %v4782 = vadd.f32 0.0, %v4781
  %4783 = vdwg.mxu0
  %v4784 = vmul.f32 %v4776, 0.70710677
  %v4785 = vmul.f32 %v4778, 0.70710677
  %v4786 = vmul.f32 %v4780, 0.70710677
  %v4787 = vmul.f32 %v4782, 0.70710677
  %v4788 = vmax.f32 %v4784, %v4786
  %v4789 = vrot.slane %v4788, 4
  %v4790 = vmax.f32 %v4788, %v4789
  %v4791 = vrot.slane %v4790, 2
  %v4792 = vmax.f32 %v4790, %v4791
  %v4793 = vrot.slane %v4792, 1
  %v4794 = vmax.f32 %v4792, %v4793
  %v4795 = vmax.f32 %v4785, %v4787
  %v4796 = vrot.slane %v4795, 4
  %v4797 = vmax.f32 %v4795, %v4796
  %v4798 = vrot.slane %v4797, 2
  %v4799 = vmax.f32 %v4797, %v4798
  %v4800 = vrot.slane %v4799, 1
  %v4801 = vmax.f32 %v4799, %v4800
  %v4802 = vsub.f32 %v4784, %v4794
  %v4803 = vsub.f32 %v4785, %v4801
  %v4804 = vsub.f32 %v4786, %v4794
  %v4805 = vsub.f32 %v4787, %v4801
  %v4806 = vmul.f32 %v4802, 1.442695
  %v4807 = vpow.pop %v4806
  %v4808 = vmul.f32 %v4803, 1.442695
  %v4809 = vpow.pop %v4808
  %v4810 = vmul.f32 %v4804, 1.442695
  %v4811 = vpow.pop %v4810
  %v4812 = vmul.f32 %v4805, 1.442695
  %v4813 = vpow.pop %v4812
  %v4814 = vadd.f32 %v4807, %v4811
  %v4815 = vrot.slane %v4814, 4
  %v4816 = vadd.f32 %v4814, %v4815
  %v4817 = vrot.slane %v4816, 2
  %v4818 = vadd.f32 %v4816, %v4817
  %v4819 = vrot.slane %v4818, 1
  %v4820 = vadd.f32 %v4818, %v4819
  %v4821 = vadd.f32 %v4809, %v4813
  %v4822 = vrot.slane %v4821, 4
  %v4823 = vadd.f32 %v4821, %v4822
  %v4824 = vrot.slane %v4823, 2
  %v4825 = vadd.f32 %v4823, %v4824
  %v4826 = vrot.slane %v4825, 1
  %v4827 = vadd.f32 %v4825, %v4826
  %v4828 = vrcp.pop %v4820
  %v4829 = vrcp.pop %v4827
  %v4830 = vmul.f32 %v4807, %v4828
  %v4831 = vmul.f32 %v4809, %v4829
  %v4832 = vmul.f32 %v4811, %v4828
  %v4833 = vmul.f32 %v4813, %v4829
  %4834 = vrot.lane.b32.xlu0 %v3576, 112
  %v4835 = vpop.permute.xlu0 %4834
  %v4837 = vsel %vm2727, %v4835, 0
  %4839 = vmatprep.subr.bf16.mxu0 0
  %4840 = vmatpush1.bf16.msra.mxu0 %v4837
  %4841 = vmatprep.subr.bf16.mxu0 0
  %4842 = vmatpush1.bf16.msra.mxu0 0
  %4843 = vmatprep.subr.bf16.mxu0 0
  %4844 = vmatpush1.bf16.msra.mxu0 0
  %4845 = vmatprep.subr.bf16.mxu0 0
  %4846 = vmatpush1.bf16.msra.mxu0 0
  %4847 = vmatprep.subr.bf16.mxu0 0
  %4848 = vmatpush1.bf16.msra.mxu0 0
  %4849 = vmatprep.subr.bf16.mxu0 0
  %4850 = vmatpush1.bf16.msra.mxu0 0
  %4851 = vmatprep.subr.bf16.mxu0 0
  %4852 = vmatpush1.bf16.msra.mxu0 0
  %4853 = vmatprep.subr.bf16.mxu0 0
  %4854 = vmatpush1.bf16.msra.mxu0 0
  %4855 = vmatprep.subr.bf16.mxu0 0
  %4856 = vmatpush1.bf16.msra.mxu0 0
  %4857 = vmatprep.subr.bf16.mxu0 0
  %4858 = vmatpush1.bf16.msra.mxu0 0
  %4859 = vmatprep.subr.bf16.mxu0 0
  %4860 = vmatpush1.bf16.msra.mxu0 0
  %4861 = vmatprep.subr.bf16.mxu0 0
  %4862 = vmatpush1.bf16.msra.mxu0 0
  %4863 = vmatprep.subr.bf16.mxu0 0
  %4864 = vmatpush1.bf16.msra.mxu0 0
  %4865 = vmatprep.subr.bf16.mxu0 0
  %4866 = vmatpush1.bf16.msra.mxu0 0
  %4867 = vmatprep.subr.bf16.mxu0 0
  %4868 = vmatpush1.bf16.msra.mxu0 0
  %4869 = vmatprep.subr.bf16.mxu0 0
  %4870 = vmatpush1.bf16.msra.mxu0 0
  %4871 = vmatprep.mubr.bf16.mxu0 0
  %4872 = vmatmul.mubr.bf16.gmra.mrb[0].mxu0 %v3582
  %v4873 = vpop.f32.mrb[0].mxu0
  %v4874 = vadd.f32 0.0, %v4873
  %v4875 = vpop.f32.mrb[0].mxu0
  %v4876 = vpop.f32.mrb[0].mxu0
  %v4877 = vadd.f32 0.0, %v4876
  %v4878 = vpop.f32.mrb[0].mxu0
  %4879 = vmatprep.mubr.bf16.mxu0 0
  %4880 = vmatmul.mubr.bf16.gmra.mrb[0].mxu0 %v3585
  %v4881 = vpop.f32.mrb[0].mxu0
  %v4882 = vadd.f32 0.0, %v4881
  %v4883 = vpop.f32.mrb[0].mxu0
  %v4884 = vpop.f32.mrb[0].mxu0
  %v4885 = vpop.f32.mrb[0].mxu0
  %4886 = vdwg.mxu0
  %v4887 = vpack.c.bf16 %v4877, %v4874
  %v4888 = vpack.c.bf16 %v4882, %v4882
  %v4889 = vpack.c.bf16 %v4832, %v4830
  %v4890 = vpack.c.bf16 %v4833, %v4831
  %v4892 = vsel %vm3086, %v4887, 0
  %v4895 = vsel %vm3086, %v4888, 0
  %4897 = vmatprep.subr.bf16.mxu0 %v4890
  %4898 = vmatpush1.bf16.msra.mxu0 %v4889
  %4899 = vmatprep.subr.bf16.mxu0 0
  %4900 = vmatpush1.bf16.msra.mxu0 0
  %4901 = vmatprep.subr.bf16.mxu0 0
  %4902 = vmatpush1.bf16.msra.mxu0 0
  %4903 = vmatprep.subr.bf16.mxu0 0
  %4904 = vmatpush1.bf16.msra.mxu0 0
  %4905 = vmatprep.subr.bf16.mxu0 0
  %4906 = vmatpush1.bf16.msra.mxu0 0
  %4907 = vmatprep.subr.bf16.mxu0 0
  %4908 = vmatpush1.bf16.msra.mxu0 0
  %4909 = vmatprep.subr.bf16.mxu0 0
  %4910 = vmatpush1.bf16.msra.mxu0 0
  %4911 = vmatprep.subr.bf16.mxu0 0
  %4912 = vmatpush1.bf16.msra.mxu0 0
  %4913 = vmatprep.subr.bf16.mxu0 0
  %4914 = vmatpush1.bf16.msra.mxu0 0
  %4915 = vmatprep.subr.bf16.mxu0 0
  %4916 = vmatpush1.bf16.msra.mxu0 0
  %4917 = vmatprep.subr.bf16.mxu0 0
  %4918 = vmatpush1.bf16.msra.mxu0 0
  %4919 = vmatprep.subr.bf16.mxu0 0
  %4920 = vmatpush1.bf16.msra.mxu0 0
  %4921 = vmatprep.subr.bf16.mxu0 0
  %4922 = vmatpush1.bf16.msra.mxu0 0
  %4923 = vmatprep.subr.bf16.mxu0 0
  %4924 = vmatpush1.bf16.msra.mxu0 0
  %4925 = vmatprep.subr.bf16.mxu0 0
  %4926 = vmatpush1.bf16.msra.mxu0 0
  %4927 = vmatprep.subr.bf16.mxu0 0
  %4928 = vmatpush1.bf16.msra.mxu0 0
  %4929 = vmatprep.mubr.bf16.mxu0 0
  %4930 = vmatmul.mubr.bf16.gmra.mrb[0].mxu0 %v4892
  %v4931 = vpop.f32.mrb[0].mxu0
  %v4932 = vadd.f32 0.0, %v4931
  %v4933 = vpop.f32.mrb[0].mxu0
  %v4934 = vadd.f32 0.0, %v4933
  %v4935 = vpop.f32.mrb[0].mxu0
  %v4936 = vadd.f32 0.0, %v4935
  %v4937 = vpop.f32.mrb[0].mxu0
  %v4938 = vadd.f32 0.0, %v4937
  %4939 = vmatprep.mubr.bf16.mxu0 0
  %4940 = vmatmul.mubr.bf16.gmra.mrb[0].mxu0 %v4895
  %v4941 = vpop.f32.mrb[0].mxu0
  %v4942 = vadd.f32 0.0, %v4941
  %v4943 = vpop.f32.mrb[0].mxu0
  %v4944 = vadd.f32 0.0, %v4943
  %v4945 = vpop.f32.mrb[0].mxu0
  %v4946 = vpop.f32.mrb[0].mxu0
  %4947 = vdwg.mxu0
  %v4948 = vadd.f32 %v4705, %v4932
  %v4949 = vadd.f32 %v4706, %v4934
  %v4950 = vadd.f32 %v4707, %v4936
  %v4951 = vadd.f32 %v4708, %v4938
  %v4952 = vadd.f32 %v4709, %v4942
  %v4953 = vadd.f32 %v4710, %v4944
  %4954 = vrot.lane.b32.xlu0 %v2827, 112
  %v4955 = vpop.permute.xlu0 %4954
  %4957 = vxpose.xlu0.c.b16.start [1/8] %v4955, 128
  %4958 = vxpose.xlu0.c.b16.cont [2/8] 0, 128
  %4959 = vxpose.xlu0.c.b16.cont [3/8] 0, 128
  %4960 = vxpose.xlu0.c.b16.cont [4/8] 0, 128
  %4961 = vxpose.xlu0.c.b16.cont [5/8] 0, 128
  %4962 = vxpose.xlu0.c.b16.cont [6/8] 0, 128
  %4963 = vxpose.xlu0.c.b16.cont [7/8] 0, 128
  %4964 = vxpose.xlu0.c.b16.end [8/8] 0, 128
  %v4965 = vpop.trf.xlu0
  %v4966 = vpop.trf.xlu0
  %v4967 = vpop.trf.xlu0
  %v4968 = vpop.trf.xlu0
  %v4969 = vpop.trf.xlu0
  %v4970 = vpop.trf.xlu0
  %v4971 = vpop.trf.xlu0
  %v4972 = vpop.trf.xlu0
  %v4973 = vrot.slane %v4172, 3
  %v4974 = vrot.slane %v4173, 3
  %v4976 = vsel %vm2723, %v4965, 0
  %v4979 = vsel %vm2727, %v4973, 0
  %v4982 = vsel %vm2727, %v4974, 0
  %4984 = vmatprep.subr.bf16.mxu0 %v4982
  %4985 = vmatpush1.bf16.msra.mxu0 %v4979
  %4986 = vmatprep.subr.bf16.mxu0 0
  %4987 = vmatpush1.bf16.msra.mxu0 0
  %4988 = vmatprep.subr.bf16.mxu0 0
  %4989 = vmatpush1.bf16.msra.mxu0 0
  %4990 = vmatprep.subr.bf16.mxu0 0
  %4991 = vmatpush1.bf16.msra.mxu0 0
  %4992 = vmatprep.subr.bf16.mxu0 0
  %4993 = vmatpush1.bf16.msra.mxu0 0
  %4994 = vmatprep.subr.bf16.mxu0 0
  %4995 = vmatpush1.bf16.msra.mxu0 0
  %4996 = vmatprep.subr.bf16.mxu0 0
  %4997 = vmatpush1.bf16.msra.mxu0 0
  %4998 = vmatprep.subr.bf16.mxu0 0
  %4999 = vmatpush1.bf16.msra.mxu0 0
  %5000 = vmatprep.subr.bf16.mxu0 0
  %5001 = vmatpush1.bf16.msra.mxu0 0
  %5002 = vmatprep.subr.bf16.mxu0 0
  %5003 = vmatpush1.bf16.msra.mxu0 0
  %5004 = vmatprep.subr.bf16.mxu0 0
  %5005 = vmatpush1.bf16.msra.mxu0 0
  %5006 = vmatprep.subr.bf16.mxu0 0
  %5007 = vmatpush1.bf16.msra.mxu0 0
  %5008 = vmatprep.subr.bf16.mxu0 0
  %5009 = vmatpush1.bf16.msra.mxu0 0
  %5010 = vmatprep.subr.bf16.mxu0 0
  %5011 = vmatpush1.bf16.msra.mxu0 0
  %5012 = vmatprep.subr.bf16.mxu0 0
  %5013 = vmatpush1.bf16.msra.mxu0 0
  %5014 = vmatprep.subr.bf16.mxu0 0
  %5015 = vmatpush1.bf16.msra.mxu0 0
  %5016 = vmatprep.mubr.bf16.mxu0 0
  %5017 = vmatmul.mubr.bf16.gmra.mrb[0].mxu0 %v4976
  %v5018 = vpop.f32.mrb[0].mxu0
  %v5019 = vadd.f32 0.0, %v5018
  %v5020 = vpop.f32.mrb[0].mxu0
  %v5021 = vadd.f32 0.0, %v5020
  %v5022 = vpop.f32.mrb[0].mxu0
  %v5023 = vadd.f32 0.0, %v5022
  %v5024 = vpop.f32.mrb[0].mxu0
  %v5025 = vadd.f32 0.0, %v5024
  %5026 = vdwg.mxu0
  %v5027 = vmul.f32 %v5019, 0.70710677
  %v5028 = vmul.f32 %v5021, 0.70710677
  %v5029 = vmul.f32 %v5023, 0.70710677
  %v5030 = vmul.f32 %v5025, 0.70710677
  %v5031 = vmax.f32 %v5027, %v5029
  %v5032 = vrot.slane %v5031, 4
  %v5033 = vmax.f32 %v5031, %v5032
  %v5034 = vrot.slane %v5033, 2
  %v5035 = vmax.f32 %v5033, %v5034
  %v5036 = vrot.slane %v5035, 1
  %v5037 = vmax.f32 %v5035, %v5036
  %v5038 = vmax.f32 %v5028, %v5030
  %v5039 = vrot.slane %v5038, 4
  %v5040 = vmax.f32 %v5038, %v5039
  %v5041 = vrot.slane %v5040, 2
  %v5042 = vmax.f32 %v5040, %v5041
  %v5043 = vrot.slane %v5042, 1
  %v5044 = vmax.f32 %v5042, %v5043
  %v5045 = vsub.f32 %v5027, %v5037
  %v5046 = vsub.f32 %v5028, %v5044
  %v5047 = vsub.f32 %v5029, %v5037
  %v5048 = vsub.f32 %v5030, %v5044
  %v5049 = vmul.f32 %v5045, 1.442695
  %v5050 = vpow.pop %v5049
  %v5051 = vmul.f32 %v5046, 1.442695
  %v5052 = vpow.pop %v5051
  %v5053 = vmul.f32 %v5047, 1.442695
  %v5054 = vpow.pop %v5053
  %v5055 = vmul.f32 %v5048, 1.442695
  %v5056 = vpow.pop %v5055
  %v5057 = vadd.f32 %v5050, %v5054
  %v5058 = vrot.slane %v5057, 4
  %v5059 = vadd.f32 %v5057, %v5058
  %v5060 = vrot.slane %v5059, 2
  %v5061 = vadd.f32 %v5059, %v5060
  %v5062 = vrot.slane %v5061, 1
  %v5063 = vadd.f32 %v5061, %v5062
  %v5064 = vadd.f32 %v5052, %v5056
  %v5065 = vrot.slane %v5064, 4
  %v5066 = vadd.f32 %v5064, %v5065
  %v5067 = vrot.slane %v5066, 2
  %v5068 = vadd.f32 %v5066, %v5067
  %v5069 = vrot.slane %v5068, 1
  %v5070 = vadd.f32 %v5068, %v5069
  %v5071 = vrcp.pop %v5063
  %v5072 = vrcp.pop %v5070
  %v5073 = vmul.f32 %v5050, %v5071
  %v5074 = vmul.f32 %v5052, %v5072
  %v5075 = vmul.f32 %v5054, %v5071
  %v5076 = vmul.f32 %v5056, %v5072
  %5077 = vrot.lane.b32.xlu0 %v3830, 112
  %v5078 = vpop.permute.xlu0 %5077
  %v5080 = vsel %vm2727, %v5078, 0
  %5082 = vmatprep.subr.bf16.mxu0 0
  %5083 = vmatpush1.bf16.msra.mxu0 %v5080
  %5084 = vmatprep.subr.bf16.mxu0 0
  %5085 = vmatpush1.bf16.msra.mxu0 0
  %5086 = vmatprep.subr.bf16.mxu0 0
  %5087 = vmatpush1.bf16.msra.mxu0 0
  %5088 = vmatprep.subr.bf16.mxu0 0
  %5089 = vmatpush1.bf16.msra.mxu0 0
  %5090 = vmatprep.subr.bf16.mxu0 0
  %5091 = vmatpush1.bf16.msra.mxu0 0
  %5092 = vmatprep.subr.bf16.mxu0 0
  %5093 = vmatpush1.bf16.msra.mxu0 0
  %5094 = vmatprep.subr.bf16.mxu0 0
  %5095 = vmatpush1.bf16.msra.mxu0 0
  %5096 = vmatprep.subr.bf16.mxu0 0
  %5097 = vmatpush1.bf16.msra.mxu0 0
  %5098 = vmatprep.subr.bf16.mxu0 0
  %5099 = vmatpush1.bf16.msra.mxu0 0
  %5100 = vmatprep.subr.bf16.mxu0 0
  %5101 = vmatpush1.bf16.msra.mxu0 0
  %5102 = vmatprep.subr.bf16.mxu0 0
  %5103 = vmatpush1.bf16.msra.mxu0 0
  %5104 = vmatprep.subr.bf16.mxu0 0
  %5105 = vmatpush1.bf16.msra.mxu0 0
  %5106 = vmatprep.subr.bf16.mxu0 0
  %5107 = vmatpush1.bf16.msra.mxu0 0
  %5108 = vmatprep.subr.bf16.mxu0 0
  %5109 = vmatpush1.bf16.msra.mxu0 0
  %5110 = vmatprep.subr.bf16.mxu0 0
  %5111 = vmatpush1.bf16.msra.mxu0 0
  %5112 = vmatprep.subr.bf16.mxu0 0
  %5113 = vmatpush1.bf16.msra.mxu0 0
  %5114 = vmatprep.mubr.bf16.mxu0 0
  %5115 = vmatmul.mubr.bf16.gmra.mrb[0].mxu0 %v3832
  %v5116 = vpop.f32.mrb[0].mxu0
  %v5117 = vadd.f32 0.0, %v5116
  %v5118 = vpop.f32.mrb[0].mxu0
  %v5119 = vpop.f32.mrb[0].mxu0
  %v5120 = vadd.f32 0.0, %v5119
  %v5121 = vpop.f32.mrb[0].mxu0
  %5122 = vmatprep.mubr.bf16.mxu0 0
  %5123 = vmatmul.mubr.bf16.gmra.mrb[0].mxu0 %v3835
  %v5124 = vpop.f32.mrb[0].mxu0
  %v5125 = vadd.f32 0.0, %v5124
  %v5126 = vpop.f32.mrb[0].mxu0
  %v5127 = vpop.f32.mrb[0].mxu0
  %v5128 = vpop.f32.mrb[0].mxu0
  %5129 = vdwg.mxu0
  %v5130 = vpack.c.bf16 %v5120, %v5117
  %v5131 = vpack.c.bf16 %v5125, %v5125
  %v5132 = vpack.c.bf16 %v5075, %v5073
  %v5133 = vpack.c.bf16 %v5076, %v5074
  %v5135 = vsel %vm3086, %v5130, 0
  %v5138 = vsel %vm3086, %v5131, 0
  %5140 = vmatprep.subr.bf16.mxu0 %v5133
  %5141 = vmatpush1.bf16.msra.mxu0 %v5132
  %5142 = vmatprep.subr.bf16.mxu0 0
  %5143 = vmatpush1.bf16.msra.mxu0 0
  %5144 = vmatprep.subr.bf16.mxu0 0
  %5145 = vmatpush1.bf16.msra.mxu0 0
  %5146 = vmatprep.subr.bf16.mxu0 0
  %5147 = vmatpush1.bf16.msra.mxu0 0
  %5148 = vmatprep.subr.bf16.mxu0 0
  %5149 = vmatpush1.bf16.msra.mxu0 0
  %5150 = vmatprep.subr.bf16.mxu0 0
  %5151 = vmatpush1.bf16.msra.mxu0 0
  %5152 = vmatprep.subr.bf16.mxu0 0
  %5153 = vmatpush1.bf16.msra.mxu0 0
  %5154 = vmatprep.subr.bf16.mxu0 0
  %5155 = vmatpush1.bf16.msra.mxu0 0
  %5156 = vmatprep.subr.bf16.mxu0 0
  %5157 = vmatpush1.bf16.msra.mxu0 0
  %5158 = vmatprep.subr.bf16.mxu0 0
  %5159 = vmatpush1.bf16.msra.mxu0 0
  %5160 = vmatprep.subr.bf16.mxu0 0
  %5161 = vmatpush1.bf16.msra.mxu0 0
  %5162 = vmatprep.subr.bf16.mxu0 0
  %5163 = vmatpush1.bf16.msra.mxu0 0
  %5164 = vmatprep.subr.bf16.mxu0 0
  %5165 = vmatpush1.bf16.msra.mxu0 0
  %5166 = vmatprep.subr.bf16.mxu0 0
  %5167 = vmatpush1.bf16.msra.mxu0 0
  %5168 = vmatprep.subr.bf16.mxu0 0
  %5169 = vmatpush1.bf16.msra.mxu0 0
  %5170 = vmatprep.subr.bf16.mxu0 0
  %5171 = vmatpush1.bf16.msra.mxu0 0
  %5172 = vmatprep.mubr.bf16.mxu0 0
  %5173 = vmatmul.mubr.bf16.gmra.mrb[0].mxu0 %v5135
  %v5174 = vpop.f32.mrb[0].mxu0
  %v5175 = vadd.f32 0.0, %v5174
  %v5176 = vpop.f32.mrb[0].mxu0
  %v5177 = vadd.f32 0.0, %v5176
  %v5178 = vpop.f32.mrb[0].mxu0
  %v5179 = vadd.f32 0.0, %v5178
  %v5180 = vpop.f32.mrb[0].mxu0
  %v5181 = vadd.f32 0.0, %v5180
  %5182 = vmatprep.mubr.bf16.mxu0 0
  %5183 = vmatmul.mubr.bf16.gmra.mrb[0].mxu0 %v5138
  %v5184 = vpop.f32.mrb[0].mxu0
  %v5185 = vadd.f32 0.0, %v5184
  %v5186 = vpop.f32.mrb[0].mxu0
  %v5187 = vadd.f32 0.0, %v5186
  %v5188 = vpop.f32.mrb[0].mxu0
  %v5189 = vpop.f32.mrb[0].mxu0
  %5190 = vdwg.mxu0
  %v5191 = vadd.f32 %v4948, %v5175
  %v5192 = vadd.f32 %v4949, %v5177
  %v5193 = vadd.f32 %v4950, %v5179
  %v5194 = vadd.f32 %v4951, %v5181
  %v5195 = vadd.f32 %v4952, %v5185
  %v5196 = vadd.f32 %v4953, %v5187
  %v5197 = vadd.f32 %v2598, %v5191
  %v5198 = vadd.f32 %v2600, %v5192
  %v5199 = vadd.f32 %v2602, %v5193
  %v5200 = vadd.f32 %v2604, %v5194
  %v5201 = vadd.f32 %v2608, %v5195
  %v5202 = vadd.f32 %v2610, %v5196
  %v5203 = vadd.f32 %v5197, %v3964
  %v5204 = vadd.f32 %v5198, %v3964
  %v5205 = vadd.f32 %v5199, %v3969
  %v5206 = vadd.f32 %v5200, %v3969
  %v5207 = vadd.f32 %v5201, %v3974
  %v5208 = vadd.f32 %v5202, %v3974
  %5209 = vst [vmem:[%s4 + $0x10] sm:$0xff] %v5203
  %5210 = vst [vmem:[%s4 + $0x18] sm:$0xff] %v5204
  %5211 = vst [vmem:[%s4 + $0x30] sm:$0xff] %v5205
  %5212 = vst [vmem:[%s4 + $0x38] sm:$0xff] %v5206
  %5213 = vst [vmem:[%s4 + $0x50] sm:$0xf] %v5207
  %5214 = vst [vmem:[%s4 + $0x58] sm:$0xf] %v5208
  // Predicated region
  $region18: #{tpu_custom_call.1} parent=0 // pred_check
    _
  $region19: #{tpu_custom_call.1} parent=0 // pred_check_branch
    %5216 = sbr.rel (0) target = $region21
  $region20: #{tpu_custom_call.1} parent=0 // pred_region
    _
  $region21: #{tpu_custom_call.1} parent=0 // pred_fallthru
    _
  // Predicated region
  $region22: #{tpu_custom_call.1} parent=0 // pred_check
    _
  $region23: #{tpu_custom_call.1} parent=0 // pred_check_branch
    %5218 = sbr.rel (0) target = $region25
  $region24: #{tpu_custom_call.1} parent=0 // pred_region
    _
  $region25: #{tpu_custom_call.1} parent=0 // pred_fallthru
    _

</llo_original>
